<compile_context>
chip_gen: v7x
topology: tpu7x:2x2x1
jax: 0.10.0
libtpu: 0.0.40
codegen_flags: <defaults>
</compile_context>

<pallas_src>
import functools

import jax
import jax.numpy as jnp
from jax.experimental import pallas as pl
from jax.experimental.pallas import tpu as pltpu


def _mlp_kernel(xt_ref,
                w1_ref, b1_ref,
                w2_ref, b2_ref,
                w3_ref, b3_ref,
                w4_ref, b4_ref,
                w5_ref, b5_ref,
                o_ref):
    """Fused MLP in transposed-activation form.

    xt_ref : (n_features, block_b)   input block, batch on the lane axis
    w*_ref : PyTorch [out, in] layout (w1 f32, w2..w5 bf16)
    b*_ref : (out, 1) f32
    o_ref  : (proj_dim, block_b) f32 (lane-dense along the batch)
    """
    xt = xt_ref[...].astype(jnp.float32)          # (n_features, block_b)
    n_features = xt.shape[0]
    w1 = w1_ref[...]                              # (256, n_features) f32

    # ---- Layer 1: K = n_features (tiny) -> VPU outer-product accumulation,
    # skip the MXU entirely.
    h = w1[:, 0:1] * xt[0:1, :]                   # (256, block_b) f32
    for k in range(1, n_features):
        h = h + w1[:, k:k + 1] * xt[k:k + 1, :]
    h = jnp.maximum(h + b1_ref[...], 0.0).astype(jnp.bfloat16)

    # ---- Layers 2-4: natural W @ H^T MXU matmuls (no transposes), bf16
    # operands, f32 accumulation, f32 bias+ReLU, bf16 inter-layer intermediate.
    h = jnp.maximum(
        jnp.dot(w2_ref[...], h, preferred_element_type=jnp.float32)
        + b2_ref[...], 0.0).astype(jnp.bfloat16)  # (512, block_b)
    h = jnp.maximum(
        jnp.dot(w3_ref[...], h, preferred_element_type=jnp.float32)
        + b3_ref[...], 0.0).astype(jnp.bfloat16)  # (512, block_b)
    h = jnp.maximum(
        jnp.dot(w4_ref[...], h, preferred_element_type=jnp.float32)
        + b4_ref[...], 0.0).astype(jnp.bfloat16)  # (256, block_b)

    # ---- Layer 5: lane-dense (proj_dim, block_b) output tile for free.
    out_t = (jnp.dot(w5_ref[...], h, preferred_element_type=jnp.float32)
             + b5_ref[...])
    o_ref[...] = out_t.astype(o_ref.dtype)


def prepare_params(params):
    """params: [(W, b), ...] in PyTorch nn.Linear layout: W [out, in], b [out].

    Returns the kernel-ready flat tuple: weights KEPT in [out, in] layout
    (the kernel runs the transposed-activation form, so no transposes are
    needed); W2..W5 cast to bf16 (MXU operands), W1 f32 (VPU path); all
    biases f32 as (out, 1) columns."""
    (w1, b1), (w2, b2), (w3, b3), (w4, b4), (w5, b5) = params
    return (
        w1.astype(jnp.float32),  b1.reshape(-1, 1).astype(jnp.float32),
        w2.astype(jnp.bfloat16), b2.reshape(-1, 1).astype(jnp.float32),
        w3.astype(jnp.bfloat16), b3.reshape(-1, 1).astype(jnp.float32),
        w4.astype(jnp.bfloat16), b4.reshape(-1, 1).astype(jnp.float32),
        w5.astype(jnp.bfloat16), b5.reshape(-1, 1).astype(jnp.float32),
    )


@functools.partial(jax.jit, static_argnames=("block_b",))
def ev_module_forward(x, prepped, block_b=512):
    """x: [B, n_features] float32.  prepped: output of prepare_params.
    Returns [B, projection_dim] float32."""
    w1, b1, w2, b2, w3, b3, w4, b4, w5, b5 = prepped
    B, n_features = x.shape
    proj_dim = w5.shape[0]

    # Lane-align the batch (it lives on the 128-wide lane axis inside the
    # kernel).  For small B collapse to a SINGLE grid step: per-step overhead
    # (~0.35 us) is comparable to a whole block's compute here and one
    # >=256-row block fills the 256-wide MXU on v6e/v7x.
    b_pad = max(128, -(-B // 128) * 128)
    if b_pad <= block_b:
        block_b = b_pad
        grid_b = 1
    else:
        assert block_b % 128 == 0, "block_b must be a multiple of 128 when tiling"
        grid_b = -(-b_pad // block_b)
        b_pad = grid_b * block_b

    if b_pad != B:
        x = jnp.pad(x, ((0, b_pad - B), (0, 0)))
    # Wrapper-side transpose = layout plumbing only; puts batch on lanes.
    x_t = x.T                                     # (n_features, b_pad)

    flat = (w1, b1, w2, b2, w3, b3, w4, b4, w5, b5)

    def resident(arr):
        # Whole (small) weight/bias array resident in VMEM every grid step.
        # (Constant-index blocks still get default double-buffering; at these
        #  sizes that is ~1 MB of slack VMEM — revisit with pl.Buffered(1)
        #  only if the hidden widths grow.)
        return pl.BlockSpec(arr.shape, lambda i: (0, 0))

    in_specs = [pl.BlockSpec((n_features, block_b), lambda i: (0, i))]
    in_specs += [resident(a) for a in flat]
    # Lane-dense output: (proj_dim, block_b) tile, batch on the lane axis.
    out_spec = pl.BlockSpec((proj_dim, block_b), lambda i: (0, i))

    flops = 2 * b_pad * sum(int(w.shape[0]) * int(w.shape[1])
                            for w in (w1, w2, w3, w4, w5))
    bytes_accessed = (
        int(x_t.size) * x_t.dtype.itemsize
        + b_pad * proj_dim * 4
        + sum(int(a.size) * a.dtype.itemsize for a in flat))

    out_t = pl.pallas_call(
        _mlp_kernel,
        out_shape=jax.ShapeDtypeStruct((proj_dim, b_pad), jnp.float32),
        grid_spec=pltpu.PrefetchScalarGridSpec(
            num_scalar_prefetch=0,
            grid=(grid_b,),
            in_specs=in_specs,
            out_specs=out_spec,
        ),
        compiler_params=pltpu.CompilerParams(
            # Batch axis is independent -> megacore-shardable when grid_b > 1
            # (only worth it for B >= ~1024; each TC re-fetches the weights).
            dimension_semantics=("parallel",),
        ),
        cost_estimate=pl.CostEstimate(
            flops=flops, transcendentals=0, bytes_accessed=bytes_accessed),
    )(x_t, *flat)

    # Back to the PyTorch [B, proj_dim] layout (cheap wrapper transpose).
    return out_t[:, :B].T


def init_params(key, n_features=2, projection_dim=1):
    """Deterministic synthetic init in PyTorch nn.Linear layout:
    W [out, in], b [out], uniform(-1/sqrt(fan_in), 1/sqrt(fan_in))."""
    dims = [n_features, 256, 512, 512, 256, projection_dim]
    params = []
    for i in range(len(dims) - 1):
        fan_in, fan_out = dims[i], dims[i + 1]
        key, kw, kb = jax.random.split(key, 3)
        bound = 1.0 / float(jnp.sqrt(jnp.float32(fan_in)))
        w = jax.random.uniform(kw, (fan_out, fan_in), jnp.float32, -bound, bound)
        b = jax.random.uniform(kb, (fan_out,), jnp.float32, -bound, bound)
        params.append((w, b))
    return params


def reference_forward(x, prepped):
    """Pure-JAX reference using the SAME (bf16-cast) weights, run in f32.
    Weights are [out, in]; biases are (out, 1)."""
    w1, b1, w2, b2, w3, b3, w4, b4, w5, b5 = [
        a.astype(jnp.float32) for a in prepped]
    h = jnp.maximum(x @ w1.T + b1.T, 0.0)
    h = jnp.maximum(h @ w2.T + b2.T, 0.0)
    h = jnp.maximum(h @ w3.T + b3.T, 0.0)
    h = jnp.maximum(h @ w4.T + b4.T, 0.0)
    return h @ w5.T + b5.T


if __name__ == "__main__":
    key = jax.random.PRNGKey(0)
    k_param, k_x = jax.random.split(key)

    n_features = 2
    projection_dim = 1
    batch = 256

    torch_params = init_params(k_param, n_features, projection_dim)
    prepped = prepare_params(torch_params)
    x = jax.random.normal(k_x, (batch, n_features), jnp.float32)

    # batch=256 <= block_b default -> single 256-row block, one grid step
    # (kills per-step overhead and fills the 256-wide MXU on v6e/v7x).
    out = ev_module_forward(x, prepped)
    out = jax.block_until_ready(out)

    assert out.shape == (batch, projection_dim)

    ref = reference_forward(x, prepped)
    err = float(jnp.max(jnp.abs(out - ref)))
    scale = float(jnp.maximum(jnp.max(jnp.abs(ref)), 1.0))
    assert err <= 3e-2 * scale, f"mismatch vs pure-JAX reference: max abs err {err}"

    print("KERNEL_OK")
</pallas_src>

<mosaic_0001>
module attributes {stable_mosaic.version = 11 : i64} {
  func.func @_mlp_kernel(%arg0: i32, %arg1: memref<2x256xf32, #tpu.memory_space<vmem>>, %arg2: memref<256x2xf32, #tpu.memory_space<vmem>>, %arg3: memref<256x1xf32, #tpu.memory_space<vmem>>, %arg4: memref<512x256xbf16, #tpu.memory_space<vmem>>, %arg5: memref<512x1xf32, #tpu.memory_space<vmem>>, %arg6: memref<512x512xbf16, #tpu.memory_space<vmem>>, %arg7: memref<512x1xf32, #tpu.memory_space<vmem>>, %arg8: memref<256x512xbf16, #tpu.memory_space<vmem>>, %arg9: memref<256x1xf32, #tpu.memory_space<vmem>>, %arg10: memref<1x256xbf16, #tpu.memory_space<vmem>>, %arg11: memref<1x1xf32, #tpu.memory_space<vmem>>, %arg12: memref<1x256xf32, #tpu.memory_space<vmem>>) attributes {dimension_semantics = [#tpu.dimension_semantics<parallel>], iteration_bounds = array<i64: 1>, scalar_prefetch = 0 : i64, scratch_operands = 0 : i64, tpu.core_type = #tpu.core_type<tc>, window_params = [{transform_indices = @transform_0, window_bounds = array<i64: 2, 256>}, {pipeline_mode = #tpu.pipeline_mode<synchronous>, transform_indices = @transform_1, window_bounds = array<i64: 256, 2>}, {pipeline_mode = #tpu.pipeline_mode<synchronous>, transform_indices = @transform_2, window_bounds = array<i64: 256, 1>}, {pipeline_mode = #tpu.pipeline_mode<synchronous>, transform_indices = @transform_3, window_bounds = array<i64: 512, 256>}, {pipeline_mode = #tpu.pipeline_mode<synchronous>, transform_indices = @transform_4, window_bounds = array<i64: 512, 1>}, {pipeline_mode = #tpu.pipeline_mode<synchronous>, transform_indices = @transform_5, window_bounds = array<i64: 512, 512>}, {pipeline_mode = #tpu.pipeline_mode<synchronous>, transform_indices = @transform_6, window_bounds = array<i64: 512, 1>}, {pipeline_mode = #tpu.pipeline_mode<synchronous>, transform_indices = @transform_7, window_bounds = array<i64: 256, 512>}, {pipeline_mode = #tpu.pipeline_mode<synchronous>, transform_indices = @transform_8, window_bounds = array<i64: 256, 1>}, {pipeline_mode = #tpu.pipeline_mode<synchronous>, transform_indices = @transform_9, window_bounds = array<i64: 1, 256>}, {pipeline_mode = #tpu.pipeline_mode<synchronous>, transform_indices = @transform_10, window_bounds = array<i64: 1, 1>}, {transform_indices = @transform_11, window_bounds = array<i64: 1, 256>}]} {
    %c0 = arith.constant 0 : index
    %c0_0 = arith.constant 0 : index
    %0 = vector.load %arg1[%c0, %c0_0] : memref<2x256xf32, #tpu.memory_space<vmem>>, vector<2x256xf32>
    %c0_1 = arith.constant 0 : index
    %c0_2 = arith.constant 0 : index
    %1 = vector.load %arg2[%c0_1, %c0_2] : memref<256x2xf32, #tpu.memory_space<vmem>>, vector<256x2xf32>
    %2 = vector.extract_strided_slice %1 {offsets = [0, 0], sizes = [256, 1], strides = [1, 1]} : vector<256x2xf32> to vector<256x1xf32>
    %3 = vector.extract_strided_slice %0 {offsets = [0, 0], sizes = [1, 256], strides = [1, 1]} : vector<2x256xf32> to vector<1x256xf32>
    %4 = vector.broadcast %2 : vector<256x1xf32> to vector<256x256xf32>
    %5 = vector.broadcast %3 : vector<1x256xf32> to vector<256x256xf32>
    %6 = arith.mulf %4, %5 : vector<256x256xf32>
    %7 = vector.extract_strided_slice %1 {offsets = [0, 1], sizes = [256, 1], strides = [1, 1]} : vector<256x2xf32> to vector<256x1xf32>
    %8 = vector.extract_strided_slice %0 {offsets = [1, 0], sizes = [1, 256], strides = [1, 1]} : vector<2x256xf32> to vector<1x256xf32>
    %9 = vector.broadcast %7 : vector<256x1xf32> to vector<256x256xf32>
    %10 = vector.broadcast %8 : vector<1x256xf32> to vector<256x256xf32>
    %11 = arith.mulf %9, %10 : vector<256x256xf32>
    %12 = arith.addf %6, %11 : vector<256x256xf32>
    %c0_3 = arith.constant 0 : index
    %c0_4 = arith.constant 0 : index
    %13 = vector.load %arg3[%c0_3, %c0_4] : memref<256x1xf32, #tpu.memory_space<vmem>>, vector<256x1xf32>
    %14 = vector.broadcast %13 : vector<256x1xf32> to vector<256x256xf32>
    %15 = arith.addf %12, %14 : vector<256x256xf32>
    %cst = arith.constant 0.000000e+00 : f32
    %16 = vector.broadcast %cst : f32 to vector<256x256xf32>
    %17 = arith.maximumf %15, %16 : vector<256x256xf32>
    %18 = arith.truncf %17 : vector<256x256xf32> to vector<256x256xbf16>
    %c0_5 = arith.constant 0 : index
    %c0_6 = arith.constant 0 : index
    %19 = vector.load %arg4[%c0_5, %c0_6] : memref<512x256xbf16, #tpu.memory_space<vmem>>, vector<512x256xbf16>
    %cst_7 = arith.constant dense<0.000000e+00> : vector<512x256xf32>
    %20 = tpu.matmul %19, %18, %cst_7 {dimension_numbers = #tpu.dot_dimension_numbers<[1], [0], [0], [1], [0, 0, 1, 1], [], []>} : vector<512x256xbf16>, vector<256x256xbf16>, vector<512x256xf32> -> vector<512x256xf32>
    %c0_8 = arith.constant 0 : index
    %c0_9 = arith.constant 0 : index
    %21 = vector.load %arg5[%c0_8, %c0_9] : memref<512x1xf32, #tpu.memory_space<vmem>>, vector<512x1xf32>
    %22 = vector.broadcast %21 : vector<512x1xf32> to vector<512x256xf32>
    %23 = arith.addf %20, %22 : vector<512x256xf32>
    %cst_10 = arith.constant 0.000000e+00 : f32
    %24 = vector.broadcast %cst_10 : f32 to vector<512x256xf32>
    %25 = arith.maximumf %23, %24 : vector<512x256xf32>
    %26 = arith.truncf %25 : vector<512x256xf32> to vector<512x256xbf16>
    %c0_11 = arith.constant 0 : index
    %c0_12 = arith.constant 0 : index
    %27 = vector.load %arg6[%c0_11, %c0_12] : memref<512x512xbf16, #tpu.memory_space<vmem>>, vector<512x512xbf16>
    %cst_13 = arith.constant dense<0.000000e+00> : vector<512x256xf32>
    %28 = tpu.matmul %27, %26, %cst_13 {dimension_numbers = #tpu.dot_dimension_numbers<[1], [0], [0], [1], [0, 0, 1, 1], [], []>} : vector<512x512xbf16>, vector<512x256xbf16>, vector<512x256xf32> -> vector<512x256xf32>
    %c0_14 = arith.constant 0 : index
    %c0_15 = arith.constant 0 : index
    %29 = vector.load %arg7[%c0_14, %c0_15] : memref<512x1xf32, #tpu.memory_space<vmem>>, vector<512x1xf32>
    %30 = vector.broadcast %29 : vector<512x1xf32> to vector<512x256xf32>
    %31 = arith.addf %28, %30 : vector<512x256xf32>
    %cst_16 = arith.constant 0.000000e+00 : f32
    %32 = vector.broadcast %cst_16 : f32 to vector<512x256xf32>
    %33 = arith.maximumf %31, %32 : vector<512x256xf32>
    %34 = arith.truncf %33 : vector<512x256xf32> to vector<512x256xbf16>
    %c0_17 = arith.constant 0 : index
    %c0_18 = arith.constant 0 : index
    %35 = vector.load %arg8[%c0_17, %c0_18] : memref<256x512xbf16, #tpu.memory_space<vmem>>, vector<256x512xbf16>
    %cst_19 = arith.constant dense<0.000000e+00> : vector<256x256xf32>
    %36 = tpu.matmul %35, %34, %cst_19 {dimension_numbers = #tpu.dot_dimension_numbers<[1], [0], [0], [1], [0, 0, 1, 1], [], []>} : vector<256x512xbf16>, vector<512x256xbf16>, vector<256x256xf32> -> vector<256x256xf32>
    %c0_20 = arith.constant 0 : index
    %c0_21 = arith.constant 0 : index
    %37 = vector.load %arg9[%c0_20, %c0_21] : memref<256x1xf32, #tpu.memory_space<vmem>>, vector<256x1xf32>
    %38 = vector.broadcast %37 : vector<256x1xf32> to vector<256x256xf32>
    %39 = arith.addf %36, %38 : vector<256x256xf32>
    %cst_22 = arith.constant 0.000000e+00 : f32
    %40 = vector.broadcast %cst_22 : f32 to vector<256x256xf32>
    %41 = arith.maximumf %39, %40 : vector<256x256xf32>
    %42 = arith.truncf %41 : vector<256x256xf32> to vector<256x256xbf16>
    %c0_23 = arith.constant 0 : index
    %c0_24 = arith.constant 0 : index
    %43 = vector.load %arg10[%c0_23, %c0_24] : memref<1x256xbf16, #tpu.memory_space<vmem>>, vector<1x256xbf16>
    %cst_25 = arith.constant dense<0.000000e+00> : vector<1x256xf32>
    %44 = tpu.matmul %43, %42, %cst_25 {dimension_numbers = #tpu.dot_dimension_numbers<[1], [0], [0], [1], [0, 0, 1, 1], [], []>} : vector<1x256xbf16>, vector<256x256xbf16>, vector<1x256xf32> -> vector<1x256xf32>
    %c0_26 = arith.constant 0 : index
    %c0_27 = arith.constant 0 : index
    %45 = vector.load %arg11[%c0_26, %c0_27] : memref<1x1xf32, #tpu.memory_space<vmem>>, vector<1x1xf32>
    %46 = vector.broadcast %45 : vector<1x1xf32> to vector<1x256xf32>
    %47 = arith.addf %44, %46 : vector<1x256xf32>
    %c0_28 = arith.constant 0 : index
    %c0_29 = arith.constant 0 : index
    %48 = vector.load %arg12[%c0_28, %c0_29] : memref<1x256xf32, #tpu.memory_space<vmem>>, vector<1x256xf32>
    tpu.vector_store %arg12[%c0_28, %c0_29], %47 {strides = array<i32>} : memref<1x256xf32, #tpu.memory_space<vmem>>, vector<1x256xf32>,
    return
  }
  func.func @transform_0(%arg0: i32) -> (i32, i32) {
    %c0_i32 = arith.constant 0 : i32
    %c0_i32_0 = arith.constant 0 : i32
    return %c0_i32, %arg0 : i32, i32
  }
  func.func @transform_1(%arg0: i32) -> (i32, i32) {
    %c0_i32 = arith.constant 0 : i32
    %c0_i32_0 = arith.constant 0 : i32
    %c0_i32_1 = arith.constant 0 : i32
    return %c0_i32, %c0_i32_0 : i32, i32
  }
  func.func @transform_2(%arg0: i32) -> (i32, i32) {
    %c0_i32 = arith.constant 0 : i32
    %c0_i32_0 = arith.constant 0 : i32
    %c0_i32_1 = arith.constant 0 : i32
    return %c0_i32, %c0_i32_0 : i32, i32
  }
  func.func @transform_3(%arg0: i32) -> (i32, i32) {
    %c0_i32 = arith.constant 0 : i32
    %c0_i32_0 = arith.constant 0 : i32
    %c0_i32_1 = arith.constant 0 : i32
    return %c0_i32, %c0_i32_0 : i32, i32
  }
  func.func @transform_4(%arg0: i32) -> (i32, i32) {
    %c0_i32 = arith.constant 0 : i32
    %c0_i32_0 = arith.constant 0 : i32
    %c0_i32_1 = arith.constant 0 : i32
    return %c0_i32, %c0_i32_0 : i32, i32
  }
  func.func @transform_5(%arg0: i32) -> (i32, i32) {
    %c0_i32 = arith.constant 0 : i32
    %c0_i32_0 = arith.constant 0 : i32
    %c0_i32_1 = arith.constant 0 : i32
    return %c0_i32, %c0_i32_0 : i32, i32
  }
  func.func @transform_6(%arg0: i32) -> (i32, i32) {
    %c0_i32 = arith.constant 0 : i32
    %c0_i32_0 = arith.constant 0 : i32
    %c0_i32_1 = arith.constant 0 : i32
    return %c0_i32, %c0_i32_0 : i32, i32
  }
  func.func @transform_7(%arg0: i32) -> (i32, i32) {
    %c0_i32 = arith.constant 0 : i32
    %c0_i32_0 = arith.constant 0 : i32
    %c0_i32_1 = arith.constant 0 : i32
    return %c0_i32, %c0_i32_0 : i32, i32
  }
  func.func @transform_8(%arg0: i32) -> (i32, i32) {
    %c0_i32 = arith.constant 0 : i32
    %c0_i32_0 = arith.constant 0 : i32
    %c0_i32_1 = arith.constant 0 : i32
    return %c0_i32, %c0_i32_0 : i32, i32
  }
  func.func @transform_9(%arg0: i32) -> (i32, i32) {
    %c0_i32 = arith.constant 0 : i32
    %c0_i32_0 = arith.constant 0 : i32
    %c0_i32_1 = arith.constant 0 : i32
    return %c0_i32, %c0_i32_0 : i32, i32
  }
  func.func @transform_10(%arg0: i32) -> (i32, i32) {
    %c0_i32 = arith.constant 0 : i32
    %c0_i32_0 = arith.constant 0 : i32
    %c0_i32_1 = arith.constant 0 : i32
    return %c0_i32, %c0_i32_0 : i32, i32
  }
  func.func @transform_11(%arg0: i32) -> (i32, i32) {
    %c0_i32 = arith.constant 0 : i32
    %c0_i32_0 = arith.constant 0 : i32
    return %c0_i32, %arg0 : i32, i32
  }
}

</mosaic_0001>

<llo_original>
// kernel: ev_module_forward.1
$region0: #{ev_module_forward.1}
  #allocation0 [shape = 'u32[]', space=smem, size = 0x4, offset = 0x4, fixed_abs, tag = 'smem constant byte address 0x4 - core index']
  #allocation1 [shape = 'u32[144,128]{1,0:T(1,128)}', space=vmem, size = 0x12000, scoped, tag = 'internal scratch']
  #allocation2 [shape = 'f32[1,1]{1,0:T(1,128)S(1)}', space=vmem, size = 0x200, scoped, tag = 'scoped memory for ev_module_forward.1']
  %s0 = inlined_call_operand.vmem [shape: f32[2,256], index: 0, kind: input, shape index: {}]
  %s1 = inlined_call_operand.vmem [shape: f32[256,2], index: 1, kind: input, shape index: {}]
  %s2 = inlined_call_operand.vmem [shape: f32[256,1], index: 2, kind: input, shape index: {}]
  %s3 = inlined_call_operand.vmem [shape: bf16[512,256], index: 3, kind: input, shape index: {}]
  %s4 = inlined_call_operand.vmem [shape: f32[512,1], index: 4, kind: input, shape index: {}]
  %s5 = inlined_call_operand.vmem [shape: bf16[512,512], index: 5, kind: input, shape index: {}]
  %s6 = inlined_call_operand.vmem [shape: f32[512,1], index: 6, kind: input, shape index: {}]
  %s7 = inlined_call_operand.hbm [shape: bf16[256,512], index: 7, kind: input, shape index: {}]
  %s8 = inlined_call_operand.vmem [shape: f32[256,1], index: 8, kind: input, shape index: {}]
  %s9 = inlined_call_operand.vmem [shape: bf16[1,256], index: 9, kind: input, shape index: {}]
  %s10 = inlined_call_operand.<no memory space> [shape: f32[1,1], index: 10, kind: input, shape index: {}]
  %s11 = inlined_call_operand.hbm [shape: f32[1,256], index: 11, kind: output, shape index: {}]
  %s12 = sld [smem:[#allocation0]]
  $region58: #{ev_module_forward.1} parent=0
    _
  %s14 = ssub.s32 1, %s12
  %s15 = scalar_select 0, %s14, %s12
  %v16 = vstv %s10
  %17 = vst [vmem:[#allocation2] sm:$0x1] %v16
  $region1: #{ev_module_forward.1} parent=0
    #allocation3 [shape = 'u8[262144]{0}', space=vmem, size = 0x40000, scoped, tag = 'input window, operand 7, single buffered']
    #allocation4 [shape = 's32[1]{0}', space=sflag, size = 0x4, scoped, tag = 'scoped memory for ev_module_forward.1']
    #allocation5 [shape = 's32[1]{0}', space=sflag, size = 0x4, scoped, tag = 'scoped memory for ev_module_forward.1']
    #allocation6 [shape = 'u8[1024]{0}', space=vmem, size = 0x400, scoped, tag = 'output window, operand 0, single buffered']
    %18 = vsyncpa [#allocation4], 0
    %19 = vsyncpa [#allocation5], 0
    // Predicated region
    $region2: #{ev_module_forward.1} parent=1 // pred_check
      _
    $region3: #{ev_module_forward.1} parent=1 // pred_check_branch
      %21 = sbr.rel (0) target = $region5
    $region4: #{ev_module_forward.1} parent=1 // pred_region
      _
    $region5: #{ev_module_forward.1} parent=1 // pred_fallthru
      _
    // Predicated region
    $region6: #{ev_module_forward.1} parent=1 // pred_check
      _
    $region7: #{ev_module_forward.1} parent=1 // pred_check_branch
      %23 = sbr.rel (0) target = $region9
    $region8: #{ev_module_forward.1} parent=1 // pred_region
      _
    $region9: #{ev_module_forward.1} parent=1 // pred_fallthru
      _
    // Predicated region
    $region10: #{ev_module_forward.1} parent=1 // pred_check
      _
    $region11: #{ev_module_forward.1} parent=1 // pred_check_branch
      %25 = sbr.rel (0) target = $region13
    $region12: #{ev_module_forward.1} parent=1 // pred_region
      _
    $region13: #{ev_module_forward.1} parent=1 // pred_fallthru
      _
    // Predicated region
    $region14: #{ev_module_forward.1} parent=1 // pred_check
      _
    $region15: #{ev_module_forward.1} parent=1 // pred_check_branch
      %27 = sbr.rel (0) target = $region17
    $region16: #{ev_module_forward.1} parent=1 // pred_region
      _
    $region17: #{ev_module_forward.1} parent=1 // pred_fallthru
      _
    // Predicated region
    $region18: #{ev_module_forward.1} parent=1 // pred_check
      _
    $region19: #{ev_module_forward.1} parent=1 // pred_check_branch
      %29 = sbr.rel (0) target = $region21
    $region20: #{ev_module_forward.1} parent=1 // pred_region
      _
    $region21: #{ev_module_forward.1} parent=1 // pred_fallthru
      _
    // Predicated region
    $region22: #{ev_module_forward.1} parent=1 // pred_check
      _
    $region23: #{ev_module_forward.1} parent=1 // pred_check_branch
      %31 = sbr.rel (0) target = $region25
    $region24: #{ev_module_forward.1} parent=1 // pred_region
      _
    $region25: #{ev_module_forward.1} parent=1 // pred_fallthru
      _
    // Predicated region
    $region26: #{ev_module_forward.1} parent=1 // pred_check
      _
    $region27: #{ev_module_forward.1} parent=1 // pred_check_branch
      %33 = sbr.rel (0) target = $region29
    $region28: #{ev_module_forward.1} parent=1 // pred_region
      _
    $region29: #{ev_module_forward.1} parent=1 // pred_fallthru
      _
    // Predicated region
    $region30: #{ev_module_forward.1} parent=1 // pred_check
      _
    $region31: #{ev_module_forward.1} parent=1 // pred_check_branch
      %35 = sbr.rel (0) target = $region33
    $region32: #{ev_module_forward.1} parent=1 // pred_region
      %s37 = ssub.s32 8192, 8192
      %38 = vsyncadd [#allocation4], %s37
      %s39 = sshll.u32 [#allocation3], 4
      %s40 = int_to_ptr.vmem [resolvable:$true] %s39
      %45 = dma.hbm_to_vmem [thread:$0]  %s7, 8192, %s40, [#allocation4], 256, 256, 16
    $region33: #{ev_module_forward.1} parent=1 // pred_fallthru
      _
    // Predicated region
    $region34: #{ev_module_forward.1} parent=1 // pred_check
      _
    $region35: #{ev_module_forward.1} parent=1 // pred_check_branch
      %47 = sbr.rel (0) target = $region37
    $region36: #{ev_module_forward.1} parent=1 // pred_region
      _
    $region37: #{ev_module_forward.1} parent=1 // pred_fallthru
      _
    // Predicated region
    $region38: #{ev_module_forward.1} parent=1 // pred_check
      _
    $region39: #{ev_module_forward.1} parent=1 // pred_check_branch
      %49 = sbr.rel (0) target = $region41
    $region40: #{ev_module_forward.1} parent=1 // pred_region
      _
    $region41: #{ev_module_forward.1} parent=1 // pred_fallthru
      _
    // Predicated region
    $region42: #{ev_module_forward.1} parent=1 // pred_check
      _
    $region43: #{ev_module_forward.1} parent=1 // pred_check_branch
      %51 = sbr.rel (0) target = $region45
    $region44: #{ev_module_forward.1} parent=1 // pred_region
      _
    $region45: #{ev_module_forward.1} parent=1 // pred_fallthru
      _
    // Predicated region
    $region46: #{ev_module_forward.1} parent=1 // pred_check
      _
    $region47: #{ev_module_forward.1} parent=1 // pred_check_branch
      %53 = sbr.rel (0) target = $region49
    $region48: #{ev_module_forward.1} parent=1 // pred_region
      %54 = dma.done [#allocation4], 8192
    $region49: #{ev_module_forward.1} parent=1 // pred_fallthru
      _
    %v55 = vld [vmem:[%s0] sm:$0xf]
    %v56 = vld [vmem:[%s1] sm:$0xff]
    %v57 = vld [vmem:[%s1 + $0x8] sm:$0xff]
    %v58 = vld [vmem:[%s1 + $0x10] sm:$0xff]
    %v59 = vld [vmem:[%s1 + $0x18] sm:$0xff]
    %v60 = vld [vmem:[%s1 + $0x20] sm:$0xff]
    %v61 = vld [vmem:[%s1 + $0x28] sm:$0xff]
    %v62 = vld [vmem:[%s1 + $0x30] sm:$0xff]
    %v63 = vld [vmem:[%s1 + $0x38] sm:$0xff]
    %v64 = vld [vmem:[%s1 + $0x40] sm:$0xff]
    %v65 = vld [vmem:[%s1 + $0x48] sm:$0xff]
    %v66 = vld [vmem:[%s1 + $0x50] sm:$0xff]
    %v67 = vld [vmem:[%s1 + $0x58] sm:$0xff]
    %v68 = vld [vmem:[%s1 + $0x60] sm:$0xff]
    %v69 = vld [vmem:[%s1 + $0x68] sm:$0xff]
    %v70 = vld [vmem:[%s1 + $0x70] sm:$0xff]
    %v71 = vld [vmem:[%s1 + $0x78] sm:$0xff]
    %v72 = vld [vmem:[%s1 + $0x80] sm:$0xff]
    %v73 = vld [vmem:[%s1 + $0x88] sm:$0xff]
    %v74 = vld [vmem:[%s1 + $0x90] sm:$0xff]
    %v75 = vld [vmem:[%s1 + $0x98] sm:$0xff]
    %v76 = vld [vmem:[%s1 + $0xa0] sm:$0xff]
    %v77 = vld [vmem:[%s1 + $0xa8] sm:$0xff]
    %v78 = vld [vmem:[%s1 + $0xb0] sm:$0xff]
    %v79 = vld [vmem:[%s1 + $0xb8] sm:$0xff]
    %v80 = vld [vmem:[%s1 + $0xc0] sm:$0xff]
    %v81 = vld [vmem:[%s1 + $0xc8] sm:$0xff]
    %v82 = vld [vmem:[%s1 + $0xd0] sm:$0xff]
    %v83 = vld [vmem:[%s1 + $0xd8] sm:$0xff]
    %v84 = vld [vmem:[%s1 + $0xe0] sm:$0xff]
    %v85 = vld [vmem:[%s1 + $0xe8] sm:$0xff]
    %v86 = vld [vmem:[%s1 + $0xf0] sm:$0xff]
    %v87 = vld [vmem:[%s1 + $0xf8] sm:$0xff]
    %89 = vset.pattern.permute.xlu0 0
    %90 = vperm.xlu0 %89, %v56
    %v91 = vpop.permute.xlu0 %90
    %94 = vset.pattern.permute.xlu0 0
    %95 = vperm.xlu0 %94, %v57
    %v96 = vpop.permute.xlu0 %95
    %99 = vset.pattern.permute.xlu0 0
    %100 = vperm.xlu0 %99, %v58
    %v101 = vpop.permute.xlu0 %100
    %104 = vset.pattern.permute.xlu0 0
    %105 = vperm.xlu0 %104, %v59
    %v106 = vpop.permute.xlu0 %105
    %109 = vset.pattern.permute.xlu0 0
    %110 = vperm.xlu0 %109, %v60
    %v111 = vpop.permute.xlu0 %110
    %114 = vset.pattern.permute.xlu0 0
    %115 = vperm.xlu0 %114, %v61
    %v116 = vpop.permute.xlu0 %115
    %119 = vset.pattern.permute.xlu0 0
    %120 = vperm.xlu0 %119, %v62
    %v121 = vpop.permute.xlu0 %120
    %124 = vset.pattern.permute.xlu0 0
    %125 = vperm.xlu0 %124, %v63
    %v126 = vpop.permute.xlu0 %125
    %129 = vset.pattern.permute.xlu0 0
    %130 = vperm.xlu0 %129, %v64
    %v131 = vpop.permute.xlu0 %130
    %134 = vset.pattern.permute.xlu0 0
    %135 = vperm.xlu0 %134, %v65
    %v136 = vpop.permute.xlu0 %135
    %139 = vset.pattern.permute.xlu0 0
    %140 = vperm.xlu0 %139, %v66
    %v141 = vpop.permute.xlu0 %140
    %144 = vset.pattern.permute.xlu0 0
    %145 = vperm.xlu0 %144, %v67
    %v146 = vpop.permute.xlu0 %145
    %149 = vset.pattern.permute.xlu0 0
    %150 = vperm.xlu0 %149, %v68
    %v151 = vpop.permute.xlu0 %150
    %154 = vset.pattern.permute.xlu0 0
    %155 = vperm.xlu0 %154, %v69
    %v156 = vpop.permute.xlu0 %155
    %159 = vset.pattern.permute.xlu0 0
    %160 = vperm.xlu0 %159, %v70
    %v161 = vpop.permute.xlu0 %160
    %164 = vset.pattern.permute.xlu0 0
    %165 = vperm.xlu0 %164, %v71
    %v166 = vpop.permute.xlu0 %165
    %169 = vset.pattern.permute.xlu0 0
    %170 = vperm.xlu0 %169, %v72
    %v171 = vpop.permute.xlu0 %170
    %174 = vset.pattern.permute.xlu0 0
    %175 = vperm.xlu0 %174, %v73
    %v176 = vpop.permute.xlu0 %175
    %179 = vset.pattern.permute.xlu0 0
    %180 = vperm.xlu0 %179, %v74
    %v181 = vpop.permute.xlu0 %180
    %184 = vset.pattern.permute.xlu0 0
    %185 = vperm.xlu0 %184, %v75
    %v186 = vpop.permute.xlu0 %185
    %189 = vset.pattern.permute.xlu0 0
    %190 = vperm.xlu0 %189, %v76
    %v191 = vpop.permute.xlu0 %190
    %194 = vset.pattern.permute.xlu0 0
    %195 = vperm.xlu0 %194, %v77
    %v196 = vpop.permute.xlu0 %195
    %199 = vset.pattern.permute.xlu0 0
    %200 = vperm.xlu0 %199, %v78
    %v201 = vpop.permute.xlu0 %200
    %204 = vset.pattern.permute.xlu0 0
    %205 = vperm.xlu0 %204, %v79
    %v206 = vpop.permute.xlu0 %205
    %209 = vset.pattern.permute.xlu0 0
    %210 = vperm.xlu0 %209, %v80
    %v211 = vpop.permute.xlu0 %210
    %214 = vset.pattern.permute.xlu0 0
    %215 = vperm.xlu0 %214, %v81
    %v216 = vpop.permute.xlu0 %215
    %219 = vset.pattern.permute.xlu0 0
    %220 = vperm.xlu0 %219, %v82
    %v221 = vpop.permute.xlu0 %220
    %224 = vset.pattern.permute.xlu0 0
    %225 = vperm.xlu0 %224, %v83
    %v226 = vpop.permute.xlu0 %225
    %229 = vset.pattern.permute.xlu0 0
    %230 = vperm.xlu0 %229, %v84
    %v231 = vpop.permute.xlu0 %230
    %234 = vset.pattern.permute.xlu0 0
    %235 = vperm.xlu0 %234, %v85
    %v236 = vpop.permute.xlu0 %235
    %239 = vset.pattern.permute.xlu0 0
    %240 = vperm.xlu0 %239, %v86
    %v241 = vpop.permute.xlu0 %240
    %244 = vset.pattern.permute.xlu0 0
    %245 = vperm.xlu0 %244, %v87
    %v246 = vpop.permute.xlu0 %245
    %v249 = vlaneseq
    %v250 = vshrl.u32 %v249, 7
    %v251 = vsub.s32 0, %v250
    %v252 = vrot.slane %v55, %v251
    %v253 = vlaneseq
    %v254 = vshrl.u32 %v253, 7
    %v255 = vsub.s32 2, %v254
    %v256 = vrot.slane %v55, %v255
    %v259 = vlaneseq
    %v260 = vshrl.u32 %v259, 7
    %v261 = vsub.s32 0, %v260
    %v262 = vrot.slane %v252, %v261
    %v263 = vlaneseq
    %v264 = vshrl.u32 %v263, 7
    %v265 = vsub.s32 0, %v264
    %v266 = vrot.slane %v256, %v265
    %v267 = vmul.f32 %v91, %v262
    %v268 = vmul.f32 %v91, %v266
    %v269 = vmul.f32 %v96, %v262
    %v270 = vmul.f32 %v96, %v266
    %v271 = vmul.f32 %v101, %v262
    %v272 = vmul.f32 %v101, %v266
    %v273 = vmul.f32 %v106, %v262
    %v274 = vmul.f32 %v106, %v266
    %v275 = vmul.f32 %v111, %v262
    %v276 = vmul.f32 %v111, %v266
    %v277 = vmul.f32 %v116, %v262
    %v278 = vmul.f32 %v116, %v266
    %v279 = vmul.f32 %v121, %v262
    %v280 = vmul.f32 %v121, %v266
    %v281 = vmul.f32 %v126, %v262
    %v282 = vmul.f32 %v126, %v266
    %v283 = vmul.f32 %v131, %v262
    %v284 = vmul.f32 %v131, %v266
    %v285 = vmul.f32 %v136, %v262
    %v286 = vmul.f32 %v136, %v266
    %v287 = vmul.f32 %v141, %v262
    %v288 = vmul.f32 %v141, %v266
    %v289 = vmul.f32 %v146, %v262
    %v290 = vmul.f32 %v146, %v266
    %v291 = vmul.f32 %v151, %v262
    %v292 = vmul.f32 %v151, %v266
    %v293 = vmul.f32 %v156, %v262
    %v294 = vmul.f32 %v156, %v266
    %v295 = vmul.f32 %v161, %v262
    %v296 = vmul.f32 %v161, %v266
    %v297 = vmul.f32 %v166, %v262
    %v298 = vmul.f32 %v166, %v266
    %v299 = vmul.f32 %v171, %v262
    %v300 = vmul.f32 %v171, %v266
    %v301 = vmul.f32 %v176, %v262
    %v302 = vmul.f32 %v176, %v266
    %v303 = vmul.f32 %v181, %v262
    %v304 = vmul.f32 %v181, %v266
    %v305 = vmul.f32 %v186, %v262
    %v306 = vmul.f32 %v186, %v266
    %v307 = vmul.f32 %v191, %v262
    %v308 = vmul.f32 %v191, %v266
    %v309 = vmul.f32 %v196, %v262
    %v310 = vmul.f32 %v196, %v266
    %v311 = vmul.f32 %v201, %v262
    %v312 = vmul.f32 %v201, %v266
    %v313 = vmul.f32 %v206, %v262
    %v314 = vmul.f32 %v206, %v266
    %v315 = vmul.f32 %v211, %v262
    %v316 = vmul.f32 %v211, %v266
    %v317 = vmul.f32 %v216, %v262
    %v318 = vmul.f32 %v216, %v266
    %v319 = vmul.f32 %v221, %v262
    %v320 = vmul.f32 %v221, %v266
    %v321 = vmul.f32 %v226, %v262
    %v322 = vmul.f32 %v226, %v266
    %v323 = vmul.f32 %v231, %v262
    %v324 = vmul.f32 %v231, %v266
    %v325 = vmul.f32 %v236, %v262
    %v326 = vmul.f32 %v236, %v266
    %v327 = vmul.f32 %v241, %v262
    %v328 = vmul.f32 %v241, %v266
    %v329 = vmul.f32 %v246, %v262
    %v330 = vmul.f32 %v246, %v266
    %331 = vset.pattern.permute.xlu0 1
    %332 = vperm.xlu0 %331, %v56
    %v333 = vpop.permute.xlu0 %332
    %335 = vset.pattern.permute.xlu0 1
    %336 = vperm.xlu0 %335, %v57
    %v337 = vpop.permute.xlu0 %336
    %339 = vset.pattern.permute.xlu0 1
    %340 = vperm.xlu0 %339, %v58
    %v341 = vpop.permute.xlu0 %340
    %343 = vset.pattern.permute.xlu0 1
    %344 = vperm.xlu0 %343, %v59
    %v345 = vpop.permute.xlu0 %344
    %347 = vset.pattern.permute.xlu0 1
    %348 = vperm.xlu0 %347, %v60
    %v349 = vpop.permute.xlu0 %348
    %351 = vset.pattern.permute.xlu0 1
    %352 = vperm.xlu0 %351, %v61
    %v353 = vpop.permute.xlu0 %352
    %355 = vset.pattern.permute.xlu0 1
    %356 = vperm.xlu0 %355, %v62
    %v357 = vpop.permute.xlu0 %356
    %359 = vset.pattern.permute.xlu0 1
    %360 = vperm.xlu0 %359, %v63
    %v361 = vpop.permute.xlu0 %360
    %363 = vset.pattern.permute.xlu0 1
    %364 = vperm.xlu0 %363, %v64
    %v365 = vpop.permute.xlu0 %364
    %367 = vset.pattern.permute.xlu0 1
    %368 = vperm.xlu0 %367, %v65
    %v369 = vpop.permute.xlu0 %368
    %371 = vset.pattern.permute.xlu0 1
    %372 = vperm.xlu0 %371, %v66
    %v373 = vpop.permute.xlu0 %372
    %375 = vset.pattern.permute.xlu0 1
    %376 = vperm.xlu0 %375, %v67
    %v377 = vpop.permute.xlu0 %376
    %379 = vset.pattern.permute.xlu0 1
    %380 = vperm.xlu0 %379, %v68
    %v381 = vpop.permute.xlu0 %380
    %383 = vset.pattern.permute.xlu0 1
    %384 = vperm.xlu0 %383, %v69
    %v385 = vpop.permute.xlu0 %384
    %387 = vset.pattern.permute.xlu0 1
    %388 = vperm.xlu0 %387, %v70
    %v389 = vpop.permute.xlu0 %388
    %391 = vset.pattern.permute.xlu0 1
    %392 = vperm.xlu0 %391, %v71
    %v393 = vpop.permute.xlu0 %392
    %395 = vset.pattern.permute.xlu0 1
    %396 = vperm.xlu0 %395, %v72
    %v397 = vpop.permute.xlu0 %396
    %399 = vset.pattern.permute.xlu0 1
    %400 = vperm.xlu0 %399, %v73
    %v401 = vpop.permute.xlu0 %400
    %403 = vset.pattern.permute.xlu0 1
    %404 = vperm.xlu0 %403, %v74
    %v405 = vpop.permute.xlu0 %404
    %407 = vset.pattern.permute.xlu0 1
    %408 = vperm.xlu0 %407, %v75
    %v409 = vpop.permute.xlu0 %408
    %411 = vset.pattern.permute.xlu0 1
    %412 = vperm.xlu0 %411, %v76
    %v413 = vpop.permute.xlu0 %412
    %415 = vset.pattern.permute.xlu0 1
    %416 = vperm.xlu0 %415, %v77
    %v417 = vpop.permute.xlu0 %416
    %419 = vset.pattern.permute.xlu0 1
    %420 = vperm.xlu0 %419, %v78
    %v421 = vpop.permute.xlu0 %420
    %423 = vset.pattern.permute.xlu0 1
    %424 = vperm.xlu0 %423, %v79
    %v425 = vpop.permute.xlu0 %424
    %427 = vset.pattern.permute.xlu0 1
    %428 = vperm.xlu0 %427, %v80
    %v429 = vpop.permute.xlu0 %428
    %431 = vset.pattern.permute.xlu0 1
    %432 = vperm.xlu0 %431, %v81
    %v433 = vpop.permute.xlu0 %432
    %435 = vset.pattern.permute.xlu0 1
    %436 = vperm.xlu0 %435, %v82
    %v437 = vpop.permute.xlu0 %436
    %439 = vset.pattern.permute.xlu0 1
    %440 = vperm.xlu0 %439, %v83
    %v441 = vpop.permute.xlu0 %440
    %443 = vset.pattern.permute.xlu0 1
    %444 = vperm.xlu0 %443, %v84
    %v445 = vpop.permute.xlu0 %444
    %447 = vset.pattern.permute.xlu0 1
    %448 = vperm.xlu0 %447, %v85
    %v449 = vpop.permute.xlu0 %448
    %451 = vset.pattern.permute.xlu0 1
    %452 = vperm.xlu0 %451, %v86
    %v453 = vpop.permute.xlu0 %452
    %455 = vset.pattern.permute.xlu0 1
    %456 = vperm.xlu0 %455, %v87
    %v457 = vpop.permute.xlu0 %456
    %v459 = vlaneseq
    %v460 = vshrl.u32 %v459, 7
    %v461 = vsub.s32 1, %v460
    %v462 = vrot.slane %v55, %v461
    %v463 = vlaneseq
    %v464 = vshrl.u32 %v463, 7
    %v465 = vsub.s32 3, %v464
    %v466 = vrot.slane %v55, %v465
    %v469 = vlaneseq
    %v470 = vshrl.u32 %v469, 7
    %v471 = vsub.s32 1, %v470
    %v472 = vrot.slane %v462, %v471
    %v473 = vlaneseq
    %v474 = vshrl.u32 %v473, 7
    %v475 = vsub.s32 1, %v474
    %v476 = vrot.slane %v466, %v475
    %v477 = vmul.f32 %v333, %v472
    %v478 = vmul.f32 %v333, %v476
    %v479 = vmul.f32 %v337, %v472
    %v480 = vmul.f32 %v337, %v476
    %v481 = vmul.f32 %v341, %v472
    %v482 = vmul.f32 %v341, %v476
    %v483 = vmul.f32 %v345, %v472
    %v484 = vmul.f32 %v345, %v476
    %v485 = vmul.f32 %v349, %v472
    %v486 = vmul.f32 %v349, %v476
    %v487 = vmul.f32 %v353, %v472
    %v488 = vmul.f32 %v353, %v476
    %v489 = vmul.f32 %v357, %v472
    %v490 = vmul.f32 %v357, %v476
    %v491 = vmul.f32 %v361, %v472
    %v492 = vmul.f32 %v361, %v476
    %v493 = vmul.f32 %v365, %v472
    %v494 = vmul.f32 %v365, %v476
    %v495 = vmul.f32 %v369, %v472
    %v496 = vmul.f32 %v369, %v476
    %v497 = vmul.f32 %v373, %v472
    %v498 = vmul.f32 %v373, %v476
    %v499 = vmul.f32 %v377, %v472
    %v500 = vmul.f32 %v377, %v476
    %v501 = vmul.f32 %v381, %v472
    %v502 = vmul.f32 %v381, %v476
    %v503 = vmul.f32 %v385, %v472
    %v504 = vmul.f32 %v385, %v476
    %v505 = vmul.f32 %v389, %v472
    %v506 = vmul.f32 %v389, %v476
    %v507 = vmul.f32 %v393, %v472
    %v508 = vmul.f32 %v393, %v476
    %v509 = vmul.f32 %v397, %v472
    %v510 = vmul.f32 %v397, %v476
    %v511 = vmul.f32 %v401, %v472
    %v512 = vmul.f32 %v401, %v476
    %v513 = vmul.f32 %v405, %v472
    %v514 = vmul.f32 %v405, %v476
    %v515 = vmul.f32 %v409, %v472
    %v516 = vmul.f32 %v409, %v476
    %v517 = vmul.f32 %v413, %v472
    %v518 = vmul.f32 %v413, %v476
    %v519 = vmul.f32 %v417, %v472
    %v520 = vmul.f32 %v417, %v476
    %v521 = vmul.f32 %v421, %v472
    %v522 = vmul.f32 %v421, %v476
    %v523 = vmul.f32 %v425, %v472
    %v524 = vmul.f32 %v425, %v476
    %v525 = vmul.f32 %v429, %v472
    %v526 = vmul.f32 %v429, %v476
    %v527 = vmul.f32 %v433, %v472
    %v528 = vmul.f32 %v433, %v476
    %v529 = vmul.f32 %v437, %v472
    %v530 = vmul.f32 %v437, %v476
    %v531 = vmul.f32 %v441, %v472
    %v532 = vmul.f32 %v441, %v476
    %v533 = vmul.f32 %v445, %v472
    %v534 = vmul.f32 %v445, %v476
    %v535 = vmul.f32 %v449, %v472
    %v536 = vmul.f32 %v449, %v476
    %v537 = vmul.f32 %v453, %v472
    %v538 = vmul.f32 %v453, %v476
    %v539 = vmul.f32 %v457, %v472
    %v540 = vmul.f32 %v457, %v476
    %v541 = vadd.f32 %v267, %v477
    %v542 = vadd.f32 %v268, %v478
    %v543 = vadd.f32 %v269, %v479
    %v544 = vadd.f32 %v270, %v480
    %v545 = vadd.f32 %v271, %v481
    %v546 = vadd.f32 %v272, %v482
    %v547 = vadd.f32 %v273, %v483
    %v548 = vadd.f32 %v274, %v484
    %v549 = vadd.f32 %v275, %v485
    %v550 = vadd.f32 %v276, %v486
    %v551 = vadd.f32 %v277, %v487
    %v552 = vadd.f32 %v278, %v488
    %v553 = vadd.f32 %v279, %v489
    %v554 = vadd.f32 %v280, %v490
    %v555 = vadd.f32 %v281, %v491
    %v556 = vadd.f32 %v282, %v492
    %v557 = vadd.f32 %v283, %v493
    %v558 = vadd.f32 %v284, %v494
    %v559 = vadd.f32 %v285, %v495
    %v560 = vadd.f32 %v286, %v496
    %v561 = vadd.f32 %v287, %v497
    %v562 = vadd.f32 %v288, %v498
    %v563 = vadd.f32 %v289, %v499
    %v564 = vadd.f32 %v290, %v500
    %v565 = vadd.f32 %v291, %v501
    %v566 = vadd.f32 %v292, %v502
    %v567 = vadd.f32 %v293, %v503
    %v568 = vadd.f32 %v294, %v504
    %v569 = vadd.f32 %v295, %v505
    %v570 = vadd.f32 %v296, %v506
    %v571 = vadd.f32 %v297, %v507
    %v572 = vadd.f32 %v298, %v508
    %v573 = vadd.f32 %v299, %v509
    %v574 = vadd.f32 %v300, %v510
    %v575 = vadd.f32 %v301, %v511
    %v576 = vadd.f32 %v302, %v512
    %v577 = vadd.f32 %v303, %v513
    %v578 = vadd.f32 %v304, %v514
    %v579 = vadd.f32 %v305, %v515
    %v580 = vadd.f32 %v306, %v516
    %v581 = vadd.f32 %v307, %v517
    %v582 = vadd.f32 %v308, %v518
    %v583 = vadd.f32 %v309, %v519
    %v584 = vadd.f32 %v310, %v520
    %v585 = vadd.f32 %v311, %v521
    %v586 = vadd.f32 %v312, %v522
    %v587 = vadd.f32 %v313, %v523
    %v588 = vadd.f32 %v314, %v524
    %v589 = vadd.f32 %v315, %v525
    %v590 = vadd.f32 %v316, %v526
    %v591 = vadd.f32 %v317, %v527
    %v592 = vadd.f32 %v318, %v528
    %v593 = vadd.f32 %v319, %v529
    %v594 = vadd.f32 %v320, %v530
    %v595 = vadd.f32 %v321, %v531
    %v596 = vadd.f32 %v322, %v532
    %v597 = vadd.f32 %v323, %v533
    %v598 = vadd.f32 %v324, %v534
    %v599 = vadd.f32 %v325, %v535
    %v600 = vadd.f32 %v326, %v536
    %v601 = vadd.f32 %v327, %v537
    %v602 = vadd.f32 %v328, %v538
    %v603 = vadd.f32 %v329, %v539
    %v604 = vadd.f32 %v330, %v540
    %v605 = vld [vmem:[%s2] sm:$0xff]
    %v606 = vld [vmem:[%s2 + $0x8] sm:$0xff]
    %v607 = vld [vmem:[%s2 + $0x10] sm:$0xff]
    %v608 = vld [vmem:[%s2 + $0x18] sm:$0xff]
    %v609 = vld [vmem:[%s2 + $0x20] sm:$0xff]
    %v610 = vld [vmem:[%s2 + $0x28] sm:$0xff]
    %v611 = vld [vmem:[%s2 + $0x30] sm:$0xff]
    %v612 = vld [vmem:[%s2 + $0x38] sm:$0xff]
    %v613 = vld [vmem:[%s2 + $0x40] sm:$0xff]
    %v614 = vld [vmem:[%s2 + $0x48] sm:$0xff]
    %v615 = vld [vmem:[%s2 + $0x50] sm:$0xff]
    %v616 = vld [vmem:[%s2 + $0x58] sm:$0xff]
    %v617 = vld [vmem:[%s2 + $0x60] sm:$0xff]
    %v618 = vld [vmem:[%s2 + $0x68] sm:$0xff]
    %v619 = vld [vmem:[%s2 + $0x70] sm:$0xff]
    %v620 = vld [vmem:[%s2 + $0x78] sm:$0xff]
    %v621 = vld [vmem:[%s2 + $0x80] sm:$0xff]
    %v622 = vld [vmem:[%s2 + $0x88] sm:$0xff]
    %v623 = vld [vmem:[%s2 + $0x90] sm:$0xff]
    %v624 = vld [vmem:[%s2 + $0x98] sm:$0xff]
    %v625 = vld [vmem:[%s2 + $0xa0] sm:$0xff]
    %v626 = vld [vmem:[%s2 + $0xa8] sm:$0xff]
    %v627 = vld [vmem:[%s2 + $0xb0] sm:$0xff]
    %v628 = vld [vmem:[%s2 + $0xb8] sm:$0xff]
    %v629 = vld [vmem:[%s2 + $0xc0] sm:$0xff]
    %v630 = vld [vmem:[%s2 + $0xc8] sm:$0xff]
    %v631 = vld [vmem:[%s2 + $0xd0] sm:$0xff]
    %v632 = vld [vmem:[%s2 + $0xd8] sm:$0xff]
    %v633 = vld [vmem:[%s2 + $0xe0] sm:$0xff]
    %v634 = vld [vmem:[%s2 + $0xe8] sm:$0xff]
    %v635 = vld [vmem:[%s2 + $0xf0] sm:$0xff]
    %v636 = vld [vmem:[%s2 + $0xf8] sm:$0xff]
    %638 = vset.pattern.permute.xlu0 0
    %639 = vperm.xlu0 %638, %v605
    %v640 = vpop.permute.xlu0 %639
    %643 = vset.pattern.permute.xlu0 0
    %644 = vperm.xlu0 %643, %v606
    %v645 = vpop.permute.xlu0 %644
    %648 = vset.pattern.permute.xlu0 0
    %649 = vperm.xlu0 %648, %v607
    %v650 = vpop.permute.xlu0 %649
    %653 = vset.pattern.permute.xlu0 0
    %654 = vperm.xlu0 %653, %v608
    %v655 = vpop.permute.xlu0 %654
    %658 = vset.pattern.permute.xlu0 0
    %659 = vperm.xlu0 %658, %v609
    %v660 = vpop.permute.xlu0 %659
    %663 = vset.pattern.permute.xlu0 0
    %664 = vperm.xlu0 %663, %v610
    %v665 = vpop.permute.xlu0 %664
    %668 = vset.pattern.permute.xlu0 0
    %669 = vperm.xlu0 %668, %v611
    %v670 = vpop.permute.xlu0 %669
    %673 = vset.pattern.permute.xlu0 0
    %674 = vperm.xlu0 %673, %v612
    %v675 = vpop.permute.xlu0 %674
    %678 = vset.pattern.permute.xlu0 0
    %679 = vperm.xlu0 %678, %v613
    %v680 = vpop.permute.xlu0 %679
    %683 = vset.pattern.permute.xlu0 0
    %684 = vperm.xlu0 %683, %v614
    %v685 = vpop.permute.xlu0 %684
    %688 = vset.pattern.permute.xlu0 0
    %689 = vperm.xlu0 %688, %v615
    %v690 = vpop.permute.xlu0 %689
    %693 = vset.pattern.permute.xlu0 0
    %694 = vperm.xlu0 %693, %v616
    %v695 = vpop.permute.xlu0 %694
    %698 = vset.pattern.permute.xlu0 0
    %699 = vperm.xlu0 %698, %v617
    %v700 = vpop.permute.xlu0 %699
    %703 = vset.pattern.permute.xlu0 0
    %704 = vperm.xlu0 %703, %v618
    %v705 = vpop.permute.xlu0 %704
    %708 = vset.pattern.permute.xlu0 0
    %709 = vperm.xlu0 %708, %v619
    %v710 = vpop.permute.xlu0 %709
    %713 = vset.pattern.permute.xlu0 0
    %714 = vperm.xlu0 %713, %v620
    %v715 = vpop.permute.xlu0 %714
    %718 = vset.pattern.permute.xlu0 0
    %719 = vperm.xlu0 %718, %v621
    %v720 = vpop.permute.xlu0 %719
    %723 = vset.pattern.permute.xlu0 0
    %724 = vperm.xlu0 %723, %v622
    %v725 = vpop.permute.xlu0 %724
    %728 = vset.pattern.permute.xlu0 0
    %729 = vperm.xlu0 %728, %v623
    %v730 = vpop.permute.xlu0 %729
    %733 = vset.pattern.permute.xlu0 0
    %734 = vperm.xlu0 %733, %v624
    %v735 = vpop.permute.xlu0 %734
    %738 = vset.pattern.permute.xlu0 0
    %739 = vperm.xlu0 %738, %v625
    %v740 = vpop.permute.xlu0 %739
    %743 = vset.pattern.permute.xlu0 0
    %744 = vperm.xlu0 %743, %v626
    %v745 = vpop.permute.xlu0 %744
    %748 = vset.pattern.permute.xlu0 0
    %749 = vperm.xlu0 %748, %v627
    %v750 = vpop.permute.xlu0 %749
    %753 = vset.pattern.permute.xlu0 0
    %754 = vperm.xlu0 %753, %v628
    %v755 = vpop.permute.xlu0 %754
    %758 = vset.pattern.permute.xlu0 0
    %759 = vperm.xlu0 %758, %v629
    %v760 = vpop.permute.xlu0 %759
    %763 = vset.pattern.permute.xlu0 0
    %764 = vperm.xlu0 %763, %v630
    %v765 = vpop.permute.xlu0 %764
    %768 = vset.pattern.permute.xlu0 0
    %769 = vperm.xlu0 %768, %v631
    %v770 = vpop.permute.xlu0 %769
    %773 = vset.pattern.permute.xlu0 0
    %774 = vperm.xlu0 %773, %v632
    %v775 = vpop.permute.xlu0 %774
    %778 = vset.pattern.permute.xlu0 0
    %779 = vperm.xlu0 %778, %v633
    %v780 = vpop.permute.xlu0 %779
    %783 = vset.pattern.permute.xlu0 0
    %784 = vperm.xlu0 %783, %v634
    %v785 = vpop.permute.xlu0 %784
    %788 = vset.pattern.permute.xlu0 0
    %789 = vperm.xlu0 %788, %v635
    %v790 = vpop.permute.xlu0 %789
    %793 = vset.pattern.permute.xlu0 0
    %794 = vperm.xlu0 %793, %v636
    %v795 = vpop.permute.xlu0 %794
    %v797 = vadd.f32 %v541, %v640
    %v798 = vadd.f32 %v542, %v640
    %v799 = vadd.f32 %v543, %v645
    %v800 = vadd.f32 %v544, %v645
    %v801 = vadd.f32 %v545, %v650
    %v802 = vadd.f32 %v546, %v650
    %v803 = vadd.f32 %v547, %v655
    %v804 = vadd.f32 %v548, %v655
    %v805 = vadd.f32 %v549, %v660
    %v806 = vadd.f32 %v550, %v660
    %v807 = vadd.f32 %v551, %v665
    %v808 = vadd.f32 %v552, %v665
    %v809 = vadd.f32 %v553, %v670
    %v810 = vadd.f32 %v554, %v670
    %v811 = vadd.f32 %v555, %v675
    %v812 = vadd.f32 %v556, %v675
    %v813 = vadd.f32 %v557, %v680
    %v814 = vadd.f32 %v558, %v680
    %v815 = vadd.f32 %v559, %v685
    %v816 = vadd.f32 %v560, %v685
    %v817 = vadd.f32 %v561, %v690
    %v818 = vadd.f32 %v562, %v690
    %v819 = vadd.f32 %v563, %v695
    %v820 = vadd.f32 %v564, %v695
    %v821 = vadd.f32 %v565, %v700
    %v822 = vadd.f32 %v566, %v700
    %v823 = vadd.f32 %v567, %v705
    %v824 = vadd.f32 %v568, %v705
    %v825 = vadd.f32 %v569, %v710
    %v826 = vadd.f32 %v570, %v710
    %v827 = vadd.f32 %v571, %v715
    %v828 = vadd.f32 %v572, %v715
    %v829 = vadd.f32 %v573, %v720
    %v830 = vadd.f32 %v574, %v720
    %v831 = vadd.f32 %v575, %v725
    %v832 = vadd.f32 %v576, %v725
    %v833 = vadd.f32 %v577, %v730
    %v834 = vadd.f32 %v578, %v730
    %v835 = vadd.f32 %v579, %v735
    %v836 = vadd.f32 %v580, %v735
    %v837 = vadd.f32 %v581, %v740
    %v838 = vadd.f32 %v582, %v740
    %v839 = vadd.f32 %v583, %v745
    %v840 = vadd.f32 %v584, %v745
    %v841 = vadd.f32 %v585, %v750
    %v842 = vadd.f32 %v586, %v750
    %v843 = vadd.f32 %v587, %v755
    %v844 = vadd.f32 %v588, %v755
    %v845 = vadd.f32 %v589, %v760
    %v846 = vadd.f32 %v590, %v760
    %v847 = vadd.f32 %v591, %v765
    %v848 = vadd.f32 %v592, %v765
    %v849 = vadd.f32 %v593, %v770
    %v850 = vadd.f32 %v594, %v770
    %v851 = vadd.f32 %v595, %v775
    %v852 = vadd.f32 %v596, %v775
    %v853 = vadd.f32 %v597, %v780
    %v854 = vadd.f32 %v598, %v780
    %v855 = vadd.f32 %v599, %v785
    %v856 = vadd.f32 %v600, %v785
    %v857 = vadd.f32 %v601, %v790
    %v858 = vadd.f32 %v602, %v790
    %v859 = vadd.f32 %v603, %v795
    %v860 = vadd.f32 %v604, %v795
    %v861 = vmax.f32 %v797, 0.0
    %v862 = vmax.f32 %v798, 0.0
    %v863 = vmax.f32 %v799, 0.0
    %v864 = vmax.f32 %v800, 0.0
    %v865 = vmax.f32 %v801, 0.0
    %v866 = vmax.f32 %v802, 0.0
    %v867 = vmax.f32 %v803, 0.0
    %v868 = vmax.f32 %v804, 0.0
    %v869 = vmax.f32 %v805, 0.0
    %v870 = vmax.f32 %v806, 0.0
    %v871 = vmax.f32 %v807, 0.0
    %v872 = vmax.f32 %v808, 0.0
    %v873 = vmax.f32 %v809, 0.0
    %v874 = vmax.f32 %v810, 0.0
    %v875 = vmax.f32 %v811, 0.0
    %v876 = vmax.f32 %v812, 0.0
    %v877 = vmax.f32 %v813, 0.0
    %v878 = vmax.f32 %v814, 0.0
    %v879 = vmax.f32 %v815, 0.0
    %v880 = vmax.f32 %v816, 0.0
    %v881 = vmax.f32 %v817, 0.0
    %v882 = vmax.f32 %v818, 0.0
    %v883 = vmax.f32 %v819, 0.0
    %v884 = vmax.f32 %v820, 0.0
    %v885 = vmax.f32 %v821, 0.0
    %v886 = vmax.f32 %v822, 0.0
    %v887 = vmax.f32 %v823, 0.0
    %v888 = vmax.f32 %v824, 0.0
    %v889 = vmax.f32 %v825, 0.0
    %v890 = vmax.f32 %v826, 0.0
    %v891 = vmax.f32 %v827, 0.0
    %v892 = vmax.f32 %v828, 0.0
    %v893 = vmax.f32 %v829, 0.0
    %v894 = vmax.f32 %v830, 0.0
    %v895 = vmax.f32 %v831, 0.0
    %v896 = vmax.f32 %v832, 0.0
    %v897 = vmax.f32 %v833, 0.0
    %v898 = vmax.f32 %v834, 0.0
    %v899 = vmax.f32 %v835, 0.0
    %v900 = vmax.f32 %v836, 0.0
    %v901 = vmax.f32 %v837, 0.0
    %v902 = vmax.f32 %v838, 0.0
    %v903 = vmax.f32 %v839, 0.0
    %v904 = vmax.f32 %v840, 0.0
    %v905 = vmax.f32 %v841, 0.0
    %v906 = vmax.f32 %v842, 0.0
    %v907 = vmax.f32 %v843, 0.0
    %v908 = vmax.f32 %v844, 0.0
    %v909 = vmax.f32 %v845, 0.0
    %v910 = vmax.f32 %v846, 0.0
    %v911 = vmax.f32 %v847, 0.0
    %v912 = vmax.f32 %v848, 0.0
    %v913 = vmax.f32 %v849, 0.0
    %v914 = vmax.f32 %v850, 0.0
    %v915 = vmax.f32 %v851, 0.0
    %v916 = vmax.f32 %v852, 0.0
    %v917 = vmax.f32 %v853, 0.0
    %v918 = vmax.f32 %v854, 0.0
    %v919 = vmax.f32 %v855, 0.0
    %v920 = vmax.f32 %v856, 0.0
    %v921 = vmax.f32 %v857, 0.0
    %v922 = vmax.f32 %v858, 0.0
    %v923 = vmax.f32 %v859, 0.0
    %v924 = vmax.f32 %v860, 0.0
    %v925 = vpack.c.bf16 %v863, %v861
    %v926 = vpack.c.bf16 %v864, %v862
    %v927 = vpack.c.bf16 %v867, %v865
    %v928 = vpack.c.bf16 %v868, %v866
    %v929 = vpack.c.bf16 %v871, %v869
    %v930 = vpack.c.bf16 %v872, %v870
    %v931 = vpack.c.bf16 %v875, %v873
    %v932 = vpack.c.bf16 %v876, %v874
    %v933 = vpack.c.bf16 %v879, %v877
    %v934 = vpack.c.bf16 %v880, %v878
    %v935 = vpack.c.bf16 %v883, %v881
    %v936 = vpack.c.bf16 %v884, %v882
    %v937 = vpack.c.bf16 %v887, %v885
    %v938 = vpack.c.bf16 %v888, %v886
    %v939 = vpack.c.bf16 %v891, %v889
    %v940 = vpack.c.bf16 %v892, %v890
    %v941 = vpack.c.bf16 %v895, %v893
    %v942 = vpack.c.bf16 %v896, %v894
    %v943 = vpack.c.bf16 %v899, %v897
    %v944 = vpack.c.bf16 %v900, %v898
    %v945 = vpack.c.bf16 %v903, %v901
    %v946 = vpack.c.bf16 %v904, %v902
    %v947 = vpack.c.bf16 %v907, %v905
    %v948 = vpack.c.bf16 %v908, %v906
    %v949 = vpack.c.bf16 %v911, %v909
    %v950 = vpack.c.bf16 %v912, %v910
    %v951 = vpack.c.bf16 %v915, %v913
    %v952 = vpack.c.bf16 %v916, %v914
    %v953 = vpack.c.bf16 %v919, %v917
    %v954 = vpack.c.bf16 %v920, %v918
    %v955 = vpack.c.bf16 %v923, %v921
    %v956 = vpack.c.bf16 %v924, %v922
    %v957 = vld [vmem:[%s3] sm:$0xff]
    %v958 = vld [vmem:[%s3 + $0x8] sm:$0xff]
    %v959 = vld [vmem:[%s3 + $0x10] sm:$0xff]
    %v960 = vld [vmem:[%s3 + $0x18] sm:$0xff]
    %v961 = vld [vmem:[%s3 + $0x20] sm:$0xff]
    %v962 = vld [vmem:[%s3 + $0x28] sm:$0xff]
    %v963 = vld [vmem:[%s3 + $0x30] sm:$0xff]
    %v964 = vld [vmem:[%s3 + $0x38] sm:$0xff]
    %v965 = vld [vmem:[%s3 + $0x40] sm:$0xff]
    %v966 = vld [vmem:[%s3 + $0x48] sm:$0xff]
    %v967 = vld [vmem:[%s3 + $0x50] sm:$0xff]
    %v968 = vld [vmem:[%s3 + $0x58] sm:$0xff]
    %v969 = vld [vmem:[%s3 + $0x60] sm:$0xff]
    %v970 = vld [vmem:[%s3 + $0x68] sm:$0xff]
    %v971 = vld [vmem:[%s3 + $0x70] sm:$0xff]
    %v972 = vld [vmem:[%s3 + $0x78] sm:$0xff]
    %v973 = vld [vmem:[%s3 + $0x80] sm:$0xff]
    %v974 = vld [vmem:[%s3 + $0x88] sm:$0xff]
    %v975 = vld [vmem:[%s3 + $0x90] sm:$0xff]
    %v976 = vld [vmem:[%s3 + $0x98] sm:$0xff]
    %v977 = vld [vmem:[%s3 + $0xa0] sm:$0xff]
    %v978 = vld [vmem:[%s3 + $0xa8] sm:$0xff]
    %v979 = vld [vmem:[%s3 + $0xb0] sm:$0xff]
    %v980 = vld [vmem:[%s3 + $0xb8] sm:$0xff]
    %v981 = vld [vmem:[%s3 + $0xc0] sm:$0xff]
    %v982 = vld [vmem:[%s3 + $0xc8] sm:$0xff]
    %v983 = vld [vmem:[%s3 + $0xd0] sm:$0xff]
    %v984 = vld [vmem:[%s3 + $0xd8] sm:$0xff]
    %v985 = vld [vmem:[%s3 + $0xe0] sm:$0xff]
    %v986 = vld [vmem:[%s3 + $0xe8] sm:$0xff]
    %v987 = vld [vmem:[%s3 + $0xf0] sm:$0xff]
    %v988 = vld [vmem:[%s3 + $0xf8] sm:$0xff]
    %v989 = vld [vmem:[%s3 + $0x100] sm:$0xff]
    %v990 = vld [vmem:[%s3 + $0x108] sm:$0xff]
    %v991 = vld [vmem:[%s3 + $0x110] sm:$0xff]
    %v992 = vld [vmem:[%s3 + $0x118] sm:$0xff]
    %v993 = vld [vmem:[%s3 + $0x120] sm:$0xff]
    %v994 = vld [vmem:[%s3 + $0x128] sm:$0xff]
    %v995 = vld [vmem:[%s3 + $0x130] sm:$0xff]
    %v996 = vld [vmem:[%s3 + $0x138] sm:$0xff]
    %v997 = vld [vmem:[%s3 + $0x140] sm:$0xff]
    %v998 = vld [vmem:[%s3 + $0x148] sm:$0xff]
    %v999 = vld [vmem:[%s3 + $0x150] sm:$0xff]
    %v1000 = vld [vmem:[%s3 + $0x158] sm:$0xff]
    %v1001 = vld [vmem:[%s3 + $0x160] sm:$0xff]
    %v1002 = vld [vmem:[%s3 + $0x168] sm:$0xff]
    %v1003 = vld [vmem:[%s3 + $0x170] sm:$0xff]
    %v1004 = vld [vmem:[%s3 + $0x178] sm:$0xff]
    %v1005 = vld [vmem:[%s3 + $0x180] sm:$0xff]
    %v1006 = vld [vmem:[%s3 + $0x188] sm:$0xff]
    %v1007 = vld [vmem:[%s3 + $0x190] sm:$0xff]
    %v1008 = vld [vmem:[%s3 + $0x198] sm:$0xff]
    %v1009 = vld [vmem:[%s3 + $0x1a0] sm:$0xff]
    %v1010 = vld [vmem:[%s3 + $0x1a8] sm:$0xff]
    %v1011 = vld [vmem:[%s3 + $0x1b0] sm:$0xff]
    %v1012 = vld [vmem:[%s3 + $0x1b8] sm:$0xff]
    %v1013 = vld [vmem:[%s3 + $0x1c0] sm:$0xff]
    %v1014 = vld [vmem:[%s3 + $0x1c8] sm:$0xff]
    %v1015 = vld [vmem:[%s3 + $0x1d0] sm:$0xff]
    %v1016 = vld [vmem:[%s3 + $0x1d8] sm:$0xff]
    %v1017 = vld [vmem:[%s3 + $0x1e0] sm:$0xff]
    %v1018 = vld [vmem:[%s3 + $0x1e8] sm:$0xff]
    %v1019 = vld [vmem:[%s3 + $0x1f0] sm:$0xff]
    %v1020 = vld [vmem:[%s3 + $0x1f8] sm:$0xff]
    %v1021 = vld [vmem:[%s4] sm:$0xff]
    %v1022 = vld [vmem:[%s4 + $0x8] sm:$0xff]
    %v1023 = vld [vmem:[%s4 + $0x10] sm:$0xff]
    %v1024 = vld [vmem:[%s4 + $0x18] sm:$0xff]
    %v1025 = vld [vmem:[%s4 + $0x20] sm:$0xff]
    %v1026 = vld [vmem:[%s4 + $0x28] sm:$0xff]
    %v1027 = vld [vmem:[%s4 + $0x30] sm:$0xff]
    %v1028 = vld [vmem:[%s4 + $0x38] sm:$0xff]
    %v1029 = vld [vmem:[%s4 + $0x40] sm:$0xff]
    %v1030 = vld [vmem:[%s4 + $0x48] sm:$0xff]
    %v1031 = vld [vmem:[%s4 + $0x50] sm:$0xff]
    %v1032 = vld [vmem:[%s4 + $0x58] sm:$0xff]
    %v1033 = vld [vmem:[%s4 + $0x60] sm:$0xff]
    %v1034 = vld [vmem:[%s4 + $0x68] sm:$0xff]
    %v1035 = vld [vmem:[%s4 + $0x70] sm:$0xff]
    %v1036 = vld [vmem:[%s4 + $0x78] sm:$0xff]
    %v1037 = vld [vmem:[%s4 + $0x80] sm:$0xff]
    %v1038 = vld [vmem:[%s4 + $0x88] sm:$0xff]
    %v1039 = vld [vmem:[%s4 + $0x90] sm:$0xff]
    %v1040 = vld [vmem:[%s4 + $0x98] sm:$0xff]
    %v1041 = vld [vmem:[%s4 + $0xa0] sm:$0xff]
    %v1042 = vld [vmem:[%s4 + $0xa8] sm:$0xff]
    %v1043 = vld [vmem:[%s4 + $0xb0] sm:$0xff]
    %v1044 = vld [vmem:[%s4 + $0xb8] sm:$0xff]
    %v1045 = vld [vmem:[%s4 + $0xc0] sm:$0xff]
    %v1046 = vld [vmem:[%s4 + $0xc8] sm:$0xff]
    %v1047 = vld [vmem:[%s4 + $0xd0] sm:$0xff]
    %v1048 = vld [vmem:[%s4 + $0xd8] sm:$0xff]
    %v1049 = vld [vmem:[%s4 + $0xe0] sm:$0xff]
    %v1050 = vld [vmem:[%s4 + $0xe8] sm:$0xff]
    %v1051 = vld [vmem:[%s4 + $0xf0] sm:$0xff]
    %v1052 = vld [vmem:[%s4 + $0xf8] sm:$0xff]
    %v1053 = vld [vmem:[%s4 + $0x100] sm:$0xff]
    %v1054 = vld [vmem:[%s4 + $0x108] sm:$0xff]
    %v1055 = vld [vmem:[%s4 + $0x110] sm:$0xff]
    %v1056 = vld [vmem:[%s4 + $0x118] sm:$0xff]
    %v1057 = vld [vmem:[%s4 + $0x120] sm:$0xff]
    %v1058 = vld [vmem:[%s4 + $0x128] sm:$0xff]
    %v1059 = vld [vmem:[%s4 + $0x130] sm:$0xff]
    %v1060 = vld [vmem:[%s4 + $0x138] sm:$0xff]
    %v1061 = vld [vmem:[%s4 + $0x140] sm:$0xff]
    %v1062 = vld [vmem:[%s4 + $0x148] sm:$0xff]
    %v1063 = vld [vmem:[%s4 + $0x150] sm:$0xff]
    %v1064 = vld [vmem:[%s4 + $0x158] sm:$0xff]
    %v1065 = vld [vmem:[%s4 + $0x160] sm:$0xff]
    %v1066 = vld [vmem:[%s4 + $0x168] sm:$0xff]
    %v1067 = vld [vmem:[%s4 + $0x170] sm:$0xff]
    %v1068 = vld [vmem:[%s4 + $0x178] sm:$0xff]
    %v1069 = vld [vmem:[%s4 + $0x180] sm:$0xff]
    %v1070 = vld [vmem:[%s4 + $0x188] sm:$0xff]
    %v1071 = vld [vmem:[%s4 + $0x190] sm:$0xff]
    %v1072 = vld [vmem:[%s4 + $0x198] sm:$0xff]
    %v1073 = vld [vmem:[%s4 + $0x1a0] sm:$0xff]
    %v1074 = vld [vmem:[%s4 + $0x1a8] sm:$0xff]
    %v1075 = vld [vmem:[%s4 + $0x1b0] sm:$0xff]
    %v1076 = vld [vmem:[%s4 + $0x1b8] sm:$0xff]
    %v1077 = vld [vmem:[%s4 + $0x1c0] sm:$0xff]
    %v1078 = vld [vmem:[%s4 + $0x1c8] sm:$0xff]
    %v1079 = vld [vmem:[%s4 + $0x1d0] sm:$0xff]
    %v1080 = vld [vmem:[%s4 + $0x1d8] sm:$0xff]
    %v1081 = vld [vmem:[%s4 + $0x1e0] sm:$0xff]
    %v1082 = vld [vmem:[%s4 + $0x1e8] sm:$0xff]
    %v1083 = vld [vmem:[%s4 + $0x1f0] sm:$0xff]
    %v1084 = vld [vmem:[%s4 + $0x1f8] sm:$0xff]
    %1086 = vset.pattern.permute.xlu0 0
    %1087 = vperm.xlu0 %1086, %v1021
    %v1088 = vpop.permute.xlu0 %1087
    %1091 = vset.pattern.permute.xlu0 0
    %1092 = vperm.xlu0 %1091, %v1022
    %v1093 = vpop.permute.xlu0 %1092
    %1096 = vset.pattern.permute.xlu0 0
    %1097 = vperm.xlu0 %1096, %v1023
    %v1098 = vpop.permute.xlu0 %1097
    %1101 = vset.pattern.permute.xlu0 0
    %1102 = vperm.xlu0 %1101, %v1024
    %v1103 = vpop.permute.xlu0 %1102
    %1106 = vset.pattern.permute.xlu0 0
    %1107 = vperm.xlu0 %1106, %v1025
    %v1108 = vpop.permute.xlu0 %1107
    %1111 = vset.pattern.permute.xlu0 0
    %1112 = vperm.xlu0 %1111, %v1026
    %v1113 = vpop.permute.xlu0 %1112
    %1116 = vset.pattern.permute.xlu0 0
    %1117 = vperm.xlu0 %1116, %v1027
    %v1118 = vpop.permute.xlu0 %1117
    %1121 = vset.pattern.permute.xlu0 0
    %1122 = vperm.xlu0 %1121, %v1028
    %v1123 = vpop.permute.xlu0 %1122
    %1126 = vset.pattern.permute.xlu0 0
    %1127 = vperm.xlu0 %1126, %v1029
    %v1128 = vpop.permute.xlu0 %1127
    %1131 = vset.pattern.permute.xlu0 0
    %1132 = vperm.xlu0 %1131, %v1030
    %v1133 = vpop.permute.xlu0 %1132
    %1136 = vset.pattern.permute.xlu0 0
    %1137 = vperm.xlu0 %1136, %v1031
    %v1138 = vpop.permute.xlu0 %1137
    %1141 = vset.pattern.permute.xlu0 0
    %1142 = vperm.xlu0 %1141, %v1032
    %v1143 = vpop.permute.xlu0 %1142
    %1146 = vset.pattern.permute.xlu0 0
    %1147 = vperm.xlu0 %1146, %v1033
    %v1148 = vpop.permute.xlu0 %1147
    %1151 = vset.pattern.permute.xlu0 0
    %1152 = vperm.xlu0 %1151, %v1034
    %v1153 = vpop.permute.xlu0 %1152
    %1156 = vset.pattern.permute.xlu0 0
    %1157 = vperm.xlu0 %1156, %v1035
    %v1158 = vpop.permute.xlu0 %1157
    %1161 = vset.pattern.permute.xlu0 0
    %1162 = vperm.xlu0 %1161, %v1036
    %v1163 = vpop.permute.xlu0 %1162
    %1166 = vset.pattern.permute.xlu0 0
    %1167 = vperm.xlu0 %1166, %v1037
    %v1168 = vpop.permute.xlu0 %1167
    %1171 = vset.pattern.permute.xlu0 0
    %1172 = vperm.xlu0 %1171, %v1038
    %v1173 = vpop.permute.xlu0 %1172
    %1176 = vset.pattern.permute.xlu0 0
    %1177 = vperm.xlu0 %1176, %v1039
    %v1178 = vpop.permute.xlu0 %1177
    %1181 = vset.pattern.permute.xlu0 0
    %1182 = vperm.xlu0 %1181, %v1040
    %v1183 = vpop.permute.xlu0 %1182
    %1186 = vset.pattern.permute.xlu0 0
    %1187 = vperm.xlu0 %1186, %v1041
    %v1188 = vpop.permute.xlu0 %1187
    %1191 = vset.pattern.permute.xlu0 0
    %1192 = vperm.xlu0 %1191, %v1042
    %v1193 = vpop.permute.xlu0 %1192
    %1196 = vset.pattern.permute.xlu0 0
    %1197 = vperm.xlu0 %1196, %v1043
    %v1198 = vpop.permute.xlu0 %1197
    %1201 = vset.pattern.permute.xlu0 0
    %1202 = vperm.xlu0 %1201, %v1044
    %v1203 = vpop.permute.xlu0 %1202
    %1206 = vset.pattern.permute.xlu0 0
    %1207 = vperm.xlu0 %1206, %v1045
    %v1208 = vpop.permute.xlu0 %1207
    %1211 = vset.pattern.permute.xlu0 0
    %1212 = vperm.xlu0 %1211, %v1046
    %v1213 = vpop.permute.xlu0 %1212
    %1216 = vset.pattern.permute.xlu0 0
    %1217 = vperm.xlu0 %1216, %v1047
    %v1218 = vpop.permute.xlu0 %1217
    %1221 = vset.pattern.permute.xlu0 0
    %1222 = vperm.xlu0 %1221, %v1048
    %v1223 = vpop.permute.xlu0 %1222
    %1226 = vset.pattern.permute.xlu0 0
    %1227 = vperm.xlu0 %1226, %v1049
    %v1228 = vpop.permute.xlu0 %1227
    %1231 = vset.pattern.permute.xlu0 0
    %1232 = vperm.xlu0 %1231, %v1050
    %v1233 = vpop.permute.xlu0 %1232
    %1236 = vset.pattern.permute.xlu0 0
    %1237 = vperm.xlu0 %1236, %v1051
    %v1238 = vpop.permute.xlu0 %1237
    %1241 = vset.pattern.permute.xlu0 0
    %1242 = vperm.xlu0 %1241, %v1052
    %v1243 = vpop.permute.xlu0 %1242
    %1246 = vset.pattern.permute.xlu0 0
    %1247 = vperm.xlu0 %1246, %v1053
    %v1248 = vpop.permute.xlu0 %1247
    %1251 = vset.pattern.permute.xlu0 0
    %1252 = vperm.xlu0 %1251, %v1054
    %v1253 = vpop.permute.xlu0 %1252
    %1256 = vset.pattern.permute.xlu0 0
    %1257 = vperm.xlu0 %1256, %v1055
    %v1258 = vpop.permute.xlu0 %1257
    %1261 = vset.pattern.permute.xlu0 0
    %1262 = vperm.xlu0 %1261, %v1056
    %v1263 = vpop.permute.xlu0 %1262
    %1266 = vset.pattern.permute.xlu0 0
    %1267 = vperm.xlu0 %1266, %v1057
    %v1268 = vpop.permute.xlu0 %1267
    %1271 = vset.pattern.permute.xlu0 0
    %1272 = vperm.xlu0 %1271, %v1058
    %v1273 = vpop.permute.xlu0 %1272
    %1276 = vset.pattern.permute.xlu0 0
    %1277 = vperm.xlu0 %1276, %v1059
    %v1278 = vpop.permute.xlu0 %1277
    %1281 = vset.pattern.permute.xlu0 0
    %1282 = vperm.xlu0 %1281, %v1060
    %v1283 = vpop.permute.xlu0 %1282
    %1286 = vset.pattern.permute.xlu0 0
    %1287 = vperm.xlu0 %1286, %v1061
    %v1288 = vpop.permute.xlu0 %1287
    %1291 = vset.pattern.permute.xlu0 0
    %1292 = vperm.xlu0 %1291, %v1062
    %v1293 = vpop.permute.xlu0 %1292
    %1296 = vset.pattern.permute.xlu0 0
    %1297 = vperm.xlu0 %1296, %v1063
    %v1298 = vpop.permute.xlu0 %1297
    %1301 = vset.pattern.permute.xlu0 0
    %1302 = vperm.xlu0 %1301, %v1064
    %v1303 = vpop.permute.xlu0 %1302
    %1306 = vset.pattern.permute.xlu0 0
    %1307 = vperm.xlu0 %1306, %v1065
    %v1308 = vpop.permute.xlu0 %1307
    %1311 = vset.pattern.permute.xlu0 0
    %1312 = vperm.xlu0 %1311, %v1066
    %v1313 = vpop.permute.xlu0 %1312
    %1316 = vset.pattern.permute.xlu0 0
    %1317 = vperm.xlu0 %1316, %v1067
    %v1318 = vpop.permute.xlu0 %1317
    %1321 = vset.pattern.permute.xlu0 0
    %1322 = vperm.xlu0 %1321, %v1068
    %v1323 = vpop.permute.xlu0 %1322
    %1326 = vset.pattern.permute.xlu0 0
    %1327 = vperm.xlu0 %1326, %v1069
    %v1328 = vpop.permute.xlu0 %1327
    %1331 = vset.pattern.permute.xlu0 0
    %1332 = vperm.xlu0 %1331, %v1070
    %v1333 = vpop.permute.xlu0 %1332
    %1336 = vset.pattern.permute.xlu0 0
    %1337 = vperm.xlu0 %1336, %v1071
    %v1338 = vpop.permute.xlu0 %1337
    %1341 = vset.pattern.permute.xlu0 0
    %1342 = vperm.xlu0 %1341, %v1072
    %v1343 = vpop.permute.xlu0 %1342
    %1346 = vset.pattern.permute.xlu0 0
    %1347 = vperm.xlu0 %1346, %v1073
    %v1348 = vpop.permute.xlu0 %1347
    %1351 = vset.pattern.permute.xlu0 0
    %1352 = vperm.xlu0 %1351, %v1074
    %v1353 = vpop.permute.xlu0 %1352
    %1356 = vset.pattern.permute.xlu0 0
    %1357 = vperm.xlu0 %1356, %v1075
    %v1358 = vpop.permute.xlu0 %1357
    %1361 = vset.pattern.permute.xlu0 0
    %1362 = vperm.xlu0 %1361, %v1076
    %v1363 = vpop.permute.xlu0 %1362
    %1366 = vset.pattern.permute.xlu0 0
    %1367 = vperm.xlu0 %1366, %v1077
    %v1368 = vpop.permute.xlu0 %1367
    %1371 = vset.pattern.permute.xlu0 0
    %1372 = vperm.xlu0 %1371, %v1078
    %v1373 = vpop.permute.xlu0 %1372
    %1376 = vset.pattern.permute.xlu0 0
    %1377 = vperm.xlu0 %1376, %v1079
    %v1378 = vpop.permute.xlu0 %1377
    %1381 = vset.pattern.permute.xlu0 0
    %1382 = vperm.xlu0 %1381, %v1080
    %v1383 = vpop.permute.xlu0 %1382
    %1386 = vset.pattern.permute.xlu0 0
    %1387 = vperm.xlu0 %1386, %v1081
    %v1388 = vpop.permute.xlu0 %1387
    %1391 = vset.pattern.permute.xlu0 0
    %1392 = vperm.xlu0 %1391, %v1082
    %v1393 = vpop.permute.xlu0 %1392
    %1396 = vset.pattern.permute.xlu0 0
    %1397 = vperm.xlu0 %1396, %v1083
    %v1398 = vpop.permute.xlu0 %1397
    %1401 = vset.pattern.permute.xlu0 0
    %1402 = vperm.xlu0 %1401, %v1084
    %v1403 = vpop.permute.xlu0 %1402
    %v1469 = vunpack.c.l.b16 %v957
    %v1470 = vunpack.c.h.b16 %v957
    %v1471 = vunpack.c.l.b16 %v958
    %v1472 = vunpack.c.h.b16 %v958
    %v1473 = vunpack.c.l.b16 %v959
    %v1474 = vunpack.c.h.b16 %v959
    %v1475 = vunpack.c.l.b16 %v960
    %v1476 = vunpack.c.h.b16 %v960
    %v1477 = vunpack.c.l.b16 %v961
    %v1478 = vunpack.c.h.b16 %v961
    %v1479 = vunpack.c.l.b16 %v962
    %v1480 = vunpack.c.h.b16 %v962
    %v1481 = vunpack.c.l.b16 %v963
    %v1482 = vunpack.c.h.b16 %v963
    %v1483 = vunpack.c.l.b16 %v964
    %v1484 = vunpack.c.h.b16 %v964
    %v1485 = vunpack.c.l.b16 %v965
    %v1486 = vunpack.c.h.b16 %v965
    %v1487 = vunpack.c.l.b16 %v966
    %v1488 = vunpack.c.h.b16 %v966
    %v1489 = vunpack.c.l.b16 %v967
    %v1490 = vunpack.c.h.b16 %v967
    %v1491 = vunpack.c.l.b16 %v968
    %v1492 = vunpack.c.h.b16 %v968
    %v1493 = vunpack.c.l.b16 %v969
    %v1494 = vunpack.c.h.b16 %v969
    %v1495 = vunpack.c.l.b16 %v970
    %v1496 = vunpack.c.h.b16 %v970
    %v1497 = vunpack.c.l.b16 %v971
    %v1498 = vunpack.c.h.b16 %v971
    %v1499 = vunpack.c.l.b16 %v972
    %v1500 = vunpack.c.h.b16 %v972
    %v1501 = vunpack.c.l.b16 %v973
    %v1502 = vunpack.c.h.b16 %v973
    %v1503 = vunpack.c.l.b16 %v974
    %v1504 = vunpack.c.h.b16 %v974
    %v1505 = vunpack.c.l.b16 %v975
    %v1506 = vunpack.c.h.b16 %v975
    %v1507 = vunpack.c.l.b16 %v976
    %v1508 = vunpack.c.h.b16 %v976
    %v1509 = vunpack.c.l.b16 %v977
    %v1510 = vunpack.c.h.b16 %v977
    %v1511 = vunpack.c.l.b16 %v978
    %v1512 = vunpack.c.h.b16 %v978
    %v1513 = vunpack.c.l.b16 %v979
    %v1514 = vunpack.c.h.b16 %v979
    %v1515 = vunpack.c.l.b16 %v980
    %v1516 = vunpack.c.h.b16 %v980
    %v1517 = vunpack.c.l.b16 %v981
    %v1518 = vunpack.c.h.b16 %v981
    %v1519 = vunpack.c.l.b16 %v982
    %v1520 = vunpack.c.h.b16 %v982
    %v1521 = vunpack.c.l.b16 %v983
    %v1522 = vunpack.c.h.b16 %v983
    %v1523 = vunpack.c.l.b16 %v984
    %v1524 = vunpack.c.h.b16 %v984
    %v1525 = vunpack.c.l.b16 %v985
    %v1526 = vunpack.c.h.b16 %v985
    %v1527 = vunpack.c.l.b16 %v986
    %v1528 = vunpack.c.h.b16 %v986
    %v1529 = vunpack.c.l.b16 %v987
    %v1530 = vunpack.c.h.b16 %v987
    %v1531 = vunpack.c.l.b16 %v988
    %v1532 = vunpack.c.h.b16 %v988
    %v1533 = vunpack.c.l.b16 %v989
    %v1534 = vunpack.c.h.b16 %v989
    %v1535 = vunpack.c.l.b16 %v990
    %v1536 = vunpack.c.h.b16 %v990
    %v1537 = vunpack.c.l.b16 %v991
    %v1538 = vunpack.c.h.b16 %v991
    %v1539 = vunpack.c.l.b16 %v992
    %v1540 = vunpack.c.h.b16 %v992
    %v1541 = vunpack.c.l.b16 %v993
    %v1542 = vunpack.c.h.b16 %v993
    %v1543 = vunpack.c.l.b16 %v994
    %v1544 = vunpack.c.h.b16 %v994
    %v1545 = vunpack.c.l.b16 %v995
    %v1546 = vunpack.c.h.b16 %v995
    %v1547 = vunpack.c.l.b16 %v996
    %v1548 = vunpack.c.h.b16 %v996
    %v1549 = vunpack.c.l.b16 %v997
    %v1550 = vunpack.c.h.b16 %v997
    %v1551 = vunpack.c.l.b16 %v998
    %v1552 = vunpack.c.h.b16 %v998
    %v1553 = vunpack.c.l.b16 %v999
    %v1554 = vunpack.c.h.b16 %v999
    %v1555 = vunpack.c.l.b16 %v1000
    %v1556 = vunpack.c.h.b16 %v1000
    %v1557 = vunpack.c.l.b16 %v1001
    %v1558 = vunpack.c.h.b16 %v1001
    %v1559 = vunpack.c.l.b16 %v1002
    %v1560 = vunpack.c.h.b16 %v1002
    %v1561 = vunpack.c.l.b16 %v1003
    %v1562 = vunpack.c.h.b16 %v1003
    %v1563 = vunpack.c.l.b16 %v1004
    %v1564 = vunpack.c.h.b16 %v1004
    %v1565 = vunpack.c.l.b16 %v1005
    %v1566 = vunpack.c.h.b16 %v1005
    %v1567 = vunpack.c.l.b16 %v1006
    %v1568 = vunpack.c.h.b16 %v1006
    %v1569 = vunpack.c.l.b16 %v1007
    %v1570 = vunpack.c.h.b16 %v1007
    %v1571 = vunpack.c.l.b16 %v1008
    %v1572 = vunpack.c.h.b16 %v1008
    %v1573 = vunpack.c.l.b16 %v1009
    %v1574 = vunpack.c.h.b16 %v1009
    %v1575 = vunpack.c.l.b16 %v1010
    %v1576 = vunpack.c.h.b16 %v1010
    %v1577 = vunpack.c.l.b16 %v1011
    %v1578 = vunpack.c.h.b16 %v1011
    %v1579 = vunpack.c.l.b16 %v1012
    %v1580 = vunpack.c.h.b16 %v1012
    %v1581 = vunpack.c.l.b16 %v1013
    %v1582 = vunpack.c.h.b16 %v1013
    %v1583 = vunpack.c.l.b16 %v1014
    %v1584 = vunpack.c.h.b16 %v1014
    %v1585 = vunpack.c.l.b16 %v1015
    %v1586 = vunpack.c.h.b16 %v1015
    %v1587 = vunpack.c.l.b16 %v1016
    %v1588 = vunpack.c.h.b16 %v1016
    %v1589 = vunpack.c.l.b16 %v1017
    %v1590 = vunpack.c.h.b16 %v1017
    %v1591 = vunpack.c.l.b16 %v1018
    %v1592 = vunpack.c.h.b16 %v1018
    %v1593 = vunpack.c.l.b16 %v1019
    %v1594 = vunpack.c.h.b16 %v1019
    %v1595 = vunpack.c.l.b16 %v1020
    %v1596 = vunpack.c.h.b16 %v1020
    %v1597 = vpack.c.b16 %v1471, %v1469
    %v1598 = vpack.c.b16 %v1472, %v1470
    %v1599 = vpack.c.b16 %v1475, %v1473
    %v1600 = vpack.c.b16 %v1476, %v1474
    %v1601 = vpack.c.b16 %v1479, %v1477
    %v1602 = vpack.c.b16 %v1480, %v1478
    %v1603 = vpack.c.b16 %v1483, %v1481
    %v1604 = vpack.c.b16 %v1484, %v1482
    %v1605 = vpack.c.b16 %v1487, %v1485
    %v1606 = vpack.c.b16 %v1488, %v1486
    %v1607 = vpack.c.b16 %v1491, %v1489
    %v1608 = vpack.c.b16 %v1492, %v1490
    %v1609 = vpack.c.b16 %v1495, %v1493
    %v1610 = vpack.c.b16 %v1496, %v1494
    %v1611 = vpack.c.b16 %v1499, %v1497
    %v1612 = vpack.c.b16 %v1500, %v1498
    %v1613 = vpack.c.b16 %v1503, %v1501
    %v1614 = vpack.c.b16 %v1504, %v1502
    %v1615 = vpack.c.b16 %v1507, %v1505
    %v1616 = vpack.c.b16 %v1508, %v1506
    %v1617 = vpack.c.b16 %v1511, %v1509
    %v1618 = vpack.c.b16 %v1512, %v1510
    %v1619 = vpack.c.b16 %v1515, %v1513
    %v1620 = vpack.c.b16 %v1516, %v1514
    %v1621 = vpack.c.b16 %v1519, %v1517
    %v1622 = vpack.c.b16 %v1520, %v1518
    %v1623 = vpack.c.b16 %v1523, %v1521
    %v1624 = vpack.c.b16 %v1524, %v1522
    %v1625 = vpack.c.b16 %v1527, %v1525
    %v1626 = vpack.c.b16 %v1528, %v1526
    %v1627 = vpack.c.b16 %v1531, %v1529
    %v1628 = vpack.c.b16 %v1532, %v1530
    %v1629 = vpack.c.b16 %v1535, %v1533
    %v1630 = vpack.c.b16 %v1536, %v1534
    %v1631 = vpack.c.b16 %v1539, %v1537
    %v1632 = vpack.c.b16 %v1540, %v1538
    %v1633 = vpack.c.b16 %v1543, %v1541
    %v1634 = vpack.c.b16 %v1544, %v1542
    %v1635 = vpack.c.b16 %v1547, %v1545
    %v1636 = vpack.c.b16 %v1548, %v1546
    %v1637 = vpack.c.b16 %v1551, %v1549
    %v1638 = vpack.c.b16 %v1552, %v1550
    %v1639 = vpack.c.b16 %v1555, %v1553
    %v1640 = vpack.c.b16 %v1556, %v1554
    %v1641 = vpack.c.b16 %v1559, %v1557
    %v1642 = vpack.c.b16 %v1560, %v1558
    %v1643 = vpack.c.b16 %v1563, %v1561
    %v1644 = vpack.c.b16 %v1564, %v1562
    %v1645 = vpack.c.b16 %v1567, %v1565
    %v1646 = vpack.c.b16 %v1568, %v1566
    %v1647 = vpack.c.b16 %v1571, %v1569
    %v1648 = vpack.c.b16 %v1572, %v1570
    %v1649 = vpack.c.b16 %v1575, %v1573
    %v1650 = vpack.c.b16 %v1576, %v1574
    %v1651 = vpack.c.b16 %v1579, %v1577
    %v1652 = vpack.c.b16 %v1580, %v1578
    %v1653 = vpack.c.b16 %v1583, %v1581
    %v1654 = vpack.c.b16 %v1584, %v1582
    %v1655 = vpack.c.b16 %v1587, %v1585
    %v1656 = vpack.c.b16 %v1588, %v1586
    %v1657 = vpack.c.b16 %v1591, %v1589
    %v1658 = vpack.c.b16 %v1592, %v1590
    %v1659 = vpack.c.b16 %v1595, %v1593
    %v1660 = vpack.c.b16 %v1596, %v1594
    %1725 = vmatprep.subr.bf16.mxu0 %v926
    %1726 = vmatpush1.bf16.msra.mxu0 %v925
    %1727 = vmatprep.subr.bf16.mxu0 %v928
    %1728 = vmatpush1.bf16.msra.mxu0 %v927
    %1729 = vmatprep.subr.bf16.mxu0 %v930
    %1730 = vmatpush1.bf16.msra.mxu0 %v929
    %1731 = vmatprep.subr.bf16.mxu0 %v932
    %1732 = vmatpush1.bf16.msra.mxu0 %v931
    %1733 = vmatprep.subr.bf16.mxu0 %v934
    %1734 = vmatpush1.bf16.msra.mxu0 %v933
    %1735 = vmatprep.subr.bf16.mxu0 %v936
    %1736 = vmatpush1.bf16.msra.mxu0 %v935
    %1737 = vmatprep.subr.bf16.mxu0 %v938
    %1738 = vmatpush1.bf16.msra.mxu0 %v937
    %1739 = vmatprep.subr.bf16.mxu0 %v940
    %1740 = vmatpush1.bf16.msra.mxu0 %v939
    %1741 = vmatprep.subr.bf16.mxu0 %v942
    %1742 = vmatpush1.bf16.msra.mxu0 %v941
    %1743 = vmatprep.subr.bf16.mxu0 %v944
    %1744 = vmatpush1.bf16.msra.mxu0 %v943
    %1745 = vmatprep.subr.bf16.mxu0 %v946
    %1746 = vmatpush1.bf16.msra.mxu0 %v945
    %1747 = vmatprep.subr.bf16.mxu0 %v948
    %1748 = vmatpush1.bf16.msra.mxu0 %v947
    %1749 = vmatprep.subr.bf16.mxu0 %v950
    %1750 = vmatpush1.bf16.msra.mxu0 %v949
    %1751 = vmatprep.subr.bf16.mxu0 %v952
    %1752 = vmatpush1.bf16.msra.mxu0 %v951
    %1753 = vmatprep.subr.bf16.mxu0 %v954
    %1754 = vmatpush1.bf16.msra.mxu0 %v953
    %1755 = vmatprep.subr.bf16.mxu0 %v956
    %1756 = vmatpush1.bf16.msra.mxu0 %v955
    %1757 = vmatprep.mubr.bf16.mxu0 %v1598
    %1758 = vmatmul.mubr.bf16.gmra.mrb[0].mxu0 %v1597
    %v1759 = vpop.f32.mrb[0].mxu0
    %v1760 = vadd.f32 %v1088, %v1759
    %v1761 = vpop.f32.mrb[0].mxu0
    %v1762 = vadd.f32 %v1088, %v1761
    %v1763 = vpop.f32.mrb[0].mxu0
    %v1764 = vadd.f32 %v1093, %v1763
    %v1765 = vpop.f32.mrb[0].mxu0
    %v1766 = vadd.f32 %v1093, %v1765
    %1767 = vmatprep.mubr.bf16.mxu0 %v1600
    %1768 = vmatmul.mubr.bf16.gmra.mrb[0].mxu0 %v1599
    %v1769 = vpop.f32.mrb[0].mxu0
    %v1770 = vadd.f32 %v1098, %v1769
    %v1771 = vpop.f32.mrb[0].mxu0
    %v1772 = vadd.f32 %v1098, %v1771
    %v1773 = vpop.f32.mrb[0].mxu0
    %v1774 = vadd.f32 %v1103, %v1773
    %v1775 = vpop.f32.mrb[0].mxu0
    %v1776 = vadd.f32 %v1103, %v1775
    %1777 = vmatprep.mubr.bf16.mxu0 %v1602
    %1778 = vmatmul.mubr.bf16.gmra.mrb[0].mxu0 %v1601
    %v1779 = vpop.f32.mrb[0].mxu0
    %v1780 = vadd.f32 %v1108, %v1779
    %v1781 = vpop.f32.mrb[0].mxu0
    %v1782 = vadd.f32 %v1108, %v1781
    %v1783 = vpop.f32.mrb[0].mxu0
    %v1784 = vadd.f32 %v1113, %v1783
    %v1785 = vpop.f32.mrb[0].mxu0
    %v1786 = vadd.f32 %v1113, %v1785
    %1787 = vmatprep.mubr.bf16.mxu0 %v1604
    %1788 = vmatmul.mubr.bf16.gmra.mrb[0].mxu0 %v1603
    %v1789 = vpop.f32.mrb[0].mxu0
    %v1790 = vadd.f32 %v1118, %v1789
    %v1791 = vpop.f32.mrb[0].mxu0
    %v1792 = vadd.f32 %v1118, %v1791
    %v1793 = vpop.f32.mrb[0].mxu0
    %v1794 = vadd.f32 %v1123, %v1793
    %v1795 = vpop.f32.mrb[0].mxu0
    %v1796 = vadd.f32 %v1123, %v1795
    %1797 = vmatprep.mubr.bf16.mxu0 %v1606
    %1798 = vmatmul.mubr.bf16.gmra.mrb[0].mxu0 %v1605
    %v1799 = vpop.f32.mrb[0].mxu0
    %v1800 = vadd.f32 %v1128, %v1799
    %v1801 = vpop.f32.mrb[0].mxu0
    %v1802 = vadd.f32 %v1128, %v1801
    %v1803 = vpop.f32.mrb[0].mxu0
    %v1804 = vadd.f32 %v1133, %v1803
    %v1805 = vpop.f32.mrb[0].mxu0
    %v1806 = vadd.f32 %v1133, %v1805
    %1807 = vmatprep.mubr.bf16.mxu0 %v1608
    %1808 = vmatmul.mubr.bf16.gmra.mrb[0].mxu0 %v1607
    %v1809 = vpop.f32.mrb[0].mxu0
    %v1810 = vadd.f32 %v1138, %v1809
    %v1811 = vpop.f32.mrb[0].mxu0
    %v1812 = vadd.f32 %v1138, %v1811
    %v1813 = vpop.f32.mrb[0].mxu0
    %v1814 = vadd.f32 %v1143, %v1813
    %v1815 = vpop.f32.mrb[0].mxu0
    %v1816 = vadd.f32 %v1143, %v1815
    %1817 = vmatprep.mubr.bf16.mxu0 %v1610
    %1818 = vmatmul.mubr.bf16.gmra.mrb[0].mxu0 %v1609
    %v1819 = vpop.f32.mrb[0].mxu0
    %v1820 = vadd.f32 %v1148, %v1819
    %v1821 = vpop.f32.mrb[0].mxu0
    %v1822 = vadd.f32 %v1148, %v1821
    %v1823 = vpop.f32.mrb[0].mxu0
    %v1824 = vadd.f32 %v1153, %v1823
    %v1825 = vpop.f32.mrb[0].mxu0
    %v1826 = vadd.f32 %v1153, %v1825
    %1827 = vmatprep.mubr.bf16.mxu0 %v1612
    %1828 = vmatmul.mubr.bf16.gmra.mrb[0].mxu0 %v1611
    %v1829 = vpop.f32.mrb[0].mxu0
    %v1830 = vadd.f32 %v1158, %v1829
    %v1831 = vpop.f32.mrb[0].mxu0
    %v1832 = vadd.f32 %v1158, %v1831
    %v1833 = vpop.f32.mrb[0].mxu0
    %v1834 = vadd.f32 %v1163, %v1833
    %v1835 = vpop.f32.mrb[0].mxu0
    %v1836 = vadd.f32 %v1163, %v1835
    %1837 = vmatprep.mubr.bf16.mxu0 %v1614
    %1838 = vmatmul.mubr.bf16.gmra.mrb[0].mxu0 %v1613
    %v1839 = vpop.f32.mrb[0].mxu0
    %v1840 = vadd.f32 %v1168, %v1839
    %v1841 = vpop.f32.mrb[0].mxu0
    %v1842 = vadd.f32 %v1168, %v1841
    %v1843 = vpop.f32.mrb[0].mxu0
    %v1844 = vadd.f32 %v1173, %v1843
    %v1845 = vpop.f32.mrb[0].mxu0
    %v1846 = vadd.f32 %v1173, %v1845
    %1847 = vmatprep.mubr.bf16.mxu0 %v1616
    %1848 = vmatmul.mubr.bf16.gmra.mrb[0].mxu0 %v1615
    %v1849 = vpop.f32.mrb[0].mxu0
    %v1850 = vadd.f32 %v1178, %v1849
    %v1851 = vpop.f32.mrb[0].mxu0
    %v1852 = vadd.f32 %v1178, %v1851
    %v1853 = vpop.f32.mrb[0].mxu0
    %v1854 = vadd.f32 %v1183, %v1853
    %v1855 = vpop.f32.mrb[0].mxu0
    %v1856 = vadd.f32 %v1183, %v1855
    %1857 = vmatprep.mubr.bf16.mxu0 %v1618
    %1858 = vmatmul.mubr.bf16.gmra.mrb[0].mxu0 %v1617
    %v1859 = vpop.f32.mrb[0].mxu0
    %v1860 = vadd.f32 %v1188, %v1859
    %v1861 = vpop.f32.mrb[0].mxu0
    %v1862 = vadd.f32 %v1188, %v1861
    %v1863 = vpop.f32.mrb[0].mxu0
    %v1864 = vadd.f32 %v1193, %v1863
    %v1865 = vpop.f32.mrb[0].mxu0
    %v1866 = vadd.f32 %v1193, %v1865
    %1867 = vmatprep.mubr.bf16.mxu0 %v1620
    %1868 = vmatmul.mubr.bf16.gmra.mrb[0].mxu0 %v1619
    %v1869 = vpop.f32.mrb[0].mxu0
    %v1870 = vadd.f32 %v1198, %v1869
    %v1871 = vpop.f32.mrb[0].mxu0
    %v1872 = vadd.f32 %v1198, %v1871
    %v1873 = vpop.f32.mrb[0].mxu0
    %v1874 = vadd.f32 %v1203, %v1873
    %v1875 = vpop.f32.mrb[0].mxu0
    %v1876 = vadd.f32 %v1203, %v1875
    %1877 = vmatprep.mubr.bf16.mxu0 %v1622
    %1878 = vmatmul.mubr.bf16.gmra.mrb[0].mxu0 %v1621
    %v1879 = vpop.f32.mrb[0].mxu0
    %v1880 = vadd.f32 %v1208, %v1879
    %v1881 = vpop.f32.mrb[0].mxu0
    %v1882 = vadd.f32 %v1208, %v1881
    %v1883 = vpop.f32.mrb[0].mxu0
    %v1884 = vadd.f32 %v1213, %v1883
    %v1885 = vpop.f32.mrb[0].mxu0
    %v1886 = vadd.f32 %v1213, %v1885
    %1887 = vmatprep.mubr.bf16.mxu0 %v1624
    %1888 = vmatmul.mubr.bf16.gmra.mrb[0].mxu0 %v1623
    %v1889 = vpop.f32.mrb[0].mxu0
    %v1890 = vadd.f32 %v1218, %v1889
    %v1891 = vpop.f32.mrb[0].mxu0
    %v1892 = vadd.f32 %v1218, %v1891
    %v1893 = vpop.f32.mrb[0].mxu0
    %v1894 = vadd.f32 %v1223, %v1893
    %v1895 = vpop.f32.mrb[0].mxu0
    %v1896 = vadd.f32 %v1223, %v1895
    %1897 = vmatprep.mubr.bf16.mxu0 %v1626
    %1898 = vmatmul.mubr.bf16.gmra.mrb[0].mxu0 %v1625
    %v1899 = vpop.f32.mrb[0].mxu0
    %v1900 = vadd.f32 %v1228, %v1899
    %v1901 = vpop.f32.mrb[0].mxu0
    %v1902 = vadd.f32 %v1228, %v1901
    %v1903 = vpop.f32.mrb[0].mxu0
    %v1904 = vadd.f32 %v1233, %v1903
    %v1905 = vpop.f32.mrb[0].mxu0
    %v1906 = vadd.f32 %v1233, %v1905
    %1907 = vmatprep.mubr.bf16.mxu0 %v1628
    %1908 = vmatmul.mubr.bf16.gmra.mrb[0].mxu0 %v1627
    %v1909 = vpop.f32.mrb[0].mxu0
    %v1910 = vadd.f32 %v1238, %v1909
    %v1911 = vpop.f32.mrb[0].mxu0
    %v1912 = vadd.f32 %v1238, %v1911
    %v1913 = vpop.f32.mrb[0].mxu0
    %v1914 = vadd.f32 %v1243, %v1913
    %v1915 = vpop.f32.mrb[0].mxu0
    %v1916 = vadd.f32 %v1243, %v1915
    %1917 = vmatprep.mubr.bf16.mxu0 %v1630
    %1918 = vmatmul.mubr.bf16.gmra.mrb[0].mxu0 %v1629
    %v1919 = vpop.f32.mrb[0].mxu0
    %v1920 = vadd.f32 %v1248, %v1919
    %v1921 = vpop.f32.mrb[0].mxu0
    %v1922 = vadd.f32 %v1248, %v1921
    %v1923 = vpop.f32.mrb[0].mxu0
    %v1924 = vadd.f32 %v1253, %v1923
    %v1925 = vpop.f32.mrb[0].mxu0
    %v1926 = vadd.f32 %v1253, %v1925
    %1927 = vmatprep.mubr.bf16.mxu0 %v1632
    %1928 = vmatmul.mubr.bf16.gmra.mrb[0].mxu0 %v1631
    %v1929 = vpop.f32.mrb[0].mxu0
    %v1930 = vadd.f32 %v1258, %v1929
    %v1931 = vpop.f32.mrb[0].mxu0
    %v1932 = vadd.f32 %v1258, %v1931
    %v1933 = vpop.f32.mrb[0].mxu0
    %v1934 = vadd.f32 %v1263, %v1933
    %v1935 = vpop.f32.mrb[0].mxu0
    %v1936 = vadd.f32 %v1263, %v1935
    %1937 = vmatprep.mubr.bf16.mxu0 %v1634
    %1938 = vmatmul.mubr.bf16.gmra.mrb[0].mxu0 %v1633
    %v1939 = vpop.f32.mrb[0].mxu0
    %v1940 = vadd.f32 %v1268, %v1939
    %v1941 = vpop.f32.mrb[0].mxu0
    %v1942 = vadd.f32 %v1268, %v1941
    %v1943 = vpop.f32.mrb[0].mxu0
    %v1944 = vadd.f32 %v1273, %v1943
    %v1945 = vpop.f32.mrb[0].mxu0
    %v1946 = vadd.f32 %v1273, %v1945
    %1947 = vmatprep.mubr.bf16.mxu0 %v1636
    %1948 = vmatmul.mubr.bf16.gmra.mrb[0].mxu0 %v1635
    %v1949 = vpop.f32.mrb[0].mxu0
    %v1950 = vadd.f32 %v1278, %v1949
    %v1951 = vpop.f32.mrb[0].mxu0
    %v1952 = vadd.f32 %v1278, %v1951
    %v1953 = vpop.f32.mrb[0].mxu0
    %v1954 = vadd.f32 %v1283, %v1953
    %v1955 = vpop.f32.mrb[0].mxu0
    %v1956 = vadd.f32 %v1283, %v1955
    %1957 = vmatprep.mubr.bf16.mxu0 %v1638
    %1958 = vmatmul.mubr.bf16.gmra.mrb[0].mxu0 %v1637
    %v1959 = vpop.f32.mrb[0].mxu0
    %v1960 = vadd.f32 %v1288, %v1959
    %v1961 = vpop.f32.mrb[0].mxu0
    %v1962 = vadd.f32 %v1288, %v1961
    %v1963 = vpop.f32.mrb[0].mxu0
    %v1964 = vadd.f32 %v1293, %v1963
    %v1965 = vpop.f32.mrb[0].mxu0
    %v1966 = vadd.f32 %v1293, %v1965
    %1967 = vmatprep.mubr.bf16.mxu0 %v1640
    %1968 = vmatmul.mubr.bf16.gmra.mrb[0].mxu0 %v1639
    %v1969 = vpop.f32.mrb[0].mxu0
    %v1970 = vadd.f32 %v1298, %v1969
    %v1971 = vpop.f32.mrb[0].mxu0
    %v1972 = vadd.f32 %v1298, %v1971
    %v1973 = vpop.f32.mrb[0].mxu0
    %v1974 = vadd.f32 %v1303, %v1973
    %v1975 = vpop.f32.mrb[0].mxu0
    %v1976 = vadd.f32 %v1303, %v1975
    %1977 = vmatprep.mubr.bf16.mxu0 %v1642
    %1978 = vmatmul.mubr.bf16.gmra.mrb[0].mxu0 %v1641
    %v1979 = vpop.f32.mrb[0].mxu0
    %v1980 = vadd.f32 %v1308, %v1979
    %v1981 = vpop.f32.mrb[0].mxu0
    %v1982 = vadd.f32 %v1308, %v1981
    %v1983 = vpop.f32.mrb[0].mxu0
    %v1984 = vadd.f32 %v1313, %v1983
    %v1985 = vpop.f32.mrb[0].mxu0
    %v1986 = vadd.f32 %v1313, %v1985
    %1987 = vmatprep.mubr.bf16.mxu0 %v1644
    %1988 = vmatmul.mubr.bf16.gmra.mrb[0].mxu0 %v1643
    %v1989 = vpop.f32.mrb[0].mxu0
    %v1990 = vadd.f32 %v1318, %v1989
    %v1991 = vpop.f32.mrb[0].mxu0
    %v1992 = vadd.f32 %v1318, %v1991
    %v1993 = vpop.f32.mrb[0].mxu0
    %v1994 = vadd.f32 %v1323, %v1993
    %v1995 = vpop.f32.mrb[0].mxu0
    %v1996 = vadd.f32 %v1323, %v1995
    %1997 = vmatprep.mubr.bf16.mxu0 %v1646
    %1998 = vmatmul.mubr.bf16.gmra.mrb[0].mxu0 %v1645
    %v1999 = vpop.f32.mrb[0].mxu0
    %v2000 = vadd.f32 %v1328, %v1999
    %v2001 = vpop.f32.mrb[0].mxu0
    %v2002 = vadd.f32 %v1328, %v2001
    %v2003 = vpop.f32.mrb[0].mxu0
    %v2004 = vadd.f32 %v1333, %v2003
    %v2005 = vpop.f32.mrb[0].mxu0
    %v2006 = vadd.f32 %v1333, %v2005
    %2007 = vmatprep.mubr.bf16.mxu0 %v1648
    %2008 = vmatmul.mubr.bf16.gmra.mrb[0].mxu0 %v1647
    %v2009 = vpop.f32.mrb[0].mxu0
    %v2010 = vadd.f32 %v1338, %v2009
    %v2011 = vpop.f32.mrb[0].mxu0
    %v2012 = vadd.f32 %v1338, %v2011
    %v2013 = vpop.f32.mrb[0].mxu0
    %v2014 = vadd.f32 %v1343, %v2013
    %v2015 = vpop.f32.mrb[0].mxu0
    %v2016 = vadd.f32 %v1343, %v2015
    %2017 = vmatprep.mubr.bf16.mxu0 %v1650
    %2018 = vmatmul.mubr.bf16.gmra.mrb[0].mxu0 %v1649
    %v2019 = vpop.f32.mrb[0].mxu0
    %v2020 = vadd.f32 %v1348, %v2019
    %v2021 = vpop.f32.mrb[0].mxu0
    %v2022 = vadd.f32 %v1348, %v2021
    %v2023 = vpop.f32.mrb[0].mxu0
    %v2024 = vadd.f32 %v1353, %v2023
    %v2025 = vpop.f32.mrb[0].mxu0
    %v2026 = vadd.f32 %v1353, %v2025
    %2027 = vmatprep.mubr.bf16.mxu0 %v1652
    %2028 = vmatmul.mubr.bf16.gmra.mrb[0].mxu0 %v1651
    %v2029 = vpop.f32.mrb[0].mxu0
    %v2030 = vadd.f32 %v1358, %v2029
    %v2031 = vpop.f32.mrb[0].mxu0
    %v2032 = vadd.f32 %v1358, %v2031
    %v2033 = vpop.f32.mrb[0].mxu0
    %v2034 = vadd.f32 %v1363, %v2033
    %v2035 = vpop.f32.mrb[0].mxu0
    %v2036 = vadd.f32 %v1363, %v2035
    %2037 = vmatprep.mubr.bf16.mxu0 %v1654
    %2038 = vmatmul.mubr.bf16.gmra.mrb[0].mxu0 %v1653
    %v2039 = vpop.f32.mrb[0].mxu0
    %v2040 = vadd.f32 %v1368, %v2039
    %v2041 = vpop.f32.mrb[0].mxu0
    %v2042 = vadd.f32 %v1368, %v2041
    %v2043 = vpop.f32.mrb[0].mxu0
    %v2044 = vadd.f32 %v1373, %v2043
    %v2045 = vpop.f32.mrb[0].mxu0
    %v2046 = vadd.f32 %v1373, %v2045
    %2047 = vmatprep.mubr.bf16.mxu0 %v1656
    %2048 = vmatmul.mubr.bf16.gmra.mrb[0].mxu0 %v1655
    %v2049 = vpop.f32.mrb[0].mxu0
    %v2050 = vadd.f32 %v1378, %v2049
    %v2051 = vpop.f32.mrb[0].mxu0
    %v2052 = vadd.f32 %v1378, %v2051
    %v2053 = vpop.f32.mrb[0].mxu0
    %v2054 = vadd.f32 %v1383, %v2053
    %v2055 = vpop.f32.mrb[0].mxu0
    %v2056 = vadd.f32 %v1383, %v2055
    %2057 = vmatprep.mubr.bf16.mxu0 %v1658
    %2058 = vmatmul.mubr.bf16.gmra.mrb[0].mxu0 %v1657
    %v2059 = vpop.f32.mrb[0].mxu0
    %v2060 = vadd.f32 %v1388, %v2059
    %v2061 = vpop.f32.mrb[0].mxu0
    %v2062 = vadd.f32 %v1388, %v2061
    %v2063 = vpop.f32.mrb[0].mxu0
    %v2064 = vadd.f32 %v1393, %v2063
    %v2065 = vpop.f32.mrb[0].mxu0
    %v2066 = vadd.f32 %v1393, %v2065
    %2067 = vmatprep.mubr.bf16.mxu0 %v1660
    %2068 = vmatmul.mubr.bf16.gmra.mrb[0].mxu0 %v1659
    %v2069 = vpop.f32.mrb[0].mxu0
    %v2070 = vadd.f32 %v1398, %v2069
    %v2071 = vpop.f32.mrb[0].mxu0
    %v2072 = vadd.f32 %v1398, %v2071
    %v2073 = vpop.f32.mrb[0].mxu0
    %v2074 = vadd.f32 %v1403, %v2073
    %v2075 = vpop.f32.mrb[0].mxu0
    %v2076 = vadd.f32 %v1403, %v2075
    %2077 = vdwg.mxu0
    %v2078 = vmax.f32 %v1760, 0.0
    %v2079 = vmax.f32 %v1762, 0.0
    %v2080 = vmax.f32 %v1764, 0.0
    %v2081 = vmax.f32 %v1766, 0.0
    %v2082 = vmax.f32 %v1770, 0.0
    %v2083 = vmax.f32 %v1772, 0.0
    %v2084 = vmax.f32 %v1774, 0.0
    %v2085 = vmax.f32 %v1776, 0.0
    %v2086 = vmax.f32 %v1780, 0.0
    %v2087 = vmax.f32 %v1782, 0.0
    %v2088 = vmax.f32 %v1784, 0.0
    %v2089 = vmax.f32 %v1786, 0.0
    %v2090 = vmax.f32 %v1790, 0.0
    %v2091 = vmax.f32 %v1792, 0.0
    %v2092 = vmax.f32 %v1794, 0.0
    %v2093 = vmax.f32 %v1796, 0.0
    %v2094 = vmax.f32 %v1800, 0.0
    %v2095 = vmax.f32 %v1802, 0.0
    %v2096 = vmax.f32 %v1804, 0.0
    %v2097 = vmax.f32 %v1806, 0.0
    %v2098 = vmax.f32 %v1810, 0.0
    %v2099 = vmax.f32 %v1812, 0.0
    %v2100 = vmax.f32 %v1814, 0.0
    %v2101 = vmax.f32 %v1816, 0.0
    %v2102 = vmax.f32 %v1820, 0.0
    %v2103 = vmax.f32 %v1822, 0.0
    %v2104 = vmax.f32 %v1824, 0.0
    %v2105 = vmax.f32 %v1826, 0.0
    %v2106 = vmax.f32 %v1830, 0.0
    %v2107 = vmax.f32 %v1832, 0.0
    %v2108 = vmax.f32 %v1834, 0.0
    %v2109 = vmax.f32 %v1836, 0.0
    %v2110 = vmax.f32 %v1840, 0.0
    %v2111 = vmax.f32 %v1842, 0.0
    %v2112 = vmax.f32 %v1844, 0.0
    %v2113 = vmax.f32 %v1846, 0.0
    %v2114 = vmax.f32 %v1850, 0.0
    %v2115 = vmax.f32 %v1852, 0.0
    %v2116 = vmax.f32 %v1854, 0.0
    %v2117 = vmax.f32 %v1856, 0.0
    %v2118 = vmax.f32 %v1860, 0.0
    %v2119 = vmax.f32 %v1862, 0.0
    %v2120 = vmax.f32 %v1864, 0.0
    %v2121 = vmax.f32 %v1866, 0.0
    %v2122 = vmax.f32 %v1870, 0.0
    %v2123 = vmax.f32 %v1872, 0.0
    %v2124 = vmax.f32 %v1874, 0.0
    %v2125 = vmax.f32 %v1876, 0.0
    %v2126 = vmax.f32 %v1880, 0.0
    %v2127 = vmax.f32 %v1882, 0.0
    %v2128 = vmax.f32 %v1884, 0.0
    %v2129 = vmax.f32 %v1886, 0.0
    %v2130 = vmax.f32 %v1890, 0.0
    %v2131 = vmax.f32 %v1892, 0.0
    %v2132 = vmax.f32 %v1894, 0.0
    %v2133 = vmax.f32 %v1896, 0.0
    %v2134 = vmax.f32 %v1900, 0.0
    %v2135 = vmax.f32 %v1902, 0.0
    %v2136 = vmax.f32 %v1904, 0.0
    %v2137 = vmax.f32 %v1906, 0.0
    %v2138 = vmax.f32 %v1910, 0.0
    %v2139 = vmax.f32 %v1912, 0.0
    %v2140 = vmax.f32 %v1914, 0.0
    %v2141 = vmax.f32 %v1916, 0.0
    %v2142 = vmax.f32 %v1920, 0.0
    %v2143 = vmax.f32 %v1922, 0.0
    %v2144 = vmax.f32 %v1924, 0.0
    %v2145 = vmax.f32 %v1926, 0.0
    %v2146 = vmax.f32 %v1930, 0.0
    %v2147 = vmax.f32 %v1932, 0.0
    %v2148 = vmax.f32 %v1934, 0.0
    %v2149 = vmax.f32 %v1936, 0.0
    %v2150 = vmax.f32 %v1940, 0.0
    %v2151 = vmax.f32 %v1942, 0.0
    %v2152 = vmax.f32 %v1944, 0.0
    %v2153 = vmax.f32 %v1946, 0.0
    %v2154 = vmax.f32 %v1950, 0.0
    %v2155 = vmax.f32 %v1952, 0.0
    %v2156 = vmax.f32 %v1954, 0.0
    %v2157 = vmax.f32 %v1956, 0.0
    %v2158 = vmax.f32 %v1960, 0.0
    %v2159 = vmax.f32 %v1962, 0.0
    %v2160 = vmax.f32 %v1964, 0.0
    %v2161 = vmax.f32 %v1966, 0.0
    %v2162 = vmax.f32 %v1970, 0.0
    %v2163 = vmax.f32 %v1972, 0.0
    %v2164 = vmax.f32 %v1974, 0.0
    %v2165 = vmax.f32 %v1976, 0.0
    %v2166 = vmax.f32 %v1980, 0.0
    %v2167 = vmax.f32 %v1982, 0.0
    %v2168 = vmax.f32 %v1984, 0.0
    %v2169 = vmax.f32 %v1986, 0.0
    %v2170 = vmax.f32 %v1990, 0.0
    %v2171 = vmax.f32 %v1992, 0.0
    %v2172 = vmax.f32 %v1994, 0.0
    %v2173 = vmax.f32 %v1996, 0.0
    %v2174 = vmax.f32 %v2000, 0.0
    %v2175 = vmax.f32 %v2002, 0.0
    %v2176 = vmax.f32 %v2004, 0.0
    %v2177 = vmax.f32 %v2006, 0.0
    %v2178 = vmax.f32 %v2010, 0.0
    %v2179 = vmax.f32 %v2012, 0.0
    %v2180 = vmax.f32 %v2014, 0.0
    %v2181 = vmax.f32 %v2016, 0.0
    %v2182 = vmax.f32 %v2020, 0.0
    %v2183 = vmax.f32 %v2022, 0.0
    %v2184 = vmax.f32 %v2024, 0.0
    %v2185 = vmax.f32 %v2026, 0.0
    %v2186 = vmax.f32 %v2030, 0.0
    %v2187 = vmax.f32 %v2032, 0.0
    %v2188 = vmax.f32 %v2034, 0.0
    %v2189 = vmax.f32 %v2036, 0.0
    %v2190 = vmax.f32 %v2040, 0.0
    %v2191 = vmax.f32 %v2042, 0.0
    %v2192 = vmax.f32 %v2044, 0.0
    %v2193 = vmax.f32 %v2046, 0.0
    %v2194 = vmax.f32 %v2050, 0.0
    %v2195 = vmax.f32 %v2052, 0.0
    %v2196 = vmax.f32 %v2054, 0.0
    %v2197 = vmax.f32 %v2056, 0.0
    %v2198 = vmax.f32 %v2060, 0.0
    %v2199 = vmax.f32 %v2062, 0.0
    %v2200 = vmax.f32 %v2064, 0.0
    %v2201 = vmax.f32 %v2066, 0.0
    %v2202 = vmax.f32 %v2070, 0.0
    %v2203 = vmax.f32 %v2072, 0.0
    %v2204 = vmax.f32 %v2074, 0.0
    %v2205 = vmax.f32 %v2076, 0.0
    %v2206 = vpack.c.bf16 %v2080, %v2078
    %v2207 = vpack.c.bf16 %v2081, %v2079
    %v2208 = vpack.c.bf16 %v2084, %v2082
    %v2209 = vpack.c.bf16 %v2085, %v2083
    %v2210 = vpack.c.bf16 %v2088, %v2086
    %v2211 = vpack.c.bf16 %v2089, %v2087
    %v2212 = vpack.c.bf16 %v2092, %v2090
    %v2213 = vpack.c.bf16 %v2093, %v2091
    %v2214 = vpack.c.bf16 %v2096, %v2094
    %v2215 = vpack.c.bf16 %v2097, %v2095
    %v2216 = vpack.c.bf16 %v2100, %v2098
    %v2217 = vpack.c.bf16 %v2101, %v2099
    %v2218 = vpack.c.bf16 %v2104, %v2102
    %v2219 = vpack.c.bf16 %v2105, %v2103
    %v2220 = vpack.c.bf16 %v2108, %v2106
    %v2221 = vpack.c.bf16 %v2109, %v2107
    %v2222 = vpack.c.bf16 %v2112, %v2110
    %v2223 = vpack.c.bf16 %v2113, %v2111
    %v2224 = vpack.c.bf16 %v2116, %v2114
    %v2225 = vpack.c.bf16 %v2117, %v2115
    %v2226 = vpack.c.bf16 %v2120, %v2118
    %v2227 = vpack.c.bf16 %v2121, %v2119
    %v2228 = vpack.c.bf16 %v2124, %v2122
    %v2229 = vpack.c.bf16 %v2125, %v2123
    %v2230 = vpack.c.bf16 %v2128, %v2126
    %v2231 = vpack.c.bf16 %v2129, %v2127
    %v2232 = vpack.c.bf16 %v2132, %v2130
    %v2233 = vpack.c.bf16 %v2133, %v2131
    %v2234 = vpack.c.bf16 %v2136, %v2134
    %v2235 = vpack.c.bf16 %v2137, %v2135
    %v2236 = vpack.c.bf16 %v2140, %v2138
    %v2237 = vpack.c.bf16 %v2141, %v2139
    %v2238 = vpack.c.bf16 %v2144, %v2142
    %v2239 = vpack.c.bf16 %v2145, %v2143
    %v2240 = vpack.c.bf16 %v2148, %v2146
    %v2241 = vpack.c.bf16 %v2149, %v2147
    %v2242 = vpack.c.bf16 %v2152, %v2150
    %v2243 = vpack.c.bf16 %v2153, %v2151
    %v2244 = vpack.c.bf16 %v2156, %v2154
    %v2245 = vpack.c.bf16 %v2157, %v2155
    %v2246 = vpack.c.bf16 %v2160, %v2158
    %v2247 = vpack.c.bf16 %v2161, %v2159
    %v2248 = vpack.c.bf16 %v2164, %v2162
    %v2249 = vpack.c.bf16 %v2165, %v2163
    %v2250 = vpack.c.bf16 %v2168, %v2166
    %v2251 = vpack.c.bf16 %v2169, %v2167
    %v2252 = vpack.c.bf16 %v2172, %v2170
    %v2253 = vpack.c.bf16 %v2173, %v2171
    %v2254 = vpack.c.bf16 %v2176, %v2174
    %v2255 = vpack.c.bf16 %v2177, %v2175
    %v2256 = vpack.c.bf16 %v2180, %v2178
    %v2257 = vpack.c.bf16 %v2181, %v2179
    %v2258 = vpack.c.bf16 %v2184, %v2182
    %v2259 = vpack.c.bf16 %v2185, %v2183
    %v2260 = vpack.c.bf16 %v2188, %v2186
    %v2261 = vpack.c.bf16 %v2189, %v2187
    %v2262 = vpack.c.bf16 %v2192, %v2190
    %v2263 = vpack.c.bf16 %v2193, %v2191
    %v2264 = vpack.c.bf16 %v2196, %v2194
    %v2265 = vpack.c.bf16 %v2197, %v2195
    %v2266 = vpack.c.bf16 %v2200, %v2198
    %v2267 = vpack.c.bf16 %v2201, %v2199
    %v2268 = vpack.c.bf16 %v2204, %v2202
    %v2269 = vpack.c.bf16 %v2205, %v2203
    %v2270 = vld [vmem:[%s5] sm:$0xff]
    %v2271 = vld [vmem:[%s5 + $0x8] sm:$0xff]
    %v2272 = vld [vmem:[%s5 + $0x10] sm:$0xff]
    %v2273 = vld [vmem:[%s5 + $0x18] sm:$0xff]
    %v2274 = vld [vmem:[%s5 + $0x20] sm:$0xff]
    %v2275 = vld [vmem:[%s5 + $0x28] sm:$0xff]
    %v2276 = vld [vmem:[%s5 + $0x30] sm:$0xff]
    %v2277 = vld [vmem:[%s5 + $0x38] sm:$0xff]
    %v2278 = vld [vmem:[%s5 + $0x40] sm:$0xff]
    %v2279 = vld [vmem:[%s5 + $0x48] sm:$0xff]
    %v2280 = vld [vmem:[%s5 + $0x50] sm:$0xff]
    %v2281 = vld [vmem:[%s5 + $0x58] sm:$0xff]
    %v2282 = vld [vmem:[%s5 + $0x60] sm:$0xff]
    %v2283 = vld [vmem:[%s5 + $0x68] sm:$0xff]
    %v2284 = vld [vmem:[%s5 + $0x70] sm:$0xff]
    %v2285 = vld [vmem:[%s5 + $0x78] sm:$0xff]
    %v2286 = vld [vmem:[%s5 + $0x80] sm:$0xff]
    %v2287 = vld [vmem:[%s5 + $0x88] sm:$0xff]
    %v2288 = vld [vmem:[%s5 + $0x90] sm:$0xff]
    %v2289 = vld [vmem:[%s5 + $0x98] sm:$0xff]
    %v2290 = vld [vmem:[%s5 + $0xa0] sm:$0xff]
    %v2291 = vld [vmem:[%s5 + $0xa8] sm:$0xff]
    %v2292 = vld [vmem:[%s5 + $0xb0] sm:$0xff]
    %v2293 = vld [vmem:[%s5 + $0xb8] sm:$0xff]
    %v2294 = vld [vmem:[%s5 + $0xc0] sm:$0xff]
    %v2295 = vld [vmem:[%s5 + $0xc8] sm:$0xff]
    %v2296 = vld [vmem:[%s5 + $0xd0] sm:$0xff]
    %v2297 = vld [vmem:[%s5 + $0xd8] sm:$0xff]
    %v2298 = vld [vmem:[%s5 + $0xe0] sm:$0xff]
    %v2299 = vld [vmem:[%s5 + $0xe8] sm:$0xff]
    %v2300 = vld [vmem:[%s5 + $0xf0] sm:$0xff]
    %v2301 = vld [vmem:[%s5 + $0xf8] sm:$0xff]
    %v2302 = vld [vmem:[%s5 + $0x100] sm:$0xff]
    %v2303 = vld [vmem:[%s5 + $0x108] sm:$0xff]
    %v2304 = vld [vmem:[%s5 + $0x110] sm:$0xff]
    %v2305 = vld [vmem:[%s5 + $0x118] sm:$0xff]
    %v2306 = vld [vmem:[%s5 + $0x120] sm:$0xff]
    %v2307 = vld [vmem:[%s5 + $0x128] sm:$0xff]
    %v2308 = vld [vmem:[%s5 + $0x130] sm:$0xff]
    %v2309 = vld [vmem:[%s5 + $0x138] sm:$0xff]
    %v2310 = vld [vmem:[%s5 + $0x140] sm:$0xff]
    %v2311 = vld [vmem:[%s5 + $0x148] sm:$0xff]
    %v2312 = vld [vmem:[%s5 + $0x150] sm:$0xff]
    %v2313 = vld [vmem:[%s5 + $0x158] sm:$0xff]
    %v2314 = vld [vmem:[%s5 + $0x160] sm:$0xff]
    %v2315 = vld [vmem:[%s5 + $0x168] sm:$0xff]
    %v2316 = vld [vmem:[%s5 + $0x170] sm:$0xff]
    %v2317 = vld [vmem:[%s5 + $0x178] sm:$0xff]
    %v2318 = vld [vmem:[%s5 + $0x180] sm:$0xff]
    %v2319 = vld [vmem:[%s5 + $0x188] sm:$0xff]
    %v2320 = vld [vmem:[%s5 + $0x190] sm:$0xff]
    %v2321 = vld [vmem:[%s5 + $0x198] sm:$0xff]
    %v2322 = vld [vmem:[%s5 + $0x1a0] sm:$0xff]
    %v2323 = vld [vmem:[%s5 + $0x1a8] sm:$0xff]
    %v2324 = vld [vmem:[%s5 + $0x1b0] sm:$0xff]
    %v2325 = vld [vmem:[%s5 + $0x1b8] sm:$0xff]
    %v2326 = vld [vmem:[%s5 + $0x1c0] sm:$0xff]
    %v2327 = vld [vmem:[%s5 + $0x1c8] sm:$0xff]
    %v2328 = vld [vmem:[%s5 + $0x1d0] sm:$0xff]
    %v2329 = vld [vmem:[%s5 + $0x1d8] sm:$0xff]
    %v2330 = vld [vmem:[%s5 + $0x1e0] sm:$0xff]
    %v2331 = vld [vmem:[%s5 + $0x1e8] sm:$0xff]
    %v2332 = vld [vmem:[%s5 + $0x1f0] sm:$0xff]
    %v2333 = vld [vmem:[%s5 + $0x1f8] sm:$0xff]
    %v2334 = vld [vmem:[%s5 + $0x200] sm:$0xff]
    %v2335 = vld [vmem:[%s5 + $0x208] sm:$0xff]
    %v2336 = vld [vmem:[%s5 + $0x210] sm:$0xff]
    %v2337 = vld [vmem:[%s5 + $0x218] sm:$0xff]
    %v2338 = vld [vmem:[%s5 + $0x220] sm:$0xff]
    %v2339 = vld [vmem:[%s5 + $0x228] sm:$0xff]
    %v2340 = vld [vmem:[%s5 + $0x230] sm:$0xff]
    %v2341 = vld [vmem:[%s5 + $0x238] sm:$0xff]
    %v2342 = vld [vmem:[%s5 + $0x240] sm:$0xff]
    %v2343 = vld [vmem:[%s5 + $0x248] sm:$0xff]
    %v2344 = vld [vmem:[%s5 + $0x250] sm:$0xff]
    %v2345 = vld [vmem:[%s5 + $0x258] sm:$0xff]
    %v2346 = vld [vmem:[%s5 + $0x260] sm:$0xff]
    %v2347 = vld [vmem:[%s5 + $0x268] sm:$0xff]
    %v2348 = vld [vmem:[%s5 + $0x270] sm:$0xff]
    %v2349 = vld [vmem:[%s5 + $0x278] sm:$0xff]
    %v2350 = vld [vmem:[%s5 + $0x280] sm:$0xff]
    %v2351 = vld [vmem:[%s5 + $0x288] sm:$0xff]
    %v2352 = vld [vmem:[%s5 + $0x290] sm:$0xff]
    %v2353 = vld [vmem:[%s5 + $0x298] sm:$0xff]
    %v2354 = vld [vmem:[%s5 + $0x2a0] sm:$0xff]
    %v2355 = vld [vmem:[%s5 + $0x2a8] sm:$0xff]
    %v2356 = vld [vmem:[%s5 + $0x2b0] sm:$0xff]
    %v2357 = vld [vmem:[%s5 + $0x2b8] sm:$0xff]
    %v2358 = vld [vmem:[%s5 + $0x2c0] sm:$0xff]
    %v2359 = vld [vmem:[%s5 + $0x2c8] sm:$0xff]
    %v2360 = vld [vmem:[%s5 + $0x2d0] sm:$0xff]
    %v2361 = vld [vmem:[%s5 + $0x2d8] sm:$0xff]
    %v2362 = vld [vmem:[%s5 + $0x2e0] sm:$0xff]
    %v2363 = vld [vmem:[%s5 + $0x2e8] sm:$0xff]
    %v2364 = vld [vmem:[%s5 + $0x2f0] sm:$0xff]
    %v2365 = vld [vmem:[%s5 + $0x2f8] sm:$0xff]
    %v2366 = vld [vmem:[%s5 + $0x300] sm:$0xff]
    %v2367 = vld [vmem:[%s5 + $0x308] sm:$0xff]
    %v2368 = vld [vmem:[%s5 + $0x310] sm:$0xff]
    %v2369 = vld [vmem:[%s5 + $0x318] sm:$0xff]
    %v2370 = vld [vmem:[%s5 + $0x320] sm:$0xff]
    %v2371 = vld [vmem:[%s5 + $0x328] sm:$0xff]
    %v2372 = vld [vmem:[%s5 + $0x330] sm:$0xff]
    %v2373 = vld [vmem:[%s5 + $0x338] sm:$0xff]
    %v2374 = vld [vmem:[%s5 + $0x340] sm:$0xff]
    %v2375 = vld [vmem:[%s5 + $0x348] sm:$0xff]
    %v2376 = vld [vmem:[%s5 + $0x350] sm:$0xff]
    %v2377 = vld [vmem:[%s5 + $0x358] sm:$0xff]
    %v2378 = vld [vmem:[%s5 + $0x360] sm:$0xff]
    %v2379 = vld [vmem:[%s5 + $0x368] sm:$0xff]
    %v2380 = vld [vmem:[%s5 + $0x370] sm:$0xff]
    %v2381 = vld [vmem:[%s5 + $0x378] sm:$0xff]
    %v2382 = vld [vmem:[%s5 + $0x380] sm:$0xff]
    %v2383 = vld [vmem:[%s5 + $0x388] sm:$0xff]
    %v2384 = vld [vmem:[%s5 + $0x390] sm:$0xff]
    %v2385 = vld [vmem:[%s5 + $0x398] sm:$0xff]
    %v2386 = vld [vmem:[%s5 + $0x3a0] sm:$0xff]
    %v2387 = vld [vmem:[%s5 + $0x3a8] sm:$0xff]
    %v2388 = vld [vmem:[%s5 + $0x3b0] sm:$0xff]
    %v2389 = vld [vmem:[%s5 + $0x3b8] sm:$0xff]
    %v2390 = vld [vmem:[%s5 + $0x3c0] sm:$0xff]
    %v2391 = vld [vmem:[%s5 + $0x3c8] sm:$0xff]
    %v2392 = vld [vmem:[%s5 + $0x3d0] sm:$0xff]
    %v2393 = vld [vmem:[%s5 + $0x3d8] sm:$0xff]
    %v2394 = vld [vmem:[%s5 + $0x3e0] sm:$0xff]
    %v2395 = vld [vmem:[%s5 + $0x3e8] sm:$0xff]
    %v2396 = vld [vmem:[%s5 + $0x3f0] sm:$0xff]
    %v2397 = vld [vmem:[%s5 + $0x3f8] sm:$0xff]
    %v2398 = vld [vmem:[%s6] sm:$0xff]
    %v2399 = vld [vmem:[%s6 + $0x8] sm:$0xff]
    %v2400 = vld [vmem:[%s6 + $0x10] sm:$0xff]
    %v2401 = vld [vmem:[%s6 + $0x18] sm:$0xff]
    %v2402 = vld [vmem:[%s6 + $0x20] sm:$0xff]
    %v2403 = vld [vmem:[%s6 + $0x28] sm:$0xff]
    %v2404 = vld [vmem:[%s6 + $0x30] sm:$0xff]
    %v2405 = vld [vmem:[%s6 + $0x38] sm:$0xff]
    %v2406 = vld [vmem:[%s6 + $0x40] sm:$0xff]
    %v2407 = vld [vmem:[%s6 + $0x48] sm:$0xff]
    %v2408 = vld [vmem:[%s6 + $0x50] sm:$0xff]
    %v2409 = vld [vmem:[%s6 + $0x58] sm:$0xff]
    %v2410 = vld [vmem:[%s6 + $0x60] sm:$0xff]
    %v2411 = vld [vmem:[%s6 + $0x68] sm:$0xff]
    %v2412 = vld [vmem:[%s6 + $0x70] sm:$0xff]
    %v2413 = vld [vmem:[%s6 + $0x78] sm:$0xff]
    %v2414 = vld [vmem:[%s6 + $0x80] sm:$0xff]
    %v2415 = vld [vmem:[%s6 + $0x88] sm:$0xff]
    %v2416 = vld [vmem:[%s6 + $0x90] sm:$0xff]
    %v2417 = vld [vmem:[%s6 + $0x98] sm:$0xff]
    %v2418 = vld [vmem:[%s6 + $0xa0] sm:$0xff]
    %v2419 = vld [vmem:[%s6 + $0xa8] sm:$0xff]
    %v2420 = vld [vmem:[%s6 + $0xb0] sm:$0xff]
    %v2421 = vld [vmem:[%s6 + $0xb8] sm:$0xff]
    %v2422 = vld [vmem:[%s6 + $0xc0] sm:$0xff]
    %v2423 = vld [vmem:[%s6 + $0xc8] sm:$0xff]
    %v2424 = vld [vmem:[%s6 + $0xd0] sm:$0xff]
    %v2425 = vld [vmem:[%s6 + $0xd8] sm:$0xff]
    %v2426 = vld [vmem:[%s6 + $0xe0] sm:$0xff]
    %v2427 = vld [vmem:[%s6 + $0xe8] sm:$0xff]
    %v2428 = vld [vmem:[%s6 + $0xf0] sm:$0xff]
    %v2429 = vld [vmem:[%s6 + $0xf8] sm:$0xff]
    %v2430 = vld [vmem:[%s6 + $0x100] sm:$0xff]
    %v2431 = vld [vmem:[%s6 + $0x108] sm:$0xff]
    %v2432 = vld [vmem:[%s6 + $0x110] sm:$0xff]
    %v2433 = vld [vmem:[%s6 + $0x118] sm:$0xff]
    %v2434 = vld [vmem:[%s6 + $0x120] sm:$0xff]
    %v2435 = vld [vmem:[%s6 + $0x128] sm:$0xff]
    %v2436 = vld [vmem:[%s6 + $0x130] sm:$0xff]
    %v2437 = vld [vmem:[%s6 + $0x138] sm:$0xff]
    %v2438 = vld [vmem:[%s6 + $0x140] sm:$0xff]
    %v2439 = vld [vmem:[%s6 + $0x148] sm:$0xff]
    %v2440 = vld [vmem:[%s6 + $0x150] sm:$0xff]
    %v2441 = vld [vmem:[%s6 + $0x158] sm:$0xff]
    %v2442 = vld [vmem:[%s6 + $0x160] sm:$0xff]
    %v2443 = vld [vmem:[%s6 + $0x168] sm:$0xff]
    %v2444 = vld [vmem:[%s6 + $0x170] sm:$0xff]
    %v2445 = vld [vmem:[%s6 + $0x178] sm:$0xff]
    %v2446 = vld [vmem:[%s6 + $0x180] sm:$0xff]
    %v2447 = vld [vmem:[%s6 + $0x188] sm:$0xff]
    %v2448 = vld [vmem:[%s6 + $0x190] sm:$0xff]
    %v2449 = vld [vmem:[%s6 + $0x198] sm:$0xff]
    %v2450 = vld [vmem:[%s6 + $0x1a0] sm:$0xff]
    %v2451 = vld [vmem:[%s6 + $0x1a8] sm:$0xff]
    %v2452 = vld [vmem:[%s6 + $0x1b0] sm:$0xff]
    %v2453 = vld [vmem:[%s6 + $0x1b8] sm:$0xff]
    %v2454 = vld [vmem:[%s6 + $0x1c0] sm:$0xff]
    %v2455 = vld [vmem:[%s6 + $0x1c8] sm:$0xff]
    %v2456 = vld [vmem:[%s6 + $0x1d0] sm:$0xff]
    %v2457 = vld [vmem:[%s6 + $0x1d8] sm:$0xff]
    %v2458 = vld [vmem:[%s6 + $0x1e0] sm:$0xff]
    %v2459 = vld [vmem:[%s6 + $0x1e8] sm:$0xff]
    %v2460 = vld [vmem:[%s6 + $0x1f0] sm:$0xff]
    %v2461 = vld [vmem:[%s6 + $0x1f8] sm:$0xff]
    %2463 = vset.pattern.permute.xlu0 0
    %2464 = vperm.xlu0 %2463, %v2398
    %v2465 = vpop.permute.xlu0 %2464
    %2468 = vset.pattern.permute.xlu0 0
    %2469 = vperm.xlu0 %2468, %v2399
    %v2470 = vpop.permute.xlu0 %2469
    %2473 = vset.pattern.permute.xlu0 0
    %2474 = vperm.xlu0 %2473, %v2400
    %v2475 = vpop.permute.xlu0 %2474
    %2478 = vset.pattern.permute.xlu0 0
    %2479 = vperm.xlu0 %2478, %v2401
    %v2480 = vpop.permute.xlu0 %2479
    %2483 = vset.pattern.permute.xlu0 0
    %2484 = vperm.xlu0 %2483, %v2402
    %v2485 = vpop.permute.xlu0 %2484
    %2488 = vset.pattern.permute.xlu0 0
    %2489 = vperm.xlu0 %2488, %v2403
    %v2490 = vpop.permute.xlu0 %2489
    %2493 = vset.pattern.permute.xlu0 0
    %2494 = vperm.xlu0 %2493, %v2404
    %v2495 = vpop.permute.xlu0 %2494
    %2498 = vset.pattern.permute.xlu0 0
    %2499 = vperm.xlu0 %2498, %v2405
    %v2500 = vpop.permute.xlu0 %2499
    %2503 = vset.pattern.permute.xlu0 0
    %2504 = vperm.xlu0 %2503, %v2406
    %v2505 = vpop.permute.xlu0 %2504
    %2508 = vset.pattern.permute.xlu0 0
    %2509 = vperm.xlu0 %2508, %v2407
    %v2510 = vpop.permute.xlu0 %2509
    %2513 = vset.pattern.permute.xlu0 0
    %2514 = vperm.xlu0 %2513, %v2408
    %v2515 = vpop.permute.xlu0 %2514
    %2518 = vset.pattern.permute.xlu0 0
    %2519 = vperm.xlu0 %2518, %v2409
    %v2520 = vpop.permute.xlu0 %2519
    %2523 = vset.pattern.permute.xlu0 0
    %2524 = vperm.xlu0 %2523, %v2410
    %v2525 = vpop.permute.xlu0 %2524
    %2528 = vset.pattern.permute.xlu0 0
    %2529 = vperm.xlu0 %2528, %v2411
    %v2530 = vpop.permute.xlu0 %2529
    %2533 = vset.pattern.permute.xlu0 0
    %2534 = vperm.xlu0 %2533, %v2412
    %v2535 = vpop.permute.xlu0 %2534
    %2538 = vset.pattern.permute.xlu0 0
    %2539 = vperm.xlu0 %2538, %v2413
    %v2540 = vpop.permute.xlu0 %2539
    %2543 = vset.pattern.permute.xlu0 0
    %2544 = vperm.xlu0 %2543, %v2414
    %v2545 = vpop.permute.xlu0 %2544
    %2548 = vset.pattern.permute.xlu0 0
    %2549 = vperm.xlu0 %2548, %v2415
    %v2550 = vpop.permute.xlu0 %2549
    %2553 = vset.pattern.permute.xlu0 0
    %2554 = vperm.xlu0 %2553, %v2416
    %v2555 = vpop.permute.xlu0 %2554
    %2558 = vset.pattern.permute.xlu0 0
    %2559 = vperm.xlu0 %2558, %v2417
    %v2560 = vpop.permute.xlu0 %2559
    %2563 = vset.pattern.permute.xlu0 0
    %2564 = vperm.xlu0 %2563, %v2418
    %v2565 = vpop.permute.xlu0 %2564
    %2568 = vset.pattern.permute.xlu0 0
    %2569 = vperm.xlu0 %2568, %v2419
    %v2570 = vpop.permute.xlu0 %2569
    %2573 = vset.pattern.permute.xlu0 0
    %2574 = vperm.xlu0 %2573, %v2420
    %v2575 = vpop.permute.xlu0 %2574
    %2578 = vset.pattern.permute.xlu0 0
    %2579 = vperm.xlu0 %2578, %v2421
    %v2580 = vpop.permute.xlu0 %2579
    %2583 = vset.pattern.permute.xlu0 0
    %2584 = vperm.xlu0 %2583, %v2422
    %v2585 = vpop.permute.xlu0 %2584
    %2588 = vset.pattern.permute.xlu0 0
    %2589 = vperm.xlu0 %2588, %v2423
    %v2590 = vpop.permute.xlu0 %2589
    %2593 = vset.pattern.permute.xlu0 0
    %2594 = vperm.xlu0 %2593, %v2424
    %v2595 = vpop.permute.xlu0 %2594
    %2598 = vset.pattern.permute.xlu0 0
    %2599 = vperm.xlu0 %2598, %v2425
    %v2600 = vpop.permute.xlu0 %2599
    %2603 = vset.pattern.permute.xlu0 0
    %2604 = vperm.xlu0 %2603, %v2426
    %v2605 = vpop.permute.xlu0 %2604
    %2608 = vset.pattern.permute.xlu0 0
    %2609 = vperm.xlu0 %2608, %v2427
    %v2610 = vpop.permute.xlu0 %2609
    %2613 = vset.pattern.permute.xlu0 0
    %2614 = vperm.xlu0 %2613, %v2428
    %v2615 = vpop.permute.xlu0 %2614
    %2618 = vset.pattern.permute.xlu0 0
    %2619 = vperm.xlu0 %2618, %v2429
    %v2620 = vpop.permute.xlu0 %2619
    %2623 = vset.pattern.permute.xlu0 0
    %2624 = vperm.xlu0 %2623, %v2430
    %v2625 = vpop.permute.xlu0 %2624
    %2628 = vset.pattern.permute.xlu0 0
    %2629 = vperm.xlu0 %2628, %v2431
    %v2630 = vpop.permute.xlu0 %2629
    %2633 = vset.pattern.permute.xlu0 0
    %2634 = vperm.xlu0 %2633, %v2432
    %v2635 = vpop.permute.xlu0 %2634
    %2638 = vset.pattern.permute.xlu0 0
    %2639 = vperm.xlu0 %2638, %v2433
    %v2640 = vpop.permute.xlu0 %2639
    %2643 = vset.pattern.permute.xlu0 0
    %2644 = vperm.xlu0 %2643, %v2434
    %v2645 = vpop.permute.xlu0 %2644
    %2648 = vset.pattern.permute.xlu0 0
    %2649 = vperm.xlu0 %2648, %v2435
    %v2650 = vpop.permute.xlu0 %2649
    %2653 = vset.pattern.permute.xlu0 0
    %2654 = vperm.xlu0 %2653, %v2436
    %v2655 = vpop.permute.xlu0 %2654
    %2658 = vset.pattern.permute.xlu0 0
    %2659 = vperm.xlu0 %2658, %v2437
    %v2660 = vpop.permute.xlu0 %2659
    %2663 = vset.pattern.permute.xlu0 0
    %2664 = vperm.xlu0 %2663, %v2438
    %v2665 = vpop.permute.xlu0 %2664
    %2668 = vset.pattern.permute.xlu0 0
    %2669 = vperm.xlu0 %2668, %v2439
    %v2670 = vpop.permute.xlu0 %2669
    %2673 = vset.pattern.permute.xlu0 0
    %2674 = vperm.xlu0 %2673, %v2440
    %v2675 = vpop.permute.xlu0 %2674
    %2678 = vset.pattern.permute.xlu0 0
    %2679 = vperm.xlu0 %2678, %v2441
    %v2680 = vpop.permute.xlu0 %2679
    %2683 = vset.pattern.permute.xlu0 0
    %2684 = vperm.xlu0 %2683, %v2442
    %v2685 = vpop.permute.xlu0 %2684
    %2688 = vset.pattern.permute.xlu0 0
    %2689 = vperm.xlu0 %2688, %v2443
    %v2690 = vpop.permute.xlu0 %2689
    %2693 = vset.pattern.permute.xlu0 0
    %2694 = vperm.xlu0 %2693, %v2444
    %v2695 = vpop.permute.xlu0 %2694
    %2698 = vset.pattern.permute.xlu0 0
    %2699 = vperm.xlu0 %2698, %v2445
    %v2700 = vpop.permute.xlu0 %2699
    %2703 = vset.pattern.permute.xlu0 0
    %2704 = vperm.xlu0 %2703, %v2446
    %v2705 = vpop.permute.xlu0 %2704
    %2708 = vset.pattern.permute.xlu0 0
    %2709 = vperm.xlu0 %2708, %v2447
    %v2710 = vpop.permute.xlu0 %2709
    %2713 = vset.pattern.permute.xlu0 0
    %2714 = vperm.xlu0 %2713, %v2448
    %v2715 = vpop.permute.xlu0 %2714
    %2718 = vset.pattern.permute.xlu0 0
    %2719 = vperm.xlu0 %2718, %v2449
    %v2720 = vpop.permute.xlu0 %2719
    %2723 = vset.pattern.permute.xlu0 0
    %2724 = vperm.xlu0 %2723, %v2450
    %v2725 = vpop.permute.xlu0 %2724
    %2728 = vset.pattern.permute.xlu0 0
    %2729 = vperm.xlu0 %2728, %v2451
    %v2730 = vpop.permute.xlu0 %2729
    %2733 = vset.pattern.permute.xlu0 0
    %2734 = vperm.xlu0 %2733, %v2452
    %v2735 = vpop.permute.xlu0 %2734
    %2738 = vset.pattern.permute.xlu0 0
    %2739 = vperm.xlu0 %2738, %v2453
    %v2740 = vpop.permute.xlu0 %2739
    %2743 = vset.pattern.permute.xlu0 0
    %2744 = vperm.xlu0 %2743, %v2454
    %v2745 = vpop.permute.xlu0 %2744
    %2748 = vset.pattern.permute.xlu0 0
    %2749 = vperm.xlu0 %2748, %v2455
    %v2750 = vpop.permute.xlu0 %2749
    %2753 = vset.pattern.permute.xlu0 0
    %2754 = vperm.xlu0 %2753, %v2456
    %v2755 = vpop.permute.xlu0 %2754
    %2758 = vset.pattern.permute.xlu0 0
    %2759 = vperm.xlu0 %2758, %v2457
    %v2760 = vpop.permute.xlu0 %2759
    %2763 = vset.pattern.permute.xlu0 0
    %2764 = vperm.xlu0 %2763, %v2458
    %v2765 = vpop.permute.xlu0 %2764
    %2768 = vset.pattern.permute.xlu0 0
    %2769 = vperm.xlu0 %2768, %v2459
    %v2770 = vpop.permute.xlu0 %2769
    %2773 = vset.pattern.permute.xlu0 0
    %2774 = vperm.xlu0 %2773, %v2460
    %v2775 = vpop.permute.xlu0 %2774
    %2778 = vset.pattern.permute.xlu0 0
    %2779 = vperm.xlu0 %2778, %v2461
    %v2780 = vpop.permute.xlu0 %2779
    %v2910 = vunpack.c.l.b16 %v2270
    %v2911 = vunpack.c.h.b16 %v2270
    %v2912 = vunpack.c.l.b16 %v2271
    %v2913 = vunpack.c.h.b16 %v2271
    %v2914 = vunpack.c.l.b16 %v2272
    %v2915 = vunpack.c.h.b16 %v2272
    %v2916 = vunpack.c.l.b16 %v2273
    %v2917 = vunpack.c.h.b16 %v2273
    %v2918 = vunpack.c.l.b16 %v2274
    %v2919 = vunpack.c.h.b16 %v2274
    %v2920 = vunpack.c.l.b16 %v2275
    %v2921 = vunpack.c.h.b16 %v2275
    %v2922 = vunpack.c.l.b16 %v2276
    %v2923 = vunpack.c.h.b16 %v2276
    %v2924 = vunpack.c.l.b16 %v2277
    %v2925 = vunpack.c.h.b16 %v2277
    %v2926 = vunpack.c.l.b16 %v2278
    %v2927 = vunpack.c.h.b16 %v2278
    %v2928 = vunpack.c.l.b16 %v2279
    %v2929 = vunpack.c.h.b16 %v2279
    %v2930 = vunpack.c.l.b16 %v2280
    %v2931 = vunpack.c.h.b16 %v2280
    %v2932 = vunpack.c.l.b16 %v2281
    %v2933 = vunpack.c.h.b16 %v2281
    %v2934 = vunpack.c.l.b16 %v2282
    %v2935 = vunpack.c.h.b16 %v2282
    %v2936 = vunpack.c.l.b16 %v2283
    %v2937 = vunpack.c.h.b16 %v2283
    %v2938 = vunpack.c.l.b16 %v2284
    %v2939 = vunpack.c.h.b16 %v2284
    %v2940 = vunpack.c.l.b16 %v2285
    %v2941 = vunpack.c.h.b16 %v2285
    %v2942 = vunpack.c.l.b16 %v2286
    %v2943 = vunpack.c.h.b16 %v2286
    %v2944 = vunpack.c.l.b16 %v2287
    %v2945 = vunpack.c.h.b16 %v2287
    %v2946 = vunpack.c.l.b16 %v2288
    %v2947 = vunpack.c.h.b16 %v2288
    %v2948 = vunpack.c.l.b16 %v2289
    %v2949 = vunpack.c.h.b16 %v2289
    %v2950 = vunpack.c.l.b16 %v2290
    %v2951 = vunpack.c.h.b16 %v2290
    %v2952 = vunpack.c.l.b16 %v2291
    %v2953 = vunpack.c.h.b16 %v2291
    %v2954 = vunpack.c.l.b16 %v2292
    %v2955 = vunpack.c.h.b16 %v2292
    %v2956 = vunpack.c.l.b16 %v2293
    %v2957 = vunpack.c.h.b16 %v2293
    %v2958 = vunpack.c.l.b16 %v2294
    %v2959 = vunpack.c.h.b16 %v2294
    %v2960 = vunpack.c.l.b16 %v2295
    %v2961 = vunpack.c.h.b16 %v2295
    %v2962 = vunpack.c.l.b16 %v2296
    %v2963 = vunpack.c.h.b16 %v2296
    %v2964 = vunpack.c.l.b16 %v2297
    %v2965 = vunpack.c.h.b16 %v2297
    %v2966 = vunpack.c.l.b16 %v2298
    %v2967 = vunpack.c.h.b16 %v2298
    %v2968 = vunpack.c.l.b16 %v2299
    %v2969 = vunpack.c.h.b16 %v2299
    %v2970 = vunpack.c.l.b16 %v2300
    %v2971 = vunpack.c.h.b16 %v2300
    %v2972 = vunpack.c.l.b16 %v2301
    %v2973 = vunpack.c.h.b16 %v2301
    %v2974 = vunpack.c.l.b16 %v2302
    %v2975 = vunpack.c.h.b16 %v2302
    %v2976 = vunpack.c.l.b16 %v2303
    %v2977 = vunpack.c.h.b16 %v2303
    %v2978 = vunpack.c.l.b16 %v2304
    %v2979 = vunpack.c.h.b16 %v2304
    %v2980 = vunpack.c.l.b16 %v2305
    %v2981 = vunpack.c.h.b16 %v2305
    %v2982 = vunpack.c.l.b16 %v2306
    %v2983 = vunpack.c.h.b16 %v2306
    %v2984 = vunpack.c.l.b16 %v2307
    %v2985 = vunpack.c.h.b16 %v2307
    %v2986 = vunpack.c.l.b16 %v2308
    %v2987 = vunpack.c.h.b16 %v2308
    %v2988 = vunpack.c.l.b16 %v2309
    %v2989 = vunpack.c.h.b16 %v2309
    %v2990 = vunpack.c.l.b16 %v2310
    %v2991 = vunpack.c.h.b16 %v2310
    %v2992 = vunpack.c.l.b16 %v2311
    %v2993 = vunpack.c.h.b16 %v2311
    %v2994 = vunpack.c.l.b16 %v2312
    %v2995 = vunpack.c.h.b16 %v2312
    %v2996 = vunpack.c.l.b16 %v2313
    %v2997 = vunpack.c.h.b16 %v2313
    %v2998 = vunpack.c.l.b16 %v2314
    %v2999 = vunpack.c.h.b16 %v2314
    %v3000 = vunpack.c.l.b16 %v2315
    %v3001 = vunpack.c.h.b16 %v2315
    %v3002 = vunpack.c.l.b16 %v2316
    %v3003 = vunpack.c.h.b16 %v2316
    %v3004 = vunpack.c.l.b16 %v2317
    %v3005 = vunpack.c.h.b16 %v2317
    %v3006 = vunpack.c.l.b16 %v2318
    %v3007 = vunpack.c.h.b16 %v2318
    %v3008 = vunpack.c.l.b16 %v2319
    %v3009 = vunpack.c.h.b16 %v2319
    %v3010 = vunpack.c.l.b16 %v2320
    %v3011 = vunpack.c.h.b16 %v2320
    %v3012 = vunpack.c.l.b16 %v2321
    %v3013 = vunpack.c.h.b16 %v2321
    %v3014 = vunpack.c.l.b16 %v2322
    %v3015 = vunpack.c.h.b16 %v2322
    %v3016 = vunpack.c.l.b16 %v2323
    %v3017 = vunpack.c.h.b16 %v2323
    %v3018 = vunpack.c.l.b16 %v2324
    %v3019 = vunpack.c.h.b16 %v2324
    %v3020 = vunpack.c.l.b16 %v2325
    %v3021 = vunpack.c.h.b16 %v2325
    %v3022 = vunpack.c.l.b16 %v2326
    %v3023 = vunpack.c.h.b16 %v2326
    %v3024 = vunpack.c.l.b16 %v2327
    %v3025 = vunpack.c.h.b16 %v2327
    %v3026 = vunpack.c.l.b16 %v2328
    %v3027 = vunpack.c.h.b16 %v2328
    %v3028 = vunpack.c.l.b16 %v2329
    %v3029 = vunpack.c.h.b16 %v2329
    %v3030 = vunpack.c.l.b16 %v2330
    %v3031 = vunpack.c.h.b16 %v2330
    %v3032 = vunpack.c.l.b16 %v2331
    %v3033 = vunpack.c.h.b16 %v2331
    %v3034 = vunpack.c.l.b16 %v2332
    %v3035 = vunpack.c.h.b16 %v2332
    %v3036 = vunpack.c.l.b16 %v2333
    %v3037 = vunpack.c.h.b16 %v2333
    %v3038 = vunpack.c.l.b16 %v2334
    %v3039 = vunpack.c.h.b16 %v2334
    %v3040 = vunpack.c.l.b16 %v2335
    %v3041 = vunpack.c.h.b16 %v2335
    %v3042 = vunpack.c.l.b16 %v2336
    %v3043 = vunpack.c.h.b16 %v2336
    %v3044 = vunpack.c.l.b16 %v2337
    %v3045 = vunpack.c.h.b16 %v2337
    %v3046 = vunpack.c.l.b16 %v2338
    %v3047 = vunpack.c.h.b16 %v2338
    %v3048 = vunpack.c.l.b16 %v2339
    %v3049 = vunpack.c.h.b16 %v2339
    %v3050 = vunpack.c.l.b16 %v2340
    %v3051 = vunpack.c.h.b16 %v2340
    %v3052 = vunpack.c.l.b16 %v2341
    %v3053 = vunpack.c.h.b16 %v2341
    %v3054 = vunpack.c.l.b16 %v2342
    %v3055 = vunpack.c.h.b16 %v2342
    %v3056 = vunpack.c.l.b16 %v2343
    %v3057 = vunpack.c.h.b16 %v2343
    %v3058 = vunpack.c.l.b16 %v2344
    %v3059 = vunpack.c.h.b16 %v2344
    %v3060 = vunpack.c.l.b16 %v2345
    %v3061 = vunpack.c.h.b16 %v2345
    %v3062 = vunpack.c.l.b16 %v2346
    %v3063 = vunpack.c.h.b16 %v2346
    %v3064 = vunpack.c.l.b16 %v2347
    %v3065 = vunpack.c.h.b16 %v2347
    %v3066 = vunpack.c.l.b16 %v2348
    %v3067 = vunpack.c.h.b16 %v2348
    %v3068 = vunpack.c.l.b16 %v2349
    %v3069 = vunpack.c.h.b16 %v2349
    %v3070 = vunpack.c.l.b16 %v2350
    %v3071 = vunpack.c.h.b16 %v2350
    %v3072 = vunpack.c.l.b16 %v2351
    %v3073 = vunpack.c.h.b16 %v2351
    %v3074 = vunpack.c.l.b16 %v2352
    %v3075 = vunpack.c.h.b16 %v2352
    %v3076 = vunpack.c.l.b16 %v2353
    %v3077 = vunpack.c.h.b16 %v2353
    %v3078 = vunpack.c.l.b16 %v2354
    %v3079 = vunpack.c.h.b16 %v2354
    %v3080 = vunpack.c.l.b16 %v2355
    %v3081 = vunpack.c.h.b16 %v2355
    %v3082 = vunpack.c.l.b16 %v2356
    %v3083 = vunpack.c.h.b16 %v2356
    %v3084 = vunpack.c.l.b16 %v2357
    %v3085 = vunpack.c.h.b16 %v2357
    %v3086 = vunpack.c.l.b16 %v2358
    %v3087 = vunpack.c.h.b16 %v2358
    %v3088 = vunpack.c.l.b16 %v2359
    %v3089 = vunpack.c.h.b16 %v2359
    %v3090 = vunpack.c.l.b16 %v2360
    %v3091 = vunpack.c.h.b16 %v2360
    %v3092 = vunpack.c.l.b16 %v2361
    %v3093 = vunpack.c.h.b16 %v2361
    %v3094 = vunpack.c.l.b16 %v2362
    %v3095 = vunpack.c.h.b16 %v2362
    %v3096 = vunpack.c.l.b16 %v2363
    %v3097 = vunpack.c.h.b16 %v2363
    %v3098 = vunpack.c.l.b16 %v2364
    %v3099 = vunpack.c.h.b16 %v2364
    %v3100 = vunpack.c.l.b16 %v2365
    %v3101 = vunpack.c.h.b16 %v2365
    %v3102 = vunpack.c.l.b16 %v2366
    %v3103 = vunpack.c.h.b16 %v2366
    %v3104 = vunpack.c.l.b16 %v2367
    %v3105 = vunpack.c.h.b16 %v2367
    %v3106 = vunpack.c.l.b16 %v2368
    %v3107 = vunpack.c.h.b16 %v2368
    %v3108 = vunpack.c.l.b16 %v2369
    %v3109 = vunpack.c.h.b16 %v2369
    %v3110 = vunpack.c.l.b16 %v2370
    %v3111 = vunpack.c.h.b16 %v2370
    %v3112 = vunpack.c.l.b16 %v2371
    %v3113 = vunpack.c.h.b16 %v2371
    %v3114 = vunpack.c.l.b16 %v2372
    %v3115 = vunpack.c.h.b16 %v2372
    %v3116 = vunpack.c.l.b16 %v2373
    %v3117 = vunpack.c.h.b16 %v2373
    %v3118 = vunpack.c.l.b16 %v2374
    %v3119 = vunpack.c.h.b16 %v2374
    %v3120 = vunpack.c.l.b16 %v2375
    %v3121 = vunpack.c.h.b16 %v2375
    %v3122 = vunpack.c.l.b16 %v2376
    %v3123 = vunpack.c.h.b16 %v2376
    %v3124 = vunpack.c.l.b16 %v2377
    %v3125 = vunpack.c.h.b16 %v2377
    %v3126 = vunpack.c.l.b16 %v2378
    %v3127 = vunpack.c.h.b16 %v2378
    %v3128 = vunpack.c.l.b16 %v2379
    %v3129 = vunpack.c.h.b16 %v2379
    %v3130 = vunpack.c.l.b16 %v2380
    %v3131 = vunpack.c.h.b16 %v2380
    %v3132 = vunpack.c.l.b16 %v2381
    %v3133 = vunpack.c.h.b16 %v2381
    %v3134 = vunpack.c.l.b16 %v2382
    %v3135 = vunpack.c.h.b16 %v2382
    %v3136 = vunpack.c.l.b16 %v2383
    %v3137 = vunpack.c.h.b16 %v2383
    %v3138 = vunpack.c.l.b16 %v2384
    %v3139 = vunpack.c.h.b16 %v2384
    %v3140 = vunpack.c.l.b16 %v2385
    %v3141 = vunpack.c.h.b16 %v2385
    %v3142 = vunpack.c.l.b16 %v2386
    %v3143 = vunpack.c.h.b16 %v2386
    %v3144 = vunpack.c.l.b16 %v2387
    %v3145 = vunpack.c.h.b16 %v2387
    %v3146 = vunpack.c.l.b16 %v2388
    %v3147 = vunpack.c.h.b16 %v2388
    %v3148 = vunpack.c.l.b16 %v2389
    %v3149 = vunpack.c.h.b16 %v2389
    %v3150 = vunpack.c.l.b16 %v2390
    %v3151 = vunpack.c.h.b16 %v2390
    %v3152 = vunpack.c.l.b16 %v2391
    %v3153 = vunpack.c.h.b16 %v2391
    %v3154 = vunpack.c.l.b16 %v2392
    %v3155 = vunpack.c.h.b16 %v2392
    %v3156 = vunpack.c.l.b16 %v2393
    %v3157 = vunpack.c.h.b16 %v2393
    %v3158 = vunpack.c.l.b16 %v2394
    %v3159 = vunpack.c.h.b16 %v2394
    %v3160 = vunpack.c.l.b16 %v2395
    %v3161 = vunpack.c.h.b16 %v2395
    %v3162 = vunpack.c.l.b16 %v2396
    %v3163 = vunpack.c.h.b16 %v2396
    %v3164 = vunpack.c.l.b16 %v2397
    %v3165 = vunpack.c.h.b16 %v2397
    %v3166 = vpack.c.b16 %v2914, %v2910
    %v3167 = vpack.c.b16 %v2915, %v2911
    %v3168 = vpack.c.b16 %v2916, %v2912
    %v3169 = vpack.c.b16 %v2917, %v2913
    %v3170 = vpack.c.b16 %v2922, %v2918
    %v3171 = vpack.c.b16 %v2923, %v2919
    %v3172 = vpack.c.b16 %v2924, %v2920
    %v3173 = vpack.c.b16 %v2925, %v2921
    %v3174 = vpack.c.b16 %v2930, %v2926
    %v3175 = vpack.c.b16 %v2931, %v2927
    %v3176 = vpack.c.b16 %v2932, %v2928
    %v3177 = vpack.c.b16 %v2933, %v2929
    %v3178 = vpack.c.b16 %v2938, %v2934
    %v3179 = vpack.c.b16 %v2939, %v2935
    %v3180 = vpack.c.b16 %v2940, %v2936
    %v3181 = vpack.c.b16 %v2941, %v2937
    %v3182 = vpack.c.b16 %v2946, %v2942
    %v3183 = vpack.c.b16 %v2947, %v2943
    %v3184 = vpack.c.b16 %v2948, %v2944
    %v3185 = vpack.c.b16 %v2949, %v2945
    %v3186 = vpack.c.b16 %v2954, %v2950
    %v3187 = vpack.c.b16 %v2955, %v2951
    %v3188 = vpack.c.b16 %v2956, %v2952
    %v3189 = vpack.c.b16 %v2957, %v2953
    %v3190 = vpack.c.b16 %v2962, %v2958
    %v3191 = vpack.c.b16 %v2963, %v2959
    %v3192 = vpack.c.b16 %v2964, %v2960
    %v3193 = vpack.c.b16 %v2965, %v2961
    %v3194 = vpack.c.b16 %v2970, %v2966
    %v3195 = vpack.c.b16 %v2971, %v2967
    %v3196 = vpack.c.b16 %v2972, %v2968
    %v3197 = vpack.c.b16 %v2973, %v2969
    %v3198 = vpack.c.b16 %v2978, %v2974
    %v3199 = vpack.c.b16 %v2979, %v2975
    %v3200 = vpack.c.b16 %v2980, %v2976
    %v3201 = vpack.c.b16 %v2981, %v2977
    %v3202 = vpack.c.b16 %v2986, %v2982
    %v3203 = vpack.c.b16 %v2987, %v2983
    %v3204 = vpack.c.b16 %v2988, %v2984
    %v3205 = vpack.c.b16 %v2989, %v2985
    %v3206 = vpack.c.b16 %v2994, %v2990
    %v3207 = vpack.c.b16 %v2995, %v2991
    %v3208 = vpack.c.b16 %v2996, %v2992
    %v3209 = vpack.c.b16 %v2997, %v2993
    %v3210 = vpack.c.b16 %v3002, %v2998
    %v3211 = vpack.c.b16 %v3003, %v2999
    %v3212 = vpack.c.b16 %v3004, %v3000
    %v3213 = vpack.c.b16 %v3005, %v3001
    %v3214 = vpack.c.b16 %v3010, %v3006
    %v3215 = vpack.c.b16 %v3011, %v3007
    %v3216 = vpack.c.b16 %v3012, %v3008
    %v3217 = vpack.c.b16 %v3013, %v3009
    %v3218 = vpack.c.b16 %v3018, %v3014
    %v3219 = vpack.c.b16 %v3019, %v3015
    %v3220 = vpack.c.b16 %v3020, %v3016
    %v3221 = vpack.c.b16 %v3021, %v3017
    %v3222 = vpack.c.b16 %v3026, %v3022
    %v3223 = vpack.c.b16 %v3027, %v3023
    %v3224 = vpack.c.b16 %v3028, %v3024
    %v3225 = vpack.c.b16 %v3029, %v3025
    %v3226 = vpack.c.b16 %v3034, %v3030
    %v3227 = vpack.c.b16 %v3035, %v3031
    %v3228 = vpack.c.b16 %v3036, %v3032
    %v3229 = vpack.c.b16 %v3037, %v3033
    %v3230 = vpack.c.b16 %v3042, %v3038
    %v3231 = vpack.c.b16 %v3043, %v3039
    %v3232 = vpack.c.b16 %v3044, %v3040
    %v3233 = vpack.c.b16 %v3045, %v3041
    %v3234 = vpack.c.b16 %v3050, %v3046
    %v3235 = vpack.c.b16 %v3051, %v3047
    %v3236 = vpack.c.b16 %v3052, %v3048
    %v3237 = vpack.c.b16 %v3053, %v3049
    %v3238 = vpack.c.b16 %v3058, %v3054
    %v3239 = vpack.c.b16 %v3059, %v3055
    %v3240 = vpack.c.b16 %v3060, %v3056
    %v3241 = vpack.c.b16 %v3061, %v3057
    %v3242 = vpack.c.b16 %v3066, %v3062
    %v3243 = vpack.c.b16 %v3067, %v3063
    %v3244 = vpack.c.b16 %v3068, %v3064
    %v3245 = vpack.c.b16 %v3069, %v3065
    %v3246 = vpack.c.b16 %v3074, %v3070
    %v3247 = vpack.c.b16 %v3075, %v3071
    %v3248 = vpack.c.b16 %v3076, %v3072
    %v3249 = vpack.c.b16 %v3077, %v3073
    %v3250 = vpack.c.b16 %v3082, %v3078
    %v3251 = vpack.c.b16 %v3083, %v3079
    %v3252 = vpack.c.b16 %v3084, %v3080
    %v3253 = vpack.c.b16 %v3085, %v3081
    %v3254 = vpack.c.b16 %v3090, %v3086
    %v3255 = vpack.c.b16 %v3091, %v3087
    %v3256 = vpack.c.b16 %v3092, %v3088
    %v3257 = vpack.c.b16 %v3093, %v3089
    %v3258 = vpack.c.b16 %v3098, %v3094
    %v3259 = vpack.c.b16 %v3099, %v3095
    %v3260 = vpack.c.b16 %v3100, %v3096
    %v3261 = vpack.c.b16 %v3101, %v3097
    %v3262 = vpack.c.b16 %v3106, %v3102
    %v3263 = vpack.c.b16 %v3107, %v3103
    %v3264 = vpack.c.b16 %v3108, %v3104
    %v3265 = vpack.c.b16 %v3109, %v3105
    %v3266 = vpack.c.b16 %v3114, %v3110
    %v3267 = vpack.c.b16 %v3115, %v3111
    %v3268 = vpack.c.b16 %v3116, %v3112
    %v3269 = vpack.c.b16 %v3117, %v3113
    %v3270 = vpack.c.b16 %v3122, %v3118
    %v3271 = vpack.c.b16 %v3123, %v3119
    %v3272 = vpack.c.b16 %v3124, %v3120
    %v3273 = vpack.c.b16 %v3125, %v3121
    %v3274 = vpack.c.b16 %v3130, %v3126
    %v3275 = vpack.c.b16 %v3131, %v3127
    %v3276 = vpack.c.b16 %v3132, %v3128
    %v3277 = vpack.c.b16 %v3133, %v3129
    %v3278 = vpack.c.b16 %v3138, %v3134
    %v3279 = vpack.c.b16 %v3139, %v3135
    %v3280 = vpack.c.b16 %v3140, %v3136
    %v3281 = vpack.c.b16 %v3141, %v3137
    %v3282 = vpack.c.b16 %v3146, %v3142
    %v3283 = vpack.c.b16 %v3147, %v3143
    %v3284 = vpack.c.b16 %v3148, %v3144
    %v3285 = vpack.c.b16 %v3149, %v3145
    %v3286 = vpack.c.b16 %v3154, %v3150
    %v3287 = vpack.c.b16 %v3155, %v3151
    %v3288 = vpack.c.b16 %v3156, %v3152
    %v3289 = vpack.c.b16 %v3157, %v3153
    %v3290 = vpack.c.b16 %v3162, %v3158
    %v3291 = vpack.c.b16 %v3163, %v3159
    %v3292 = vpack.c.b16 %v3164, %v3160
    %v3293 = vpack.c.b16 %v3165, %v3161
    %3422 = vmatprep.subr.bf16.mxu0 %v2207
    %3423 = vmatpush1.bf16.msra.mxu0 %v2206
    %3424 = vmatprep.subr.bf16.mxu0 %v2209
    %3425 = vmatpush1.bf16.msra.mxu0 %v2208
    %3426 = vmatprep.subr.bf16.mxu0 %v2211
    %3427 = vmatpush1.bf16.msra.mxu0 %v2210
    %3428 = vmatprep.subr.bf16.mxu0 %v2213
    %3429 = vmatpush1.bf16.msra.mxu0 %v2212
    %3430 = vmatprep.subr.bf16.mxu0 %v2215
    %3431 = vmatpush1.bf16.msra.mxu0 %v2214
    %3432 = vmatprep.subr.bf16.mxu0 %v2217
    %3433 = vmatpush1.bf16.msra.mxu0 %v2216
    %3434 = vmatprep.subr.bf16.mxu0 %v2219
    %3435 = vmatpush1.bf16.msra.mxu0 %v2218
    %3436 = vmatprep.subr.bf16.mxu0 %v2221
    %3437 = vmatpush1.bf16.msra.mxu0 %v2220
    %3438 = vmatprep.subr.bf16.mxu0 %v2223
    %3439 = vmatpush1.bf16.msra.mxu0 %v2222
    %3440 = vmatprep.subr.bf16.mxu0 %v2225
    %3441 = vmatpush1.bf16.msra.mxu0 %v2224
    %3442 = vmatprep.subr.bf16.mxu0 %v2227
    %3443 = vmatpush1.bf16.msra.mxu0 %v2226
    %3444 = vmatprep.subr.bf16.mxu0 %v2229
    %3445 = vmatpush1.bf16.msra.mxu0 %v2228
    %3446 = vmatprep.subr.bf16.mxu0 %v2231
    %3447 = vmatpush1.bf16.msra.mxu0 %v2230
    %3448 = vmatprep.subr.bf16.mxu0 %v2233
    %3449 = vmatpush1.bf16.msra.mxu0 %v2232
    %3450 = vmatprep.subr.bf16.mxu0 %v2235
    %3451 = vmatpush1.bf16.msra.mxu0 %v2234
    %3452 = vmatprep.subr.bf16.mxu0 %v2237
    %3453 = vmatpush1.bf16.msra.mxu0 %v2236
    %3454 = vmatprep.mubr.bf16.mxu0 %v3167
    %3455 = vmatmul.mubr.bf16.gmra.mrb[0].mxu0 %v3166
    %v3456 = vpop.f32.mrb[0].mxu0
    %v3457 = vadd.f32 %v2465, %v3456
    %v3458 = vpop.f32.mrb[0].mxu0
    %v3459 = vadd.f32 %v2465, %v3458
    %v3460 = vpop.f32.mrb[0].mxu0
    %v3461 = vadd.f32 %v2470, %v3460
    %v3462 = vpop.f32.mrb[0].mxu0
    %v3463 = vadd.f32 %v2470, %v3462
    %3464 = vmatprep.mubr.bf16.mxu0 %v3171
    %3465 = vmatmul.mubr.bf16.gmra.mrb[0].mxu0 %v3170
    %v3466 = vpop.f32.mrb[0].mxu0
    %v3467 = vadd.f32 %v2475, %v3466
    %v3468 = vpop.f32.mrb[0].mxu0
    %v3469 = vadd.f32 %v2475, %v3468
    %v3470 = vpop.f32.mrb[0].mxu0
    %v3471 = vadd.f32 %v2480, %v3470
    %v3472 = vpop.f32.mrb[0].mxu0
    %v3473 = vadd.f32 %v2480, %v3472
    %3474 = vmatprep.mubr.bf16.mxu0 %v3175
    %3475 = vmatmul.mubr.bf16.gmra.mrb[0].mxu0 %v3174
    %v3476 = vpop.f32.mrb[0].mxu0
    %v3477 = vadd.f32 %v2485, %v3476
    %v3478 = vpop.f32.mrb[0].mxu0
    %v3479 = vadd.f32 %v2485, %v3478
    %v3480 = vpop.f32.mrb[0].mxu0
    %v3481 = vadd.f32 %v2490, %v3480
    %v3482 = vpop.f32.mrb[0].mxu0
    %v3483 = vadd.f32 %v2490, %v3482
    %3484 = vmatprep.mubr.bf16.mxu0 %v3179
    %3485 = vmatmul.mubr.bf16.gmra.mrb[0].mxu0 %v3178
    %v3486 = vpop.f32.mrb[0].mxu0
    %v3487 = vadd.f32 %v2495, %v3486
    %v3488 = vpop.f32.mrb[0].mxu0
    %v3489 = vadd.f32 %v2495, %v3488
    %v3490 = vpop.f32.mrb[0].mxu0
    %v3491 = vadd.f32 %v2500, %v3490
    %v3492 = vpop.f32.mrb[0].mxu0
    %v3493 = vadd.f32 %v2500, %v3492
    %3494 = vmatprep.mubr.bf16.mxu0 %v3183
    %3495 = vmatmul.mubr.bf16.gmra.mrb[0].mxu0 %v3182
    %v3496 = vpop.f32.mrb[0].mxu0
    %v3497 = vadd.f32 %v2505, %v3496
    %v3498 = vpop.f32.mrb[0].mxu0
    %v3499 = vadd.f32 %v2505, %v3498
    %v3500 = vpop.f32.mrb[0].mxu0
    %v3501 = vadd.f32 %v2510, %v3500
    %v3502 = vpop.f32.mrb[0].mxu0
    %v3503 = vadd.f32 %v2510, %v3502
    %3504 = vmatprep.mubr.bf16.mxu0 %v3187
    %3505 = vmatmul.mubr.bf16.gmra.mrb[0].mxu0 %v3186
    %v3506 = vpop.f32.mrb[0].mxu0
    %v3507 = vadd.f32 %v2515, %v3506
    %v3508 = vpop.f32.mrb[0].mxu0
    %v3509 = vadd.f32 %v2515, %v3508
    %v3510 = vpop.f32.mrb[0].mxu0
    %v3511 = vadd.f32 %v2520, %v3510
    %v3512 = vpop.f32.mrb[0].mxu0
    %v3513 = vadd.f32 %v2520, %v3512
    %3514 = vmatprep.mubr.bf16.mxu0 %v3191
    %3515 = vmatmul.mubr.bf16.gmra.mrb[0].mxu0 %v3190
    %v3516 = vpop.f32.mrb[0].mxu0
    %v3517 = vadd.f32 %v2525, %v3516
    %v3518 = vpop.f32.mrb[0].mxu0
    %v3519 = vadd.f32 %v2525, %v3518
    %v3520 = vpop.f32.mrb[0].mxu0
    %v3521 = vadd.f32 %v2530, %v3520
    %v3522 = vpop.f32.mrb[0].mxu0
    %v3523 = vadd.f32 %v2530, %v3522
    %3524 = vmatprep.mubr.bf16.mxu0 %v3195
    %3525 = vmatmul.mubr.bf16.gmra.mrb[0].mxu0 %v3194
    %v3526 = vpop.f32.mrb[0].mxu0
    %v3527 = vadd.f32 %v2535, %v3526
    %v3528 = vpop.f32.mrb[0].mxu0
    %v3529 = vadd.f32 %v2535, %v3528
    %v3530 = vpop.f32.mrb[0].mxu0
    %v3531 = vadd.f32 %v2540, %v3530
    %v3532 = vpop.f32.mrb[0].mxu0
    %v3533 = vadd.f32 %v2540, %v3532
    %3534 = vmatprep.mubr.bf16.mxu0 %v3199
    %3535 = vmatmul.mubr.bf16.gmra.mrb[0].mxu0 %v3198
    %v3536 = vpop.f32.mrb[0].mxu0
    %v3537 = vadd.f32 %v2545, %v3536
    %v3538 = vpop.f32.mrb[0].mxu0
    %v3539 = vadd.f32 %v2545, %v3538
    %v3540 = vpop.f32.mrb[0].mxu0
    %v3541 = vadd.f32 %v2550, %v3540
    %v3542 = vpop.f32.mrb[0].mxu0
    %v3543 = vadd.f32 %v2550, %v3542
    %3544 = vmatprep.mubr.bf16.mxu0 %v3203
    %3545 = vmatmul.mubr.bf16.gmra.mrb[0].mxu0 %v3202
    %v3546 = vpop.f32.mrb[0].mxu0
    %v3547 = vadd.f32 %v2555, %v3546
    %v3548 = vpop.f32.mrb[0].mxu0
    %v3549 = vadd.f32 %v2555, %v3548
    %v3550 = vpop.f32.mrb[0].mxu0
    %v3551 = vadd.f32 %v2560, %v3550
    %v3552 = vpop.f32.mrb[0].mxu0
    %v3553 = vadd.f32 %v2560, %v3552
    %3554 = vmatprep.mubr.bf16.mxu0 %v3207
    %3555 = vmatmul.mubr.bf16.gmra.mrb[0].mxu0 %v3206
    %v3556 = vpop.f32.mrb[0].mxu0
    %v3557 = vadd.f32 %v2565, %v3556
    %v3558 = vpop.f32.mrb[0].mxu0
    %v3559 = vadd.f32 %v2565, %v3558
    %v3560 = vpop.f32.mrb[0].mxu0
    %v3561 = vadd.f32 %v2570, %v3560
    %v3562 = vpop.f32.mrb[0].mxu0
    %v3563 = vadd.f32 %v2570, %v3562
    %3564 = vmatprep.mubr.bf16.mxu0 %v3211
    %3565 = vmatmul.mubr.bf16.gmra.mrb[0].mxu0 %v3210
    %v3566 = vpop.f32.mrb[0].mxu0
    %v3567 = vadd.f32 %v2575, %v3566
    %v3568 = vpop.f32.mrb[0].mxu0
    %v3569 = vadd.f32 %v2575, %v3568
    %v3570 = vpop.f32.mrb[0].mxu0
    %v3571 = vadd.f32 %v2580, %v3570
    %v3572 = vpop.f32.mrb[0].mxu0
    %v3573 = vadd.f32 %v2580, %v3572
    %3574 = vmatprep.mubr.bf16.mxu0 %v3215
    %3575 = vmatmul.mubr.bf16.gmra.mrb[0].mxu0 %v3214
    %v3576 = vpop.f32.mrb[0].mxu0
    %v3577 = vadd.f32 %v2585, %v3576
    %v3578 = vpop.f32.mrb[0].mxu0
    %v3579 = vadd.f32 %v2585, %v3578
    %v3580 = vpop.f32.mrb[0].mxu0
    %v3581 = vadd.f32 %v2590, %v3580
    %v3582 = vpop.f32.mrb[0].mxu0
    %v3583 = vadd.f32 %v2590, %v3582
    %3584 = vmatprep.mubr.bf16.mxu0 %v3219
    %3585 = vmatmul.mubr.bf16.gmra.mrb[0].mxu0 %v3218
    %v3586 = vpop.f32.mrb[0].mxu0
    %v3587 = vadd.f32 %v2595, %v3586
    %v3588 = vpop.f32.mrb[0].mxu0
    %v3589 = vadd.f32 %v2595, %v3588
    %v3590 = vpop.f32.mrb[0].mxu0
    %v3591 = vadd.f32 %v2600, %v3590
    %v3592 = vpop.f32.mrb[0].mxu0
    %v3593 = vadd.f32 %v2600, %v3592
    %3594 = vmatprep.mubr.bf16.mxu0 %v3223
    %3595 = vmatmul.mubr.bf16.gmra.mrb[0].mxu0 %v3222
    %v3596 = vpop.f32.mrb[0].mxu0
    %v3597 = vadd.f32 %v2605, %v3596
    %v3598 = vpop.f32.mrb[0].mxu0
    %v3599 = vadd.f32 %v2605, %v3598
    %v3600 = vpop.f32.mrb[0].mxu0
    %v3601 = vadd.f32 %v2610, %v3600
    %v3602 = vpop.f32.mrb[0].mxu0
    %v3603 = vadd.f32 %v2610, %v3602
    %3604 = vmatprep.mubr.bf16.mxu0 %v3227
    %3605 = vmatmul.mubr.bf16.gmra.mrb[0].mxu0 %v3226
    %v3606 = vpop.f32.mrb[0].mxu0
    %v3607 = vadd.f32 %v2615, %v3606
    %v3608 = vpop.f32.mrb[0].mxu0
    %v3609 = vadd.f32 %v2615, %v3608
    %v3610 = vpop.f32.mrb[0].mxu0
    %v3611 = vadd.f32 %v2620, %v3610
    %v3612 = vpop.f32.mrb[0].mxu0
    %v3613 = vadd.f32 %v2620, %v3612
    %3614 = vmatprep.mubr.bf16.mxu0 %v3231
    %3615 = vmatmul.mubr.bf16.gmra.mrb[0].mxu0 %v3230
    %v3616 = vpop.f32.mrb[0].mxu0
    %v3617 = vadd.f32 %v2625, %v3616
    %v3618 = vpop.f32.mrb[0].mxu0
    %v3619 = vadd.f32 %v2625, %v3618
    %v3620 = vpop.f32.mrb[0].mxu0
    %v3621 = vadd.f32 %v2630, %v3620
    %v3622 = vpop.f32.mrb[0].mxu0
    %v3623 = vadd.f32 %v2630, %v3622
    %3624 = vmatprep.mubr.bf16.mxu0 %v3235
    %3625 = vmatmul.mubr.bf16.gmra.mrb[0].mxu0 %v3234
    %v3626 = vpop.f32.mrb[0].mxu0
    %v3627 = vadd.f32 %v2635, %v3626
    %v3628 = vpop.f32.mrb[0].mxu0
    %v3629 = vadd.f32 %v2635, %v3628
    %v3630 = vpop.f32.mrb[0].mxu0
    %v3631 = vadd.f32 %v2640, %v3630
    %v3632 = vpop.f32.mrb[0].mxu0
    %v3633 = vadd.f32 %v2640, %v3632
    %3634 = vmatprep.mubr.bf16.mxu0 %v3239
    %3635 = vmatmul.mubr.bf16.gmra.mrb[0].mxu0 %v3238
    %v3636 = vpop.f32.mrb[0].mxu0
    %v3637 = vadd.f32 %v2645, %v3636
    %v3638 = vpop.f32.mrb[0].mxu0
    %v3639 = vadd.f32 %v2645, %v3638
    %v3640 = vpop.f32.mrb[0].mxu0
    %v3641 = vadd.f32 %v2650, %v3640
    %v3642 = vpop.f32.mrb[0].mxu0
    %v3643 = vadd.f32 %v2650, %v3642
    %3644 = vmatprep.mubr.bf16.mxu0 %v3243
    %3645 = vmatmul.mubr.bf16.gmra.mrb[0].mxu0 %v3242
    %v3646 = vpop.f32.mrb[0].mxu0
    %v3647 = vadd.f32 %v2655, %v3646
    %v3648 = vpop.f32.mrb[0].mxu0
    %v3649 = vadd.f32 %v2655, %v3648
    %v3650 = vpop.f32.mrb[0].mxu0
    %v3651 = vadd.f32 %v2660, %v3650
    %v3652 = vpop.f32.mrb[0].mxu0
    %v3653 = vadd.f32 %v2660, %v3652
    %3654 = vmatprep.mubr.bf16.mxu0 %v3247
    %3655 = vmatmul.mubr.bf16.gmra.mrb[0].mxu0 %v3246
    %v3656 = vpop.f32.mrb[0].mxu0
    %v3657 = vadd.f32 %v2665, %v3656
    %v3658 = vpop.f32.mrb[0].mxu0
    %v3659 = vadd.f32 %v2665, %v3658
    %v3660 = vpop.f32.mrb[0].mxu0
    %v3661 = vadd.f32 %v2670, %v3660
    %v3662 = vpop.f32.mrb[0].mxu0
    %v3663 = vadd.f32 %v2670, %v3662
    %3664 = vmatprep.mubr.bf16.mxu0 %v3251
    %3665 = vmatmul.mubr.bf16.gmra.mrb[0].mxu0 %v3250
    %v3666 = vpop.f32.mrb[0].mxu0
    %v3667 = vadd.f32 %v2675, %v3666
    %v3668 = vpop.f32.mrb[0].mxu0
    %v3669 = vadd.f32 %v2675, %v3668
    %v3670 = vpop.f32.mrb[0].mxu0
    %v3671 = vadd.f32 %v2680, %v3670
    %v3672 = vpop.f32.mrb[0].mxu0
    %v3673 = vadd.f32 %v2680, %v3672
    %3674 = vmatprep.mubr.bf16.mxu0 %v3255
    %3675 = vmatmul.mubr.bf16.gmra.mrb[0].mxu0 %v3254
    %v3676 = vpop.f32.mrb[0].mxu0
    %v3677 = vadd.f32 %v2685, %v3676
    %v3678 = vpop.f32.mrb[0].mxu0
    %v3679 = vadd.f32 %v2685, %v3678
    %v3680 = vpop.f32.mrb[0].mxu0
    %v3681 = vadd.f32 %v2690, %v3680
    %v3682 = vpop.f32.mrb[0].mxu0
    %v3683 = vadd.f32 %v2690, %v3682
    %3684 = vmatprep.mubr.bf16.mxu0 %v3259
    %3685 = vmatmul.mubr.bf16.gmra.mrb[0].mxu0 %v3258
    %v3686 = vpop.f32.mrb[0].mxu0
    %v3687 = vadd.f32 %v2695, %v3686
    %v3688 = vpop.f32.mrb[0].mxu0
    %v3689 = vadd.f32 %v2695, %v3688
    %v3690 = vpop.f32.mrb[0].mxu0
    %v3691 = vadd.f32 %v2700, %v3690
    %v3692 = vpop.f32.mrb[0].mxu0
    %v3693 = vadd.f32 %v2700, %v3692
    %3694 = vmatprep.mubr.bf16.mxu0 %v3263
    %3695 = vmatmul.mubr.bf16.gmra.mrb[0].mxu0 %v3262
    %v3696 = vpop.f32.mrb[0].mxu0
    %v3697 = vadd.f32 %v2705, %v3696
    %v3698 = vpop.f32.mrb[0].mxu0
    %v3699 = vadd.f32 %v2705, %v3698
    %v3700 = vpop.f32.mrb[0].mxu0
    %v3701 = vadd.f32 %v2710, %v3700
    %v3702 = vpop.f32.mrb[0].mxu0
    %v3703 = vadd.f32 %v2710, %v3702
    %3704 = vmatprep.mubr.bf16.mxu0 %v3267
    %3705 = vmatmul.mubr.bf16.gmra.mrb[0].mxu0 %v3266
    %v3706 = vpop.f32.mrb[0].mxu0
    %v3707 = vadd.f32 %v2715, %v3706
    %v3708 = vpop.f32.mrb[0].mxu0
    %v3709 = vadd.f32 %v2715, %v3708
    %v3710 = vpop.f32.mrb[0].mxu0
    %v3711 = vadd.f32 %v2720, %v3710
    %v3712 = vpop.f32.mrb[0].mxu0
    %v3713 = vadd.f32 %v2720, %v3712
    %3714 = vmatprep.mubr.bf16.mxu0 %v3271
    %3715 = vmatmul.mubr.bf16.gmra.mrb[0].mxu0 %v3270
    %v3716 = vpop.f32.mrb[0].mxu0
    %v3717 = vadd.f32 %v2725, %v3716
    %v3718 = vpop.f32.mrb[0].mxu0
    %v3719 = vadd.f32 %v2725, %v3718
    %v3720 = vpop.f32.mrb[0].mxu0
    %v3721 = vadd.f32 %v2730, %v3720
    %v3722 = vpop.f32.mrb[0].mxu0
    %v3723 = vadd.f32 %v2730, %v3722
    %3724 = vmatprep.mubr.bf16.mxu0 %v3275
    %3725 = vmatmul.mubr.bf16.gmra.mrb[0].mxu0 %v3274
    %v3726 = vpop.f32.mrb[0].mxu0
    %v3727 = vadd.f32 %v2735, %v3726
    %v3728 = vpop.f32.mrb[0].mxu0
    %v3729 = vadd.f32 %v2735, %v3728
    %v3730 = vpop.f32.mrb[0].mxu0
    %v3731 = vadd.f32 %v2740, %v3730
    %v3732 = vpop.f32.mrb[0].mxu0
    %v3733 = vadd.f32 %v2740, %v3732
    %3734 = vmatprep.mubr.bf16.mxu0 %v3279
    %3735 = vmatmul.mubr.bf16.gmra.mrb[0].mxu0 %v3278
    %v3736 = vpop.f32.mrb[0].mxu0
    %v3737 = vadd.f32 %v2745, %v3736
    %v3738 = vpop.f32.mrb[0].mxu0
    %v3739 = vadd.f32 %v2745, %v3738
    %v3740 = vpop.f32.mrb[0].mxu0
    %v3741 = vadd.f32 %v2750, %v3740
    %v3742 = vpop.f32.mrb[0].mxu0
    %v3743 = vadd.f32 %v2750, %v3742
    %3744 = vmatprep.mubr.bf16.mxu0 %v3283
    %3745 = vmatmul.mubr.bf16.gmra.mrb[0].mxu0 %v3282
    %v3746 = vpop.f32.mrb[0].mxu0
    %v3747 = vadd.f32 %v2755, %v3746
    %v3748 = vpop.f32.mrb[0].mxu0
    %v3749 = vadd.f32 %v2755, %v3748
    %v3750 = vpop.f32.mrb[0].mxu0
    %v3751 = vadd.f32 %v2760, %v3750
    %v3752 = vpop.f32.mrb[0].mxu0
    %v3753 = vadd.f32 %v2760, %v3752
    %3754 = vmatprep.mubr.bf16.mxu0 %v3287
    %3755 = vmatmul.mubr.bf16.gmra.mrb[0].mxu0 %v3286
    %v3756 = vpop.f32.mrb[0].mxu0
    %v3757 = vadd.f32 %v2765, %v3756
    %v3758 = vpop.f32.mrb[0].mxu0
    %v3759 = vadd.f32 %v2765, %v3758
    %v3760 = vpop.f32.mrb[0].mxu0
    %v3761 = vadd.f32 %v2770, %v3760
    %v3762 = vpop.f32.mrb[0].mxu0
    %v3763 = vadd.f32 %v2770, %v3762
    %3764 = vmatprep.mubr.bf16.mxu0 %v3291
    %3765 = vmatmul.mubr.bf16.gmra.mrb[0].mxu0 %v3290
    %v3766 = vpop.f32.mrb[0].mxu0
    %v3767 = vadd.f32 %v2775, %v3766
    %v3768 = vpop.f32.mrb[0].mxu0
    %v3769 = vadd.f32 %v2775, %v3768
    %v3770 = vpop.f32.mrb[0].mxu0
    %v3771 = vadd.f32 %v2780, %v3770
    %v3772 = vpop.f32.mrb[0].mxu0
    %v3773 = vadd.f32 %v2780, %v3772
    %3774 = vdwg.mxu0
    %3775 = vmatprep.subr.bf16.mxu0 %v2239
    %3776 = vmatpush1.bf16.msra.mxu0 %v2238
    %3777 = vmatprep.subr.bf16.mxu0 %v2241
    %3778 = vmatpush1.bf16.msra.mxu0 %v2240
    %3779 = vmatprep.subr.bf16.mxu0 %v2243
    %3780 = vmatpush1.bf16.msra.mxu0 %v2242
    %3781 = vmatprep.subr.bf16.mxu0 %v2245
    %3782 = vmatpush1.bf16.msra.mxu0 %v2244
    %3783 = vmatprep.subr.bf16.mxu0 %v2247
    %3784 = vmatpush1.bf16.msra.mxu0 %v2246
    %3785 = vmatprep.subr.bf16.mxu0 %v2249
    %3786 = vmatpush1.bf16.msra.mxu0 %v2248
    %3787 = vmatprep.subr.bf16.mxu0 %v2251
    %3788 = vmatpush1.bf16.msra.mxu0 %v2250
    %3789 = vmatprep.subr.bf16.mxu0 %v2253
    %3790 = vmatpush1.bf16.msra.mxu0 %v2252
    %3791 = vmatprep.subr.bf16.mxu0 %v2255
    %3792 = vmatpush1.bf16.msra.mxu0 %v2254
    %3793 = vmatprep.subr.bf16.mxu0 %v2257
    %3794 = vmatpush1.bf16.msra.mxu0 %v2256
    %3795 = vmatprep.subr.bf16.mxu0 %v2259
    %3796 = vmatpush1.bf16.msra.mxu0 %v2258
    %3797 = vmatprep.subr.bf16.mxu0 %v2261
    %3798 = vmatpush1.bf16.msra.mxu0 %v2260
    %3799 = vmatprep.subr.bf16.mxu0 %v2263
    %3800 = vmatpush1.bf16.msra.mxu0 %v2262
    %3801 = vmatprep.subr.bf16.mxu0 %v2265
    %3802 = vmatpush1.bf16.msra.mxu0 %v2264
    %3803 = vmatprep.subr.bf16.mxu0 %v2267
    %3804 = vmatpush1.bf16.msra.mxu0 %v2266
    %3805 = vmatprep.subr.bf16.mxu0 %v2269
    %3806 = vmatpush1.bf16.msra.mxu0 %v2268
    %3807 = vmatprep.mubr.bf16.mxu0 %v3169
    %3808 = vmatmul.mubr.bf16.gmra.mrb[0].mxu0 %v3168
    %v3809 = vpop.f32.mrb[0].mxu0
    %v3810 = vadd.f32 %v3457, %v3809
    %v3811 = vpop.f32.mrb[0].mxu0
    %v3812 = vadd.f32 %v3459, %v3811
    %v3813 = vpop.f32.mrb[0].mxu0
    %v3814 = vadd.f32 %v3461, %v3813
    %v3815 = vpop.f32.mrb[0].mxu0
    %v3816 = vadd.f32 %v3463, %v3815
    %3817 = vmatprep.mubr.bf16.mxu0 %v3173
    %3818 = vmatmul.mubr.bf16.gmra.mrb[0].mxu0 %v3172
    %v3819 = vpop.f32.mrb[0].mxu0
    %v3820 = vadd.f32 %v3467, %v3819
    %v3821 = vpop.f32.mrb[0].mxu0
    %v3822 = vadd.f32 %v3469, %v3821
    %v3823 = vpop.f32.mrb[0].mxu0
    %v3824 = vadd.f32 %v3471, %v3823
    %v3825 = vpop.f32.mrb[0].mxu0
    %v3826 = vadd.f32 %v3473, %v3825
    %3827 = vmatprep.mubr.bf16.mxu0 %v3177
    %3828 = vmatmul.mubr.bf16.gmra.mrb[0].mxu0 %v3176
    %v3829 = vpop.f32.mrb[0].mxu0
    %v3830 = vadd.f32 %v3477, %v3829
    %v3831 = vpop.f32.mrb[0].mxu0
    %v3832 = vadd.f32 %v3479, %v3831
    %v3833 = vpop.f32.mrb[0].mxu0
    %v3834 = vadd.f32 %v3481, %v3833
    %v3835 = vpop.f32.mrb[0].mxu0
    %v3836 = vadd.f32 %v3483, %v3835
    %3837 = vmatprep.mubr.bf16.mxu0 %v3181
    %3838 = vmatmul.mubr.bf16.gmra.mrb[0].mxu0 %v3180
    %v3839 = vpop.f32.mrb[0].mxu0
    %v3840 = vadd.f32 %v3487, %v3839
    %v3841 = vpop.f32.mrb[0].mxu0
    %v3842 = vadd.f32 %v3489, %v3841
    %v3843 = vpop.f32.mrb[0].mxu0
    %v3844 = vadd.f32 %v3491, %v3843
    %v3845 = vpop.f32.mrb[0].mxu0
    %v3846 = vadd.f32 %v3493, %v3845
    %3847 = vmatprep.mubr.bf16.mxu0 %v3185
    %3848 = vmatmul.mubr.bf16.gmra.mrb[0].mxu0 %v3184
    %v3849 = vpop.f32.mrb[0].mxu0
    %v3850 = vadd.f32 %v3497, %v3849
    %v3851 = vpop.f32.mrb[0].mxu0
    %v3852 = vadd.f32 %v3499, %v3851
    %v3853 = vpop.f32.mrb[0].mxu0
    %v3854 = vadd.f32 %v3501, %v3853
    %v3855 = vpop.f32.mrb[0].mxu0
    %v3856 = vadd.f32 %v3503, %v3855
    %3857 = vmatprep.mubr.bf16.mxu0 %v3189
    %3858 = vmatmul.mubr.bf16.gmra.mrb[0].mxu0 %v3188
    %v3859 = vpop.f32.mrb[0].mxu0
    %v3860 = vadd.f32 %v3507, %v3859
    %v3861 = vpop.f32.mrb[0].mxu0
    %v3862 = vadd.f32 %v3509, %v3861
    %v3863 = vpop.f32.mrb[0].mxu0
    %v3864 = vadd.f32 %v3511, %v3863
    %v3865 = vpop.f32.mrb[0].mxu0
    %v3866 = vadd.f32 %v3513, %v3865
    %3867 = vmatprep.mubr.bf16.mxu0 %v3193
    %3868 = vmatmul.mubr.bf16.gmra.mrb[0].mxu0 %v3192
    %v3869 = vpop.f32.mrb[0].mxu0
    %v3870 = vadd.f32 %v3517, %v3869
    %v3871 = vpop.f32.mrb[0].mxu0
    %v3872 = vadd.f32 %v3519, %v3871
    %v3873 = vpop.f32.mrb[0].mxu0
    %v3874 = vadd.f32 %v3521, %v3873
    %v3875 = vpop.f32.mrb[0].mxu0
    %v3876 = vadd.f32 %v3523, %v3875
    %3877 = vmatprep.mubr.bf16.mxu0 %v3197
    %3878 = vmatmul.mubr.bf16.gmra.mrb[0].mxu0 %v3196
    %v3879 = vpop.f32.mrb[0].mxu0
    %v3880 = vadd.f32 %v3527, %v3879
    %v3881 = vpop.f32.mrb[0].mxu0
    %v3882 = vadd.f32 %v3529, %v3881
    %v3883 = vpop.f32.mrb[0].mxu0
    %v3884 = vadd.f32 %v3531, %v3883
    %v3885 = vpop.f32.mrb[0].mxu0
    %v3886 = vadd.f32 %v3533, %v3885
    %3887 = vmatprep.mubr.bf16.mxu0 %v3201
    %3888 = vmatmul.mubr.bf16.gmra.mrb[0].mxu0 %v3200
    %v3889 = vpop.f32.mrb[0].mxu0
    %v3890 = vadd.f32 %v3537, %v3889
    %v3891 = vpop.f32.mrb[0].mxu0
    %v3892 = vadd.f32 %v3539, %v3891
    %v3893 = vpop.f32.mrb[0].mxu0
    %v3894 = vadd.f32 %v3541, %v3893
    %v3895 = vpop.f32.mrb[0].mxu0
    %v3896 = vadd.f32 %v3543, %v3895
    %3897 = vmatprep.mubr.bf16.mxu0 %v3205
    %3898 = vmatmul.mubr.bf16.gmra.mrb[0].mxu0 %v3204
    %v3899 = vpop.f32.mrb[0].mxu0
    %v3900 = vadd.f32 %v3547, %v3899
    %v3901 = vpop.f32.mrb[0].mxu0
    %v3902 = vadd.f32 %v3549, %v3901
    %v3903 = vpop.f32.mrb[0].mxu0
    %v3904 = vadd.f32 %v3551, %v3903
    %v3905 = vpop.f32.mrb[0].mxu0
    %v3906 = vadd.f32 %v3553, %v3905
    %3907 = vmatprep.mubr.bf16.mxu0 %v3209
    %3908 = vmatmul.mubr.bf16.gmra.mrb[0].mxu0 %v3208
    %v3909 = vpop.f32.mrb[0].mxu0
    %v3910 = vadd.f32 %v3557, %v3909
    %v3911 = vpop.f32.mrb[0].mxu0
    %v3912 = vadd.f32 %v3559, %v3911
    %v3913 = vpop.f32.mrb[0].mxu0
    %v3914 = vadd.f32 %v3561, %v3913
    %v3915 = vpop.f32.mrb[0].mxu0
    %v3916 = vadd.f32 %v3563, %v3915
    %3917 = vmatprep.mubr.bf16.mxu0 %v3213
    %3918 = vmatmul.mubr.bf16.gmra.mrb[0].mxu0 %v3212
    %v3919 = vpop.f32.mrb[0].mxu0
    %v3920 = vadd.f32 %v3567, %v3919
    %v3921 = vpop.f32.mrb[0].mxu0
    %v3922 = vadd.f32 %v3569, %v3921
    %v3923 = vpop.f32.mrb[0].mxu0
    %v3924 = vadd.f32 %v3571, %v3923
    %v3925 = vpop.f32.mrb[0].mxu0
    %v3926 = vadd.f32 %v3573, %v3925
    %3927 = vmatprep.mubr.bf16.mxu0 %v3217
    %3928 = vmatmul.mubr.bf16.gmra.mrb[0].mxu0 %v3216
    %v3929 = vpop.f32.mrb[0].mxu0
    %v3930 = vadd.f32 %v3577, %v3929
    %v3931 = vpop.f32.mrb[0].mxu0
    %v3932 = vadd.f32 %v3579, %v3931
    %v3933 = vpop.f32.mrb[0].mxu0
    %v3934 = vadd.f32 %v3581, %v3933
    %v3935 = vpop.f32.mrb[0].mxu0
    %v3936 = vadd.f32 %v3583, %v3935
    %3937 = vmatprep.mubr.bf16.mxu0 %v3221
    %3938 = vmatmul.mubr.bf16.gmra.mrb[0].mxu0 %v3220
    %v3939 = vpop.f32.mrb[0].mxu0
    %v3940 = vadd.f32 %v3587, %v3939
    %v3941 = vpop.f32.mrb[0].mxu0
    %v3942 = vadd.f32 %v3589, %v3941
    %v3943 = vpop.f32.mrb[0].mxu0
    %v3944 = vadd.f32 %v3591, %v3943
    %v3945 = vpop.f32.mrb[0].mxu0
    %v3946 = vadd.f32 %v3593, %v3945
    %3947 = vmatprep.mubr.bf16.mxu0 %v3225
    %3948 = vmatmul.mubr.bf16.gmra.mrb[0].mxu0 %v3224
    %v3949 = vpop.f32.mrb[0].mxu0
    %v3950 = vadd.f32 %v3597, %v3949
    %v3951 = vpop.f32.mrb[0].mxu0
    %v3952 = vadd.f32 %v3599, %v3951
    %v3953 = vpop.f32.mrb[0].mxu0
    %v3954 = vadd.f32 %v3601, %v3953
    %v3955 = vpop.f32.mrb[0].mxu0
    %v3956 = vadd.f32 %v3603, %v3955
    %3957 = vmatprep.mubr.bf16.mxu0 %v3229
    %3958 = vmatmul.mubr.bf16.gmra.mrb[0].mxu0 %v3228
    %v3959 = vpop.f32.mrb[0].mxu0
    %v3960 = vadd.f32 %v3607, %v3959
    %v3961 = vpop.f32.mrb[0].mxu0
    %v3962 = vadd.f32 %v3609, %v3961
    %v3963 = vpop.f32.mrb[0].mxu0
    %v3964 = vadd.f32 %v3611, %v3963
    %v3965 = vpop.f32.mrb[0].mxu0
    %v3966 = vadd.f32 %v3613, %v3965
    %3967 = vmatprep.mubr.bf16.mxu0 %v3233
    %3968 = vmatmul.mubr.bf16.gmra.mrb[0].mxu0 %v3232
    %v3969 = vpop.f32.mrb[0].mxu0
    %v3970 = vadd.f32 %v3617, %v3969
    %v3971 = vpop.f32.mrb[0].mxu0
    %v3972 = vadd.f32 %v3619, %v3971
    %v3973 = vpop.f32.mrb[0].mxu0
    %v3974 = vadd.f32 %v3621, %v3973
    %v3975 = vpop.f32.mrb[0].mxu0
    %v3976 = vadd.f32 %v3623, %v3975
    %3977 = vmatprep.mubr.bf16.mxu0 %v3237
    %3978 = vmatmul.mubr.bf16.gmra.mrb[0].mxu0 %v3236
    %v3979 = vpop.f32.mrb[0].mxu0
    %v3980 = vadd.f32 %v3627, %v3979
    %v3981 = vpop.f32.mrb[0].mxu0
    %v3982 = vadd.f32 %v3629, %v3981
    %v3983 = vpop.f32.mrb[0].mxu0
    %v3984 = vadd.f32 %v3631, %v3983
    %v3985 = vpop.f32.mrb[0].mxu0
    %v3986 = vadd.f32 %v3633, %v3985
    %3987 = vmatprep.mubr.bf16.mxu0 %v3241
    %3988 = vmatmul.mubr.bf16.gmra.mrb[0].mxu0 %v3240
    %v3989 = vpop.f32.mrb[0].mxu0
    %v3990 = vadd.f32 %v3637, %v3989
    %v3991 = vpop.f32.mrb[0].mxu0
    %v3992 = vadd.f32 %v3639, %v3991
    %v3993 = vpop.f32.mrb[0].mxu0
    %v3994 = vadd.f32 %v3641, %v3993
    %v3995 = vpop.f32.mrb[0].mxu0
    %v3996 = vadd.f32 %v3643, %v3995
    %3997 = vmatprep.mubr.bf16.mxu0 %v3245
    %3998 = vmatmul.mubr.bf16.gmra.mrb[0].mxu0 %v3244
    %v3999 = vpop.f32.mrb[0].mxu0
    %v4000 = vadd.f32 %v3647, %v3999
    %v4001 = vpop.f32.mrb[0].mxu0
    %v4002 = vadd.f32 %v3649, %v4001
    %v4003 = vpop.f32.mrb[0].mxu0
    %v4004 = vadd.f32 %v3651, %v4003
    %v4005 = vpop.f32.mrb[0].mxu0
    %v4006 = vadd.f32 %v3653, %v4005
    %4007 = vmatprep.mubr.bf16.mxu0 %v3249
    %4008 = vmatmul.mubr.bf16.gmra.mrb[0].mxu0 %v3248
    %v4009 = vpop.f32.mrb[0].mxu0
    %v4010 = vadd.f32 %v3657, %v4009
    %v4011 = vpop.f32.mrb[0].mxu0
    %v4012 = vadd.f32 %v3659, %v4011
    %v4013 = vpop.f32.mrb[0].mxu0
    %v4014 = vadd.f32 %v3661, %v4013
    %v4015 = vpop.f32.mrb[0].mxu0
    %v4016 = vadd.f32 %v3663, %v4015
    %4017 = vmatprep.mubr.bf16.mxu0 %v3253
    %4018 = vmatmul.mubr.bf16.gmra.mrb[0].mxu0 %v3252
    %v4019 = vpop.f32.mrb[0].mxu0
    %v4020 = vadd.f32 %v3667, %v4019
    %v4021 = vpop.f32.mrb[0].mxu0
    %v4022 = vadd.f32 %v3669, %v4021
    %v4023 = vpop.f32.mrb[0].mxu0
    %v4024 = vadd.f32 %v3671, %v4023
    %v4025 = vpop.f32.mrb[0].mxu0
    %v4026 = vadd.f32 %v3673, %v4025
    %4027 = vmatprep.mubr.bf16.mxu0 %v3257
    %4028 = vmatmul.mubr.bf16.gmra.mrb[0].mxu0 %v3256
    %v4029 = vpop.f32.mrb[0].mxu0
    %v4030 = vadd.f32 %v3677, %v4029
    %v4031 = vpop.f32.mrb[0].mxu0
    %v4032 = vadd.f32 %v3679, %v4031
    %v4033 = vpop.f32.mrb[0].mxu0
    %v4034 = vadd.f32 %v3681, %v4033
    %v4035 = vpop.f32.mrb[0].mxu0
    %v4036 = vadd.f32 %v3683, %v4035
    %4037 = vmatprep.mubr.bf16.mxu0 %v3261
    %4038 = vmatmul.mubr.bf16.gmra.mrb[0].mxu0 %v3260
    %v4039 = vpop.f32.mrb[0].mxu0
    %v4040 = vadd.f32 %v3687, %v4039
    %v4041 = vpop.f32.mrb[0].mxu0
    %v4042 = vadd.f32 %v3689, %v4041
    %v4043 = vpop.f32.mrb[0].mxu0
    %v4044 = vadd.f32 %v3691, %v4043
    %v4045 = vpop.f32.mrb[0].mxu0
    %v4046 = vadd.f32 %v3693, %v4045
    %4047 = vmatprep.mubr.bf16.mxu0 %v3265
    %4048 = vmatmul.mubr.bf16.gmra.mrb[0].mxu0 %v3264
    %v4049 = vpop.f32.mrb[0].mxu0
    %v4050 = vadd.f32 %v3697, %v4049
    %v4051 = vpop.f32.mrb[0].mxu0
    %v4052 = vadd.f32 %v3699, %v4051
    %v4053 = vpop.f32.mrb[0].mxu0
    %v4054 = vadd.f32 %v3701, %v4053
    %v4055 = vpop.f32.mrb[0].mxu0
    %v4056 = vadd.f32 %v3703, %v4055
    %4057 = vmatprep.mubr.bf16.mxu0 %v3269
    %4058 = vmatmul.mubr.bf16.gmra.mrb[0].mxu0 %v3268
    %v4059 = vpop.f32.mrb[0].mxu0
    %v4060 = vadd.f32 %v3707, %v4059
    %v4061 = vpop.f32.mrb[0].mxu0
    %v4062 = vadd.f32 %v3709, %v4061
    %v4063 = vpop.f32.mrb[0].mxu0
    %v4064 = vadd.f32 %v3711, %v4063
    %v4065 = vpop.f32.mrb[0].mxu0
    %v4066 = vadd.f32 %v3713, %v4065
    %4067 = vmatprep.mubr.bf16.mxu0 %v3273
    %4068 = vmatmul.mubr.bf16.gmra.mrb[0].mxu0 %v3272
    %v4069 = vpop.f32.mrb[0].mxu0
    %v4070 = vadd.f32 %v3717, %v4069
    %v4071 = vpop.f32.mrb[0].mxu0
    %v4072 = vadd.f32 %v3719, %v4071
    %v4073 = vpop.f32.mrb[0].mxu0
    %v4074 = vadd.f32 %v3721, %v4073
    %v4075 = vpop.f32.mrb[0].mxu0
    %v4076 = vadd.f32 %v3723, %v4075
    %4077 = vmatprep.mubr.bf16.mxu0 %v3277
    %4078 = vmatmul.mubr.bf16.gmra.mrb[0].mxu0 %v3276
    %v4079 = vpop.f32.mrb[0].mxu0
    %v4080 = vadd.f32 %v3727, %v4079
    %v4081 = vpop.f32.mrb[0].mxu0
    %v4082 = vadd.f32 %v3729, %v4081
    %v4083 = vpop.f32.mrb[0].mxu0
    %v4084 = vadd.f32 %v3731, %v4083
    %v4085 = vpop.f32.mrb[0].mxu0
    %v4086 = vadd.f32 %v3733, %v4085
    %4087 = vmatprep.mubr.bf16.mxu0 %v3281
    %4088 = vmatmul.mubr.bf16.gmra.mrb[0].mxu0 %v3280
    %v4089 = vpop.f32.mrb[0].mxu0
    %v4090 = vadd.f32 %v3737, %v4089
    %v4091 = vpop.f32.mrb[0].mxu0
    %v4092 = vadd.f32 %v3739, %v4091
    %v4093 = vpop.f32.mrb[0].mxu0
    %v4094 = vadd.f32 %v3741, %v4093
    %v4095 = vpop.f32.mrb[0].mxu0
    %v4096 = vadd.f32 %v3743, %v4095
    %4097 = vmatprep.mubr.bf16.mxu0 %v3285
    %4098 = vmatmul.mubr.bf16.gmra.mrb[0].mxu0 %v3284
    %v4099 = vpop.f32.mrb[0].mxu0
    %v4100 = vadd.f32 %v3747, %v4099
    %v4101 = vpop.f32.mrb[0].mxu0
    %v4102 = vadd.f32 %v3749, %v4101
    %v4103 = vpop.f32.mrb[0].mxu0
    %v4104 = vadd.f32 %v3751, %v4103
    %v4105 = vpop.f32.mrb[0].mxu0
    %v4106 = vadd.f32 %v3753, %v4105
    %4107 = vmatprep.mubr.bf16.mxu0 %v3289
    %4108 = vmatmul.mubr.bf16.gmra.mrb[0].mxu0 %v3288
    %v4109 = vpop.f32.mrb[0].mxu0
    %v4110 = vadd.f32 %v3757, %v4109
    %v4111 = vpop.f32.mrb[0].mxu0
    %v4112 = vadd.f32 %v3759, %v4111
    %v4113 = vpop.f32.mrb[0].mxu0
    %v4114 = vadd.f32 %v3761, %v4113
    %v4115 = vpop.f32.mrb[0].mxu0
    %v4116 = vadd.f32 %v3763, %v4115
    %4117 = vmatprep.mubr.bf16.mxu0 %v3293
    %4118 = vmatmul.mubr.bf16.gmra.mrb[0].mxu0 %v3292
    %v4119 = vpop.f32.mrb[0].mxu0
    %v4120 = vadd.f32 %v3767, %v4119
    %v4121 = vpop.f32.mrb[0].mxu0
    %v4122 = vadd.f32 %v3769, %v4121
    %v4123 = vpop.f32.mrb[0].mxu0
    %v4124 = vadd.f32 %v3771, %v4123
    %v4125 = vpop.f32.mrb[0].mxu0
    %v4126 = vadd.f32 %v3773, %v4125
    %4127 = vdwg.mxu0
    %v4128 = vmax.f32 %v3810, 0.0
    %v4129 = vmax.f32 %v3812, 0.0
    %v4130 = vmax.f32 %v3814, 0.0
    %v4131 = vmax.f32 %v3816, 0.0
    %v4132 = vmax.f32 %v3820, 0.0
    %v4133 = vmax.f32 %v3822, 0.0
    %v4134 = vmax.f32 %v3824, 0.0
    %v4135 = vmax.f32 %v3826, 0.0
    %v4136 = vmax.f32 %v3830, 0.0
    %v4137 = vmax.f32 %v3832, 0.0
    %v4138 = vmax.f32 %v3834, 0.0
    %v4139 = vmax.f32 %v3836, 0.0
    %v4140 = vmax.f32 %v3840, 0.0
    %v4141 = vmax.f32 %v3842, 0.0
    %v4142 = vmax.f32 %v3844, 0.0
    %v4143 = vmax.f32 %v3846, 0.0
    %v4144 = vmax.f32 %v3850, 0.0
    %v4145 = vmax.f32 %v3852, 0.0
    %v4146 = vmax.f32 %v3854, 0.0
    %v4147 = vmax.f32 %v3856, 0.0
    %v4148 = vmax.f32 %v3860, 0.0
    %v4149 = vmax.f32 %v3862, 0.0
    %v4150 = vmax.f32 %v3864, 0.0
    %v4151 = vmax.f32 %v3866, 0.0
    %v4152 = vmax.f32 %v3870, 0.0
    %v4153 = vmax.f32 %v3872, 0.0
    %v4154 = vmax.f32 %v3874, 0.0
    %v4155 = vmax.f32 %v3876, 0.0
    %v4156 = vmax.f32 %v3880, 0.0
    %v4157 = vmax.f32 %v3882, 0.0
    %v4158 = vmax.f32 %v3884, 0.0
    %v4159 = vmax.f32 %v3886, 0.0
    %v4160 = vmax.f32 %v3890, 0.0
    %v4161 = vmax.f32 %v3892, 0.0
    %v4162 = vmax.f32 %v3894, 0.0
    %v4163 = vmax.f32 %v3896, 0.0
    %v4164 = vmax.f32 %v3900, 0.0
    %v4165 = vmax.f32 %v3902, 0.0
    %v4166 = vmax.f32 %v3904, 0.0
    %v4167 = vmax.f32 %v3906, 0.0
    %v4168 = vmax.f32 %v3910, 0.0
    %v4169 = vmax.f32 %v3912, 0.0
    %v4170 = vmax.f32 %v3914, 0.0
    %v4171 = vmax.f32 %v3916, 0.0
    %v4172 = vmax.f32 %v3920, 0.0
    %v4173 = vmax.f32 %v3922, 0.0
    %v4174 = vmax.f32 %v3924, 0.0
    %v4175 = vmax.f32 %v3926, 0.0
    %v4176 = vmax.f32 %v3930, 0.0
    %v4177 = vmax.f32 %v3932, 0.0
    %v4178 = vmax.f32 %v3934, 0.0
    %v4179 = vmax.f32 %v3936, 0.0
    %v4180 = vmax.f32 %v3940, 0.0
    %v4181 = vmax.f32 %v3942, 0.0
    %v4182 = vmax.f32 %v3944, 0.0
    %v4183 = vmax.f32 %v3946, 0.0
    %v4184 = vmax.f32 %v3950, 0.0
    %v4185 = vmax.f32 %v3952, 0.0
    %v4186 = vmax.f32 %v3954, 0.0
    %v4187 = vmax.f32 %v3956, 0.0
    %v4188 = vmax.f32 %v3960, 0.0
    %v4189 = vmax.f32 %v3962, 0.0
    %v4190 = vmax.f32 %v3964, 0.0
    %v4191 = vmax.f32 %v3966, 0.0
    %v4192 = vmax.f32 %v3970, 0.0
    %v4193 = vmax.f32 %v3972, 0.0
    %v4194 = vmax.f32 %v3974, 0.0
    %v4195 = vmax.f32 %v3976, 0.0
    %v4196 = vmax.f32 %v3980, 0.0
    %v4197 = vmax.f32 %v3982, 0.0
    %v4198 = vmax.f32 %v3984, 0.0
    %v4199 = vmax.f32 %v3986, 0.0
    %v4200 = vmax.f32 %v3990, 0.0
    %v4201 = vmax.f32 %v3992, 0.0
    %v4202 = vmax.f32 %v3994, 0.0
    %v4203 = vmax.f32 %v3996, 0.0
    %v4204 = vmax.f32 %v4000, 0.0
    %v4205 = vmax.f32 %v4002, 0.0
    %v4206 = vmax.f32 %v4004, 0.0
    %v4207 = vmax.f32 %v4006, 0.0
    %v4208 = vmax.f32 %v4010, 0.0
    %v4209 = vmax.f32 %v4012, 0.0
    %v4210 = vmax.f32 %v4014, 0.0
    %v4211 = vmax.f32 %v4016, 0.0
    %v4212 = vmax.f32 %v4020, 0.0
    %v4213 = vmax.f32 %v4022, 0.0
    %v4214 = vmax.f32 %v4024, 0.0
    %v4215 = vmax.f32 %v4026, 0.0
    %v4216 = vmax.f32 %v4030, 0.0
    %v4217 = vmax.f32 %v4032, 0.0
    %v4218 = vmax.f32 %v4034, 0.0
    %v4219 = vmax.f32 %v4036, 0.0
    %v4220 = vmax.f32 %v4040, 0.0
    %v4221 = vmax.f32 %v4042, 0.0
    %v4222 = vmax.f32 %v4044, 0.0
    %v4223 = vmax.f32 %v4046, 0.0
    %v4224 = vmax.f32 %v4050, 0.0
    %v4225 = vmax.f32 %v4052, 0.0
    %v4226 = vmax.f32 %v4054, 0.0
    %v4227 = vmax.f32 %v4056, 0.0
    %v4228 = vmax.f32 %v4060, 0.0
    %v4229 = vmax.f32 %v4062, 0.0
    %v4230 = vmax.f32 %v4064, 0.0
    %v4231 = vmax.f32 %v4066, 0.0
    %v4232 = vmax.f32 %v4070, 0.0
    %v4233 = vmax.f32 %v4072, 0.0
    %v4234 = vmax.f32 %v4074, 0.0
    %v4235 = vmax.f32 %v4076, 0.0
    %v4236 = vmax.f32 %v4080, 0.0
    %v4237 = vmax.f32 %v4082, 0.0
    %v4238 = vmax.f32 %v4084, 0.0
    %v4239 = vmax.f32 %v4086, 0.0
    %v4240 = vmax.f32 %v4090, 0.0
    %v4241 = vmax.f32 %v4092, 0.0
    %v4242 = vmax.f32 %v4094, 0.0
    %v4243 = vmax.f32 %v4096, 0.0
    %v4244 = vmax.f32 %v4100, 0.0
    %v4245 = vmax.f32 %v4102, 0.0
    %v4246 = vmax.f32 %v4104, 0.0
    %v4247 = vmax.f32 %v4106, 0.0
    %v4248 = vmax.f32 %v4110, 0.0
    %v4249 = vmax.f32 %v4112, 0.0
    %v4250 = vmax.f32 %v4114, 0.0
    %v4251 = vmax.f32 %v4116, 0.0
    %v4252 = vmax.f32 %v4120, 0.0
    %v4253 = vmax.f32 %v4122, 0.0
    %v4254 = vmax.f32 %v4124, 0.0
    %v4255 = vmax.f32 %v4126, 0.0
    %v4256 = vpack.c.bf16 %v4130, %v4128
    %v4257 = vpack.c.bf16 %v4131, %v4129
    %v4258 = vpack.c.bf16 %v4134, %v4132
    %v4259 = vpack.c.bf16 %v4135, %v4133
    %v4260 = vpack.c.bf16 %v4138, %v4136
    %v4261 = vpack.c.bf16 %v4139, %v4137
    %v4262 = vpack.c.bf16 %v4142, %v4140
    %v4263 = vpack.c.bf16 %v4143, %v4141
    %v4264 = vpack.c.bf16 %v4146, %v4144
    %v4265 = vpack.c.bf16 %v4147, %v4145
    %v4266 = vpack.c.bf16 %v4150, %v4148
    %v4267 = vpack.c.bf16 %v4151, %v4149
    %v4268 = vpack.c.bf16 %v4154, %v4152
    %v4269 = vpack.c.bf16 %v4155, %v4153
    %v4270 = vpack.c.bf16 %v4158, %v4156
    %v4271 = vpack.c.bf16 %v4159, %v4157
    %v4272 = vpack.c.bf16 %v4162, %v4160
    %v4273 = vpack.c.bf16 %v4163, %v4161
    %v4274 = vpack.c.bf16 %v4166, %v4164
    %v4275 = vpack.c.bf16 %v4167, %v4165
    %v4276 = vpack.c.bf16 %v4170, %v4168
    %v4277 = vpack.c.bf16 %v4171, %v4169
    %v4278 = vpack.c.bf16 %v4174, %v4172
    %v4279 = vpack.c.bf16 %v4175, %v4173
    %v4280 = vpack.c.bf16 %v4178, %v4176
    %v4281 = vpack.c.bf16 %v4179, %v4177
    %v4282 = vpack.c.bf16 %v4182, %v4180
    %v4283 = vpack.c.bf16 %v4183, %v4181
    %v4284 = vpack.c.bf16 %v4186, %v4184
    %v4285 = vpack.c.bf16 %v4187, %v4185
    %v4286 = vpack.c.bf16 %v4190, %v4188
    %v4287 = vpack.c.bf16 %v4191, %v4189
    %v4288 = vpack.c.bf16 %v4194, %v4192
    %v4289 = vpack.c.bf16 %v4195, %v4193
    %v4290 = vpack.c.bf16 %v4198, %v4196
    %v4291 = vpack.c.bf16 %v4199, %v4197
    %v4292 = vpack.c.bf16 %v4202, %v4200
    %v4293 = vpack.c.bf16 %v4203, %v4201
    %v4294 = vpack.c.bf16 %v4206, %v4204
    %v4295 = vpack.c.bf16 %v4207, %v4205
    %v4296 = vpack.c.bf16 %v4210, %v4208
    %v4297 = vpack.c.bf16 %v4211, %v4209
    %v4298 = vpack.c.bf16 %v4214, %v4212
    %v4299 = vpack.c.bf16 %v4215, %v4213
    %v4300 = vpack.c.bf16 %v4218, %v4216
    %v4301 = vpack.c.bf16 %v4219, %v4217
    %v4302 = vpack.c.bf16 %v4222, %v4220
    %v4303 = vpack.c.bf16 %v4223, %v4221
    %v4304 = vpack.c.bf16 %v4226, %v4224
    %v4305 = vpack.c.bf16 %v4227, %v4225
    %v4306 = vpack.c.bf16 %v4230, %v4228
    %v4307 = vpack.c.bf16 %v4231, %v4229
    %v4308 = vpack.c.bf16 %v4234, %v4232
    %v4309 = vpack.c.bf16 %v4235, %v4233
    %v4310 = vpack.c.bf16 %v4238, %v4236
    %v4311 = vpack.c.bf16 %v4239, %v4237
    %v4312 = vpack.c.bf16 %v4242, %v4240
    %v4313 = vpack.c.bf16 %v4243, %v4241
    %v4314 = vpack.c.bf16 %v4246, %v4244
    %v4315 = vpack.c.bf16 %v4247, %v4245
    %v4316 = vpack.c.bf16 %v4250, %v4248
    %v4317 = vpack.c.bf16 %v4251, %v4249
    %v4318 = vpack.c.bf16 %v4254, %v4252
    %v4319 = vpack.c.bf16 %v4255, %v4253
    %v4320 = vld [vmem:[#allocation3] sm:$0xff]
    %v4321 = vld [vmem:[#allocation3 + $0x8] sm:$0xff]
    %v4322 = vld [vmem:[#allocation3 + $0x10] sm:$0xff]
    %v4323 = vld [vmem:[#allocation3 + $0x18] sm:$0xff]
    %v4324 = vld [vmem:[#allocation3 + $0x20] sm:$0xff]
    %v4325 = vld [vmem:[#allocation3 + $0x28] sm:$0xff]
    %v4326 = vld [vmem:[#allocation3 + $0x30] sm:$0xff]
    %v4327 = vld [vmem:[#allocation3 + $0x38] sm:$0xff]
    %v4328 = vld [vmem:[#allocation3 + $0x40] sm:$0xff]
    %v4329 = vld [vmem:[#allocation3 + $0x48] sm:$0xff]
    %v4330 = vld [vmem:[#allocation3 + $0x50] sm:$0xff]
    %v4331 = vld [vmem:[#allocation3 + $0x58] sm:$0xff]
    %v4332 = vld [vmem:[#allocation3 + $0x60] sm:$0xff]
    %v4333 = vld [vmem:[#allocation3 + $0x68] sm:$0xff]
    %v4334 = vld [vmem:[#allocation3 + $0x70] sm:$0xff]
    %v4335 = vld [vmem:[#allocation3 + $0x78] sm:$0xff]
    %v4336 = vld [vmem:[#allocation3 + $0x80] sm:$0xff]
    %v4337 = vld [vmem:[#allocation3 + $0x88] sm:$0xff]
    %v4338 = vld [vmem:[#allocation3 + $0x90] sm:$0xff]
    %v4339 = vld [vmem:[#allocation3 + $0x98] sm:$0xff]
    %v4340 = vld [vmem:[#allocation3 + $0xa0] sm:$0xff]
    %v4341 = vld [vmem:[#allocation3 + $0xa8] sm:$0xff]
    %v4342 = vld [vmem:[#allocation3 + $0xb0] sm:$0xff]
    %v4343 = vld [vmem:[#allocation3 + $0xb8] sm:$0xff]
    %v4344 = vld [vmem:[#allocation3 + $0xc0] sm:$0xff]
    %v4345 = vld [vmem:[#allocation3 + $0xc8] sm:$0xff]
    %v4346 = vld [vmem:[#allocation3 + $0xd0] sm:$0xff]
    %v4347 = vld [vmem:[#allocation3 + $0xd8] sm:$0xff]
    %v4348 = vld [vmem:[#allocation3 + $0xe0] sm:$0xff]
    %v4349 = vld [vmem:[#allocation3 + $0xe8] sm:$0xff]
    %v4350 = vld [vmem:[#allocation3 + $0xf0] sm:$0xff]
    %v4351 = vld [vmem:[#allocation3 + $0xf8] sm:$0xff]
    %v4352 = vld [vmem:[#allocation3 + $0x100] sm:$0xff]
    %v4353 = vld [vmem:[#allocation3 + $0x108] sm:$0xff]
    %v4354 = vld [vmem:[#allocation3 + $0x110] sm:$0xff]
    %v4355 = vld [vmem:[#allocation3 + $0x118] sm:$0xff]
    %v4356 = vld [vmem:[#allocation3 + $0x120] sm:$0xff]
    %v4357 = vld [vmem:[#allocation3 + $0x128] sm:$0xff]
    %v4358 = vld [vmem:[#allocation3 + $0x130] sm:$0xff]
    %v4359 = vld [vmem:[#allocation3 + $0x138] sm:$0xff]
    %v4360 = vld [vmem:[#allocation3 + $0x140] sm:$0xff]
    %v4361 = vld [vmem:[#allocation3 + $0x148] sm:$0xff]
    %v4362 = vld [vmem:[#allocation3 + $0x150] sm:$0xff]
    %v4363 = vld [vmem:[#allocation3 + $0x158] sm:$0xff]
    %v4364 = vld [vmem:[#allocation3 + $0x160] sm:$0xff]
    %v4365 = vld [vmem:[#allocation3 + $0x168] sm:$0xff]
    %v4366 = vld [vmem:[#allocation3 + $0x170] sm:$0xff]
    %v4367 = vld [vmem:[#allocation3 + $0x178] sm:$0xff]
    %v4368 = vld [vmem:[#allocation3 + $0x180] sm:$0xff]
    %v4369 = vld [vmem:[#allocation3 + $0x188] sm:$0xff]
    %v4370 = vld [vmem:[#allocation3 + $0x190] sm:$0xff]
    %v4371 = vld [vmem:[#allocation3 + $0x198] sm:$0xff]
    %v4372 = vld [vmem:[#allocation3 + $0x1a0] sm:$0xff]
    %v4373 = vld [vmem:[#allocation3 + $0x1a8] sm:$0xff]
    %v4374 = vld [vmem:[#allocation3 + $0x1b0] sm:$0xff]
    %v4375 = vld [vmem:[#allocation3 + $0x1b8] sm:$0xff]
    %v4376 = vld [vmem:[#allocation3 + $0x1c0] sm:$0xff]
    %v4377 = vld [vmem:[#allocation3 + $0x1c8] sm:$0xff]
    %v4378 = vld [vmem:[#allocation3 + $0x1d0] sm:$0xff]
    %v4379 = vld [vmem:[#allocation3 + $0x1d8] sm:$0xff]
    %v4380 = vld [vmem:[#allocation3 + $0x1e0] sm:$0xff]
    %v4381 = vld [vmem:[#allocation3 + $0x1e8] sm:$0xff]
    %v4382 = vld [vmem:[#allocation3 + $0x1f0] sm:$0xff]
    %v4383 = vld [vmem:[#allocation3 + $0x1f8] sm:$0xff]
    %v4384 = vld [vmem:[%s8] sm:$0xff]
    %v4385 = vld [vmem:[%s8 + $0x8] sm:$0xff]
    %v4386 = vld [vmem:[%s8 + $0x10] sm:$0xff]
    %v4387 = vld [vmem:[%s8 + $0x18] sm:$0xff]
    %v4388 = vld [vmem:[%s8 + $0x20] sm:$0xff]
    %v4389 = vld [vmem:[%s8 + $0x28] sm:$0xff]
    %v4390 = vld [vmem:[%s8 + $0x30] sm:$0xff]
    %v4391 = vld [vmem:[%s8 + $0x38] sm:$0xff]
    %v4392 = vld [vmem:[%s8 + $0x40] sm:$0xff]
    %v4393 = vld [vmem:[%s8 + $0x48] sm:$0xff]
    %v4394 = vld [vmem:[%s8 + $0x50] sm:$0xff]
    %v4395 = vld [vmem:[%s8 + $0x58] sm:$0xff]
    %v4396 = vld [vmem:[%s8 + $0x60] sm:$0xff]
    %v4397 = vld [vmem:[%s8 + $0x68] sm:$0xff]
    %v4398 = vld [vmem:[%s8 + $0x70] sm:$0xff]
    %v4399 = vld [vmem:[%s8 + $0x78] sm:$0xff]
    %v4400 = vld [vmem:[%s8 + $0x80] sm:$0xff]
    %v4401 = vld [vmem:[%s8 + $0x88] sm:$0xff]
    %v4402 = vld [vmem:[%s8 + $0x90] sm:$0xff]
    %v4403 = vld [vmem:[%s8 + $0x98] sm:$0xff]
    %v4404 = vld [vmem:[%s8 + $0xa0] sm:$0xff]
    %v4405 = vld [vmem:[%s8 + $0xa8] sm:$0xff]
    %v4406 = vld [vmem:[%s8 + $0xb0] sm:$0xff]
    %v4407 = vld [vmem:[%s8 + $0xb8] sm:$0xff]
    %v4408 = vld [vmem:[%s8 + $0xc0] sm:$0xff]
    %v4409 = vld [vmem:[%s8 + $0xc8] sm:$0xff]
    %v4410 = vld [vmem:[%s8 + $0xd0] sm:$0xff]
    %v4411 = vld [vmem:[%s8 + $0xd8] sm:$0xff]
    %v4412 = vld [vmem:[%s8 + $0xe0] sm:$0xff]
    %v4413 = vld [vmem:[%s8 + $0xe8] sm:$0xff]
    %v4414 = vld [vmem:[%s8 + $0xf0] sm:$0xff]
    %v4415 = vld [vmem:[%s8 + $0xf8] sm:$0xff]
    %4417 = vset.pattern.permute.xlu0 0
    %4418 = vperm.xlu0 %4417, %v4384
    %v4419 = vpop.permute.xlu0 %4418
    %4422 = vset.pattern.permute.xlu0 0
    %4423 = vperm.xlu0 %4422, %v4385
    %v4424 = vpop.permute.xlu0 %4423
    %4427 = vset.pattern.permute.xlu0 0
    %4428 = vperm.xlu0 %4427, %v4386
    %v4429 = vpop.permute.xlu0 %4428
    %4432 = vset.pattern.permute.xlu0 0
    %4433 = vperm.xlu0 %4432, %v4387
    %v4434 = vpop.permute.xlu0 %4433
    %4437 = vset.pattern.permute.xlu0 0
    %4438 = vperm.xlu0 %4437, %v4388
    %v4439 = vpop.permute.xlu0 %4438
    %4442 = vset.pattern.permute.xlu0 0
    %4443 = vperm.xlu0 %4442, %v4389
    %v4444 = vpop.permute.xlu0 %4443
    %4447 = vset.pattern.permute.xlu0 0
    %4448 = vperm.xlu0 %4447, %v4390
    %v4449 = vpop.permute.xlu0 %4448
    %4452 = vset.pattern.permute.xlu0 0
    %4453 = vperm.xlu0 %4452, %v4391
    %v4454 = vpop.permute.xlu0 %4453
    %4457 = vset.pattern.permute.xlu0 0
    %4458 = vperm.xlu0 %4457, %v4392
    %v4459 = vpop.permute.xlu0 %4458
    %4462 = vset.pattern.permute.xlu0 0
    %4463 = vperm.xlu0 %4462, %v4393
    %v4464 = vpop.permute.xlu0 %4463
    %4467 = vset.pattern.permute.xlu0 0
    %4468 = vperm.xlu0 %4467, %v4394
    %v4469 = vpop.permute.xlu0 %4468
    %4472 = vset.pattern.permute.xlu0 0
    %4473 = vperm.xlu0 %4472, %v4395
    %v4474 = vpop.permute.xlu0 %4473
    %4477 = vset.pattern.permute.xlu0 0
    %4478 = vperm.xlu0 %4477, %v4396
    %v4479 = vpop.permute.xlu0 %4478
    %4482 = vset.pattern.permute.xlu0 0
    %4483 = vperm.xlu0 %4482, %v4397
    %v4484 = vpop.permute.xlu0 %4483
    %4487 = vset.pattern.permute.xlu0 0
    %4488 = vperm.xlu0 %4487, %v4398
    %v4489 = vpop.permute.xlu0 %4488
    %4492 = vset.pattern.permute.xlu0 0
    %4493 = vperm.xlu0 %4492, %v4399
    %v4494 = vpop.permute.xlu0 %4493
    %4497 = vset.pattern.permute.xlu0 0
    %4498 = vperm.xlu0 %4497, %v4400
    %v4499 = vpop.permute.xlu0 %4498
    %4502 = vset.pattern.permute.xlu0 0
    %4503 = vperm.xlu0 %4502, %v4401
    %v4504 = vpop.permute.xlu0 %4503
    %4507 = vset.pattern.permute.xlu0 0
    %4508 = vperm.xlu0 %4507, %v4402
    %v4509 = vpop.permute.xlu0 %4508
    %4512 = vset.pattern.permute.xlu0 0
    %4513 = vperm.xlu0 %4512, %v4403
    %v4514 = vpop.permute.xlu0 %4513
    %4517 = vset.pattern.permute.xlu0 0
    %4518 = vperm.xlu0 %4517, %v4404
    %v4519 = vpop.permute.xlu0 %4518
    %4522 = vset.pattern.permute.xlu0 0
    %4523 = vperm.xlu0 %4522, %v4405
    %v4524 = vpop.permute.xlu0 %4523
    %4527 = vset.pattern.permute.xlu0 0
    %4528 = vperm.xlu0 %4527, %v4406
    %v4529 = vpop.permute.xlu0 %4528
    %4532 = vset.pattern.permute.xlu0 0
    %4533 = vperm.xlu0 %4532, %v4407
    %v4534 = vpop.permute.xlu0 %4533
    %4537 = vset.pattern.permute.xlu0 0
    %4538 = vperm.xlu0 %4537, %v4408
    %v4539 = vpop.permute.xlu0 %4538
    %4542 = vset.pattern.permute.xlu0 0
    %4543 = vperm.xlu0 %4542, %v4409
    %v4544 = vpop.permute.xlu0 %4543
    %4547 = vset.pattern.permute.xlu0 0
    %4548 = vperm.xlu0 %4547, %v4410
    %v4549 = vpop.permute.xlu0 %4548
    %4552 = vset.pattern.permute.xlu0 0
    %4553 = vperm.xlu0 %4552, %v4411
    %v4554 = vpop.permute.xlu0 %4553
    %4557 = vset.pattern.permute.xlu0 0
    %4558 = vperm.xlu0 %4557, %v4412
    %v4559 = vpop.permute.xlu0 %4558
    %4562 = vset.pattern.permute.xlu0 0
    %4563 = vperm.xlu0 %4562, %v4413
    %v4564 = vpop.permute.xlu0 %4563
    %4567 = vset.pattern.permute.xlu0 0
    %4568 = vperm.xlu0 %4567, %v4414
    %v4569 = vpop.permute.xlu0 %4568
    %4572 = vset.pattern.permute.xlu0 0
    %4573 = vperm.xlu0 %4572, %v4415
    %v4574 = vpop.permute.xlu0 %4573
    %v4640 = vunpack.c.l.b16 %v4320
    %v4641 = vunpack.c.h.b16 %v4320
    %v4642 = vunpack.c.l.b16 %v4321
    %v4643 = vunpack.c.h.b16 %v4321
    %v4644 = vunpack.c.l.b16 %v4322
    %v4645 = vunpack.c.h.b16 %v4322
    %v4646 = vunpack.c.l.b16 %v4323
    %v4647 = vunpack.c.h.b16 %v4323
    %v4648 = vunpack.c.l.b16 %v4324
    %v4649 = vunpack.c.h.b16 %v4324
    %v4650 = vunpack.c.l.b16 %v4325
    %v4651 = vunpack.c.h.b16 %v4325
    %v4652 = vunpack.c.l.b16 %v4326
    %v4653 = vunpack.c.h.b16 %v4326
    %v4654 = vunpack.c.l.b16 %v4327
    %v4655 = vunpack.c.h.b16 %v4327
    %v4656 = vunpack.c.l.b16 %v4328
    %v4657 = vunpack.c.h.b16 %v4328
    %v4658 = vunpack.c.l.b16 %v4329
    %v4659 = vunpack.c.h.b16 %v4329
    %v4660 = vunpack.c.l.b16 %v4330
    %v4661 = vunpack.c.h.b16 %v4330
    %v4662 = vunpack.c.l.b16 %v4331
    %v4663 = vunpack.c.h.b16 %v4331
    %v4664 = vunpack.c.l.b16 %v4332
    %v4665 = vunpack.c.h.b16 %v4332
    %v4666 = vunpack.c.l.b16 %v4333
    %v4667 = vunpack.c.h.b16 %v4333
    %v4668 = vunpack.c.l.b16 %v4334
    %v4669 = vunpack.c.h.b16 %v4334
    %v4670 = vunpack.c.l.b16 %v4335
    %v4671 = vunpack.c.h.b16 %v4335
    %v4672 = vunpack.c.l.b16 %v4336
    %v4673 = vunpack.c.h.b16 %v4336
    %v4674 = vunpack.c.l.b16 %v4337
    %v4675 = vunpack.c.h.b16 %v4337
    %v4676 = vunpack.c.l.b16 %v4338
    %v4677 = vunpack.c.h.b16 %v4338
    %v4678 = vunpack.c.l.b16 %v4339
    %v4679 = vunpack.c.h.b16 %v4339
    %v4680 = vunpack.c.l.b16 %v4340
    %v4681 = vunpack.c.h.b16 %v4340
    %v4682 = vunpack.c.l.b16 %v4341
    %v4683 = vunpack.c.h.b16 %v4341
    %v4684 = vunpack.c.l.b16 %v4342
    %v4685 = vunpack.c.h.b16 %v4342
    %v4686 = vunpack.c.l.b16 %v4343
    %v4687 = vunpack.c.h.b16 %v4343
    %v4688 = vunpack.c.l.b16 %v4344
    %v4689 = vunpack.c.h.b16 %v4344
    %v4690 = vunpack.c.l.b16 %v4345
    %v4691 = vunpack.c.h.b16 %v4345
    %v4692 = vunpack.c.l.b16 %v4346
    %v4693 = vunpack.c.h.b16 %v4346
    %v4694 = vunpack.c.l.b16 %v4347
    %v4695 = vunpack.c.h.b16 %v4347
    %v4696 = vunpack.c.l.b16 %v4348
    %v4697 = vunpack.c.h.b16 %v4348
    %v4698 = vunpack.c.l.b16 %v4349
    %v4699 = vunpack.c.h.b16 %v4349
    %v4700 = vunpack.c.l.b16 %v4350
    %v4701 = vunpack.c.h.b16 %v4350
    %v4702 = vunpack.c.l.b16 %v4351
    %v4703 = vunpack.c.h.b16 %v4351
    %v4704 = vunpack.c.l.b16 %v4352
    %v4705 = vunpack.c.h.b16 %v4352
    %v4706 = vunpack.c.l.b16 %v4353
    %v4707 = vunpack.c.h.b16 %v4353
    %v4708 = vunpack.c.l.b16 %v4354
    %v4709 = vunpack.c.h.b16 %v4354
    %v4710 = vunpack.c.l.b16 %v4355
    %v4711 = vunpack.c.h.b16 %v4355
    %v4712 = vunpack.c.l.b16 %v4356
    %v4713 = vunpack.c.h.b16 %v4356
    %v4714 = vunpack.c.l.b16 %v4357
    %v4715 = vunpack.c.h.b16 %v4357
    %v4716 = vunpack.c.l.b16 %v4358
    %v4717 = vunpack.c.h.b16 %v4358
    %v4718 = vunpack.c.l.b16 %v4359
    %v4719 = vunpack.c.h.b16 %v4359
    %v4720 = vunpack.c.l.b16 %v4360
    %v4721 = vunpack.c.h.b16 %v4360
    %v4722 = vunpack.c.l.b16 %v4361
    %v4723 = vunpack.c.h.b16 %v4361
    %v4724 = vunpack.c.l.b16 %v4362
    %v4725 = vunpack.c.h.b16 %v4362
    %v4726 = vunpack.c.l.b16 %v4363
    %v4727 = vunpack.c.h.b16 %v4363
    %v4728 = vunpack.c.l.b16 %v4364
    %v4729 = vunpack.c.h.b16 %v4364
    %v4730 = vunpack.c.l.b16 %v4365
    %v4731 = vunpack.c.h.b16 %v4365
    %v4732 = vunpack.c.l.b16 %v4366
    %v4733 = vunpack.c.h.b16 %v4366
    %v4734 = vunpack.c.l.b16 %v4367
    %v4735 = vunpack.c.h.b16 %v4367
    %v4736 = vunpack.c.l.b16 %v4368
    %v4737 = vunpack.c.h.b16 %v4368
    %v4738 = vunpack.c.l.b16 %v4369
    %v4739 = vunpack.c.h.b16 %v4369
    %v4740 = vunpack.c.l.b16 %v4370
    %v4741 = vunpack.c.h.b16 %v4370
    %v4742 = vunpack.c.l.b16 %v4371
    %v4743 = vunpack.c.h.b16 %v4371
    %v4744 = vunpack.c.l.b16 %v4372
    %v4745 = vunpack.c.h.b16 %v4372
    %v4746 = vunpack.c.l.b16 %v4373
    %v4747 = vunpack.c.h.b16 %v4373
    %v4748 = vunpack.c.l.b16 %v4374
    %v4749 = vunpack.c.h.b16 %v4374
    %v4750 = vunpack.c.l.b16 %v4375
    %v4751 = vunpack.c.h.b16 %v4375
    %v4752 = vunpack.c.l.b16 %v4376
    %v4753 = vunpack.c.h.b16 %v4376
    %v4754 = vunpack.c.l.b16 %v4377
    %v4755 = vunpack.c.h.b16 %v4377
    %v4756 = vunpack.c.l.b16 %v4378
    %v4757 = vunpack.c.h.b16 %v4378
    %v4758 = vunpack.c.l.b16 %v4379
    %v4759 = vunpack.c.h.b16 %v4379
    %v4760 = vunpack.c.l.b16 %v4380
    %v4761 = vunpack.c.h.b16 %v4380
    %v4762 = vunpack.c.l.b16 %v4381
    %v4763 = vunpack.c.h.b16 %v4381
    %v4764 = vunpack.c.l.b16 %v4382
    %v4765 = vunpack.c.h.b16 %v4382
    %v4766 = vunpack.c.l.b16 %v4383
    %v4767 = vunpack.c.h.b16 %v4383
    %v4768 = vpack.c.b16 %v4644, %v4640
    %v4769 = vpack.c.b16 %v4645, %v4641
    %v4770 = vpack.c.b16 %v4646, %v4642
    %v4771 = vpack.c.b16 %v4647, %v4643
    %v4772 = vpack.c.b16 %v4652, %v4648
    %v4773 = vpack.c.b16 %v4653, %v4649
    %v4774 = vpack.c.b16 %v4654, %v4650
    %v4775 = vpack.c.b16 %v4655, %v4651
    %v4776 = vpack.c.b16 %v4660, %v4656
    %v4777 = vpack.c.b16 %v4661, %v4657
    %v4778 = vpack.c.b16 %v4662, %v4658
    %v4779 = vpack.c.b16 %v4663, %v4659
    %v4780 = vpack.c.b16 %v4668, %v4664
    %v4781 = vpack.c.b16 %v4669, %v4665
    %v4782 = vpack.c.b16 %v4670, %v4666
    %v4783 = vpack.c.b16 %v4671, %v4667
    %v4784 = vpack.c.b16 %v4676, %v4672
    %v4785 = vpack.c.b16 %v4677, %v4673
    %v4786 = vpack.c.b16 %v4678, %v4674
    %v4787 = vpack.c.b16 %v4679, %v4675
    %v4788 = vpack.c.b16 %v4684, %v4680
    %v4789 = vpack.c.b16 %v4685, %v4681
    %v4790 = vpack.c.b16 %v4686, %v4682
    %v4791 = vpack.c.b16 %v4687, %v4683
    %v4792 = vpack.c.b16 %v4692, %v4688
    %v4793 = vpack.c.b16 %v4693, %v4689
    %v4794 = vpack.c.b16 %v4694, %v4690
    %v4795 = vpack.c.b16 %v4695, %v4691
    %v4796 = vpack.c.b16 %v4700, %v4696
    %v4797 = vpack.c.b16 %v4701, %v4697
    %v4798 = vpack.c.b16 %v4702, %v4698
    %v4799 = vpack.c.b16 %v4703, %v4699
    %v4800 = vpack.c.b16 %v4708, %v4704
    %v4801 = vpack.c.b16 %v4709, %v4705
    %v4802 = vpack.c.b16 %v4710, %v4706
    %v4803 = vpack.c.b16 %v4711, %v4707
    %v4804 = vpack.c.b16 %v4716, %v4712
    %v4805 = vpack.c.b16 %v4717, %v4713
    %v4806 = vpack.c.b16 %v4718, %v4714
    %v4807 = vpack.c.b16 %v4719, %v4715
    %v4808 = vpack.c.b16 %v4724, %v4720
    %v4809 = vpack.c.b16 %v4725, %v4721
    %v4810 = vpack.c.b16 %v4726, %v4722
    %v4811 = vpack.c.b16 %v4727, %v4723
    %v4812 = vpack.c.b16 %v4732, %v4728
    %v4813 = vpack.c.b16 %v4733, %v4729
    %v4814 = vpack.c.b16 %v4734, %v4730
    %v4815 = vpack.c.b16 %v4735, %v4731
    %v4816 = vpack.c.b16 %v4740, %v4736
    %v4817 = vpack.c.b16 %v4741, %v4737
    %v4818 = vpack.c.b16 %v4742, %v4738
    %v4819 = vpack.c.b16 %v4743, %v4739
    %v4820 = vpack.c.b16 %v4748, %v4744
    %v4821 = vpack.c.b16 %v4749, %v4745
    %v4822 = vpack.c.b16 %v4750, %v4746
    %v4823 = vpack.c.b16 %v4751, %v4747
    %v4824 = vpack.c.b16 %v4756, %v4752
    %v4825 = vpack.c.b16 %v4757, %v4753
    %v4826 = vpack.c.b16 %v4758, %v4754
    %v4827 = vpack.c.b16 %v4759, %v4755
    %v4828 = vpack.c.b16 %v4764, %v4760
    %v4829 = vpack.c.b16 %v4765, %v4761
    %v4830 = vpack.c.b16 %v4766, %v4762
    %v4831 = vpack.c.b16 %v4767, %v4763
    %4896 = vmatprep.subr.bf16.mxu0 %v4257
    %4897 = vmatpush1.bf16.msra.mxu0 %v4256
    %4898 = vmatprep.subr.bf16.mxu0 %v4259
    %4899 = vmatpush1.bf16.msra.mxu0 %v4258
    %4900 = vmatprep.subr.bf16.mxu0 %v4261
    %4901 = vmatpush1.bf16.msra.mxu0 %v4260
    %4902 = vmatprep.subr.bf16.mxu0 %v4263
    %4903 = vmatpush1.bf16.msra.mxu0 %v4262
    %4904 = vmatprep.subr.bf16.mxu0 %v4265
    %4905 = vmatpush1.bf16.msra.mxu0 %v4264
    %4906 = vmatprep.subr.bf16.mxu0 %v4267
    %4907 = vmatpush1.bf16.msra.mxu0 %v4266
    %4908 = vmatprep.subr.bf16.mxu0 %v4269
    %4909 = vmatpush1.bf16.msra.mxu0 %v4268
    %4910 = vmatprep.subr.bf16.mxu0 %v4271
    %4911 = vmatpush1.bf16.msra.mxu0 %v4270
    %4912 = vmatprep.subr.bf16.mxu0 %v4273
    %4913 = vmatpush1.bf16.msra.mxu0 %v4272
    %4914 = vmatprep.subr.bf16.mxu0 %v4275
    %4915 = vmatpush1.bf16.msra.mxu0 %v4274
    %4916 = vmatprep.subr.bf16.mxu0 %v4277
    %4917 = vmatpush1.bf16.msra.mxu0 %v4276
    %4918 = vmatprep.subr.bf16.mxu0 %v4279
    %4919 = vmatpush1.bf16.msra.mxu0 %v4278
    %4920 = vmatprep.subr.bf16.mxu0 %v4281
    %4921 = vmatpush1.bf16.msra.mxu0 %v4280
    %4922 = vmatprep.subr.bf16.mxu0 %v4283
    %4923 = vmatpush1.bf16.msra.mxu0 %v4282
    %4924 = vmatprep.subr.bf16.mxu0 %v4285
    %4925 = vmatpush1.bf16.msra.mxu0 %v4284
    %4926 = vmatprep.subr.bf16.mxu0 %v4287
    %4927 = vmatpush1.bf16.msra.mxu0 %v4286
    %4928 = vmatprep.mubr.bf16.mxu0 %v4769
    %4929 = vmatmul.mubr.bf16.gmra.mrb[0].mxu0 %v4768
    %v4930 = vpop.f32.mrb[0].mxu0
    %v4931 = vadd.f32 %v4419, %v4930
    %v4932 = vpop.f32.mrb[0].mxu0
    %v4933 = vadd.f32 %v4419, %v4932
    %v4934 = vpop.f32.mrb[0].mxu0
    %v4935 = vadd.f32 %v4424, %v4934
    %v4936 = vpop.f32.mrb[0].mxu0
    %v4937 = vadd.f32 %v4424, %v4936
    %4938 = vmatprep.mubr.bf16.mxu0 %v4773
    %4939 = vmatmul.mubr.bf16.gmra.mrb[0].mxu0 %v4772
    %v4940 = vpop.f32.mrb[0].mxu0
    %v4941 = vadd.f32 %v4429, %v4940
    %v4942 = vpop.f32.mrb[0].mxu0
    %v4943 = vadd.f32 %v4429, %v4942
    %v4944 = vpop.f32.mrb[0].mxu0
    %v4945 = vadd.f32 %v4434, %v4944
    %v4946 = vpop.f32.mrb[0].mxu0
    %v4947 = vadd.f32 %v4434, %v4946
    %4948 = vmatprep.mubr.bf16.mxu0 %v4777
    %4949 = vmatmul.mubr.bf16.gmra.mrb[0].mxu0 %v4776
    %v4950 = vpop.f32.mrb[0].mxu0
    %v4951 = vadd.f32 %v4439, %v4950
    %v4952 = vpop.f32.mrb[0].mxu0
    %v4953 = vadd.f32 %v4439, %v4952
    %v4954 = vpop.f32.mrb[0].mxu0
    %v4955 = vadd.f32 %v4444, %v4954
    %v4956 = vpop.f32.mrb[0].mxu0
    %v4957 = vadd.f32 %v4444, %v4956
    %4958 = vmatprep.mubr.bf16.mxu0 %v4781
    %4959 = vmatmul.mubr.bf16.gmra.mrb[0].mxu0 %v4780
    %v4960 = vpop.f32.mrb[0].mxu0
    %v4961 = vadd.f32 %v4449, %v4960
    %v4962 = vpop.f32.mrb[0].mxu0
    %v4963 = vadd.f32 %v4449, %v4962
    %v4964 = vpop.f32.mrb[0].mxu0
    %v4965 = vadd.f32 %v4454, %v4964
    %v4966 = vpop.f32.mrb[0].mxu0
    %v4967 = vadd.f32 %v4454, %v4966
    %4968 = vmatprep.mubr.bf16.mxu0 %v4785
    %4969 = vmatmul.mubr.bf16.gmra.mrb[0].mxu0 %v4784
    %v4970 = vpop.f32.mrb[0].mxu0
    %v4971 = vadd.f32 %v4459, %v4970
    %v4972 = vpop.f32.mrb[0].mxu0
    %v4973 = vadd.f32 %v4459, %v4972
    %v4974 = vpop.f32.mrb[0].mxu0
    %v4975 = vadd.f32 %v4464, %v4974
    %v4976 = vpop.f32.mrb[0].mxu0
    %v4977 = vadd.f32 %v4464, %v4976
    %4978 = vmatprep.mubr.bf16.mxu0 %v4789
    %4979 = vmatmul.mubr.bf16.gmra.mrb[0].mxu0 %v4788
    %v4980 = vpop.f32.mrb[0].mxu0
    %v4981 = vadd.f32 %v4469, %v4980
    %v4982 = vpop.f32.mrb[0].mxu0
    %v4983 = vadd.f32 %v4469, %v4982
    %v4984 = vpop.f32.mrb[0].mxu0
    %v4985 = vadd.f32 %v4474, %v4984
    %v4986 = vpop.f32.mrb[0].mxu0
    %v4987 = vadd.f32 %v4474, %v4986
    %4988 = vmatprep.mubr.bf16.mxu0 %v4793
    %4989 = vmatmul.mubr.bf16.gmra.mrb[0].mxu0 %v4792
    %v4990 = vpop.f32.mrb[0].mxu0
    %v4991 = vadd.f32 %v4479, %v4990
    %v4992 = vpop.f32.mrb[0].mxu0
    %v4993 = vadd.f32 %v4479, %v4992
    %v4994 = vpop.f32.mrb[0].mxu0
    %v4995 = vadd.f32 %v4484, %v4994
    %v4996 = vpop.f32.mrb[0].mxu0
    %v4997 = vadd.f32 %v4484, %v4996
    %4998 = vmatprep.mubr.bf16.mxu0 %v4797
    %4999 = vmatmul.mubr.bf16.gmra.mrb[0].mxu0 %v4796
    %v5000 = vpop.f32.mrb[0].mxu0
    %v5001 = vadd.f32 %v4489, %v5000
    %v5002 = vpop.f32.mrb[0].mxu0
    %v5003 = vadd.f32 %v4489, %v5002
    %v5004 = vpop.f32.mrb[0].mxu0
    %v5005 = vadd.f32 %v4494, %v5004
    %v5006 = vpop.f32.mrb[0].mxu0
    %v5007 = vadd.f32 %v4494, %v5006
    %5008 = vmatprep.mubr.bf16.mxu0 %v4801
    %5009 = vmatmul.mubr.bf16.gmra.mrb[0].mxu0 %v4800
    %v5010 = vpop.f32.mrb[0].mxu0
    %v5011 = vadd.f32 %v4499, %v5010
    %v5012 = vpop.f32.mrb[0].mxu0
    %v5013 = vadd.f32 %v4499, %v5012
    %v5014 = vpop.f32.mrb[0].mxu0
    %v5015 = vadd.f32 %v4504, %v5014
    %v5016 = vpop.f32.mrb[0].mxu0
    %v5017 = vadd.f32 %v4504, %v5016
    %5018 = vmatprep.mubr.bf16.mxu0 %v4805
    %5019 = vmatmul.mubr.bf16.gmra.mrb[0].mxu0 %v4804
    %v5020 = vpop.f32.mrb[0].mxu0
    %v5021 = vadd.f32 %v4509, %v5020
    %v5022 = vpop.f32.mrb[0].mxu0
    %v5023 = vadd.f32 %v4509, %v5022
    %v5024 = vpop.f32.mrb[0].mxu0
    %v5025 = vadd.f32 %v4514, %v5024
    %v5026 = vpop.f32.mrb[0].mxu0
    %v5027 = vadd.f32 %v4514, %v5026
    %5028 = vmatprep.mubr.bf16.mxu0 %v4809
    %5029 = vmatmul.mubr.bf16.gmra.mrb[0].mxu0 %v4808
    %v5030 = vpop.f32.mrb[0].mxu0
    %v5031 = vadd.f32 %v4519, %v5030
    %v5032 = vpop.f32.mrb[0].mxu0
    %v5033 = vadd.f32 %v4519, %v5032
    %v5034 = vpop.f32.mrb[0].mxu0
    %v5035 = vadd.f32 %v4524, %v5034
    %v5036 = vpop.f32.mrb[0].mxu0
    %v5037 = vadd.f32 %v4524, %v5036
    %5038 = vmatprep.mubr.bf16.mxu0 %v4813
    %5039 = vmatmul.mubr.bf16.gmra.mrb[0].mxu0 %v4812
    %v5040 = vpop.f32.mrb[0].mxu0
    %v5041 = vadd.f32 %v4529, %v5040
    %v5042 = vpop.f32.mrb[0].mxu0
    %v5043 = vadd.f32 %v4529, %v5042
    %v5044 = vpop.f32.mrb[0].mxu0
    %v5045 = vadd.f32 %v4534, %v5044
    %v5046 = vpop.f32.mrb[0].mxu0
    %v5047 = vadd.f32 %v4534, %v5046
    %5048 = vmatprep.mubr.bf16.mxu0 %v4817
    %5049 = vmatmul.mubr.bf16.gmra.mrb[0].mxu0 %v4816
    %v5050 = vpop.f32.mrb[0].mxu0
    %v5051 = vadd.f32 %v4539, %v5050
    %v5052 = vpop.f32.mrb[0].mxu0
    %v5053 = vadd.f32 %v4539, %v5052
    %v5054 = vpop.f32.mrb[0].mxu0
    %v5055 = vadd.f32 %v4544, %v5054
    %v5056 = vpop.f32.mrb[0].mxu0
    %v5057 = vadd.f32 %v4544, %v5056
    %5058 = vmatprep.mubr.bf16.mxu0 %v4821
    %5059 = vmatmul.mubr.bf16.gmra.mrb[0].mxu0 %v4820
    %v5060 = vpop.f32.mrb[0].mxu0
    %v5061 = vadd.f32 %v4549, %v5060
    %v5062 = vpop.f32.mrb[0].mxu0
    %v5063 = vadd.f32 %v4549, %v5062
    %v5064 = vpop.f32.mrb[0].mxu0
    %v5065 = vadd.f32 %v4554, %v5064
    %v5066 = vpop.f32.mrb[0].mxu0
    %v5067 = vadd.f32 %v4554, %v5066
    %5068 = vmatprep.mubr.bf16.mxu0 %v4825
    %5069 = vmatmul.mubr.bf16.gmra.mrb[0].mxu0 %v4824
    %v5070 = vpop.f32.mrb[0].mxu0
    %v5071 = vadd.f32 %v4559, %v5070
    %v5072 = vpop.f32.mrb[0].mxu0
    %v5073 = vadd.f32 %v4559, %v5072
    %v5074 = vpop.f32.mrb[0].mxu0
    %v5075 = vadd.f32 %v4564, %v5074
    %v5076 = vpop.f32.mrb[0].mxu0
    %v5077 = vadd.f32 %v4564, %v5076
    %5078 = vmatprep.mubr.bf16.mxu0 %v4829
    %5079 = vmatmul.mubr.bf16.gmra.mrb[0].mxu0 %v4828
    %v5080 = vpop.f32.mrb[0].mxu0
    %v5081 = vadd.f32 %v4569, %v5080
    %v5082 = vpop.f32.mrb[0].mxu0
    %v5083 = vadd.f32 %v4569, %v5082
    %v5084 = vpop.f32.mrb[0].mxu0
    %v5085 = vadd.f32 %v4574, %v5084
    %v5086 = vpop.f32.mrb[0].mxu0
    %v5087 = vadd.f32 %v4574, %v5086
    %5088 = vdwg.mxu0
    %5089 = vmatprep.subr.bf16.mxu0 %v4289
    %5090 = vmatpush1.bf16.msra.mxu0 %v4288
    %5091 = vmatprep.subr.bf16.mxu0 %v4291
    %5092 = vmatpush1.bf16.msra.mxu0 %v4290
    %5093 = vmatprep.subr.bf16.mxu0 %v4293
    %5094 = vmatpush1.bf16.msra.mxu0 %v4292
    %5095 = vmatprep.subr.bf16.mxu0 %v4295
    %5096 = vmatpush1.bf16.msra.mxu0 %v4294
    %5097 = vmatprep.subr.bf16.mxu0 %v4297
    %5098 = vmatpush1.bf16.msra.mxu0 %v4296
    %5099 = vmatprep.subr.bf16.mxu0 %v4299
    %5100 = vmatpush1.bf16.msra.mxu0 %v4298
    %5101 = vmatprep.subr.bf16.mxu0 %v4301
    %5102 = vmatpush1.bf16.msra.mxu0 %v4300
    %5103 = vmatprep.subr.bf16.mxu0 %v4303
    %5104 = vmatpush1.bf16.msra.mxu0 %v4302
    %5105 = vmatprep.subr.bf16.mxu0 %v4305
    %5106 = vmatpush1.bf16.msra.mxu0 %v4304
    %5107 = vmatprep.subr.bf16.mxu0 %v4307
    %5108 = vmatpush1.bf16.msra.mxu0 %v4306
    %5109 = vmatprep.subr.bf16.mxu0 %v4309
    %5110 = vmatpush1.bf16.msra.mxu0 %v4308
    %5111 = vmatprep.subr.bf16.mxu0 %v4311
    %5112 = vmatpush1.bf16.msra.mxu0 %v4310
    %5113 = vmatprep.subr.bf16.mxu0 %v4313
    %5114 = vmatpush1.bf16.msra.mxu0 %v4312
    %5115 = vmatprep.subr.bf16.mxu0 %v4315
    %5116 = vmatpush1.bf16.msra.mxu0 %v4314
    %5117 = vmatprep.subr.bf16.mxu0 %v4317
    %5118 = vmatpush1.bf16.msra.mxu0 %v4316
    %5119 = vmatprep.subr.bf16.mxu0 %v4319
    %5120 = vmatpush1.bf16.msra.mxu0 %v4318
    %5121 = vmatprep.mubr.bf16.mxu0 %v4771
    %5122 = vmatmul.mubr.bf16.gmra.mrb[0].mxu0 %v4770
    %v5123 = vpop.f32.mrb[0].mxu0
    %v5124 = vadd.f32 %v4931, %v5123
    %v5125 = vpop.f32.mrb[0].mxu0
    %v5126 = vadd.f32 %v4933, %v5125
    %v5127 = vpop.f32.mrb[0].mxu0
    %v5128 = vadd.f32 %v4935, %v5127
    %v5129 = vpop.f32.mrb[0].mxu0
    %v5130 = vadd.f32 %v4937, %v5129
    %5131 = vmatprep.mubr.bf16.mxu0 %v4775
    %5132 = vmatmul.mubr.bf16.gmra.mrb[0].mxu0 %v4774
    %v5133 = vpop.f32.mrb[0].mxu0
    %v5134 = vadd.f32 %v4941, %v5133
    %v5135 = vpop.f32.mrb[0].mxu0
    %v5136 = vadd.f32 %v4943, %v5135
    %v5137 = vpop.f32.mrb[0].mxu0
    %v5138 = vadd.f32 %v4945, %v5137
    %v5139 = vpop.f32.mrb[0].mxu0
    %v5140 = vadd.f32 %v4947, %v5139
    %5141 = vmatprep.mubr.bf16.mxu0 %v4779
    %5142 = vmatmul.mubr.bf16.gmra.mrb[0].mxu0 %v4778
    %v5143 = vpop.f32.mrb[0].mxu0
    %v5144 = vadd.f32 %v4951, %v5143
    %v5145 = vpop.f32.mrb[0].mxu0
    %v5146 = vadd.f32 %v4953, %v5145
    %v5147 = vpop.f32.mrb[0].mxu0
    %v5148 = vadd.f32 %v4955, %v5147
    %v5149 = vpop.f32.mrb[0].mxu0
    %v5150 = vadd.f32 %v4957, %v5149
    %5151 = vmatprep.mubr.bf16.mxu0 %v4783
    %5152 = vmatmul.mubr.bf16.gmra.mrb[0].mxu0 %v4782
    %v5153 = vpop.f32.mrb[0].mxu0
    %v5154 = vadd.f32 %v4961, %v5153
    %v5155 = vpop.f32.mrb[0].mxu0
    %v5156 = vadd.f32 %v4963, %v5155
    %v5157 = vpop.f32.mrb[0].mxu0
    %v5158 = vadd.f32 %v4965, %v5157
    %v5159 = vpop.f32.mrb[0].mxu0
    %v5160 = vadd.f32 %v4967, %v5159
    %5161 = vmatprep.mubr.bf16.mxu0 %v4787
    %5162 = vmatmul.mubr.bf16.gmra.mrb[0].mxu0 %v4786
    %v5163 = vpop.f32.mrb[0].mxu0
    %v5164 = vadd.f32 %v4971, %v5163
    %v5165 = vpop.f32.mrb[0].mxu0
    %v5166 = vadd.f32 %v4973, %v5165
    %v5167 = vpop.f32.mrb[0].mxu0
    %v5168 = vadd.f32 %v4975, %v5167
    %v5169 = vpop.f32.mrb[0].mxu0
    %v5170 = vadd.f32 %v4977, %v5169
    %5171 = vmatprep.mubr.bf16.mxu0 %v4791
    %5172 = vmatmul.mubr.bf16.gmra.mrb[0].mxu0 %v4790
    %v5173 = vpop.f32.mrb[0].mxu0
    %v5174 = vadd.f32 %v4981, %v5173
    %v5175 = vpop.f32.mrb[0].mxu0
    %v5176 = vadd.f32 %v4983, %v5175
    %v5177 = vpop.f32.mrb[0].mxu0
    %v5178 = vadd.f32 %v4985, %v5177
    %v5179 = vpop.f32.mrb[0].mxu0
    %v5180 = vadd.f32 %v4987, %v5179
    %5181 = vmatprep.mubr.bf16.mxu0 %v4795
    %5182 = vmatmul.mubr.bf16.gmra.mrb[0].mxu0 %v4794
    %v5183 = vpop.f32.mrb[0].mxu0
    %v5184 = vadd.f32 %v4991, %v5183
    %v5185 = vpop.f32.mrb[0].mxu0
    %v5186 = vadd.f32 %v4993, %v5185
    %v5187 = vpop.f32.mrb[0].mxu0
    %v5188 = vadd.f32 %v4995, %v5187
    %v5189 = vpop.f32.mrb[0].mxu0
    %v5190 = vadd.f32 %v4997, %v5189
    %5191 = vmatprep.mubr.bf16.mxu0 %v4799
    %5192 = vmatmul.mubr.bf16.gmra.mrb[0].mxu0 %v4798
    %v5193 = vpop.f32.mrb[0].mxu0
    %v5194 = vadd.f32 %v5001, %v5193
    %v5195 = vpop.f32.mrb[0].mxu0
    %v5196 = vadd.f32 %v5003, %v5195
    %v5197 = vpop.f32.mrb[0].mxu0
    %v5198 = vadd.f32 %v5005, %v5197
    %v5199 = vpop.f32.mrb[0].mxu0
    %v5200 = vadd.f32 %v5007, %v5199
    %5201 = vmatprep.mubr.bf16.mxu0 %v4803
    %5202 = vmatmul.mubr.bf16.gmra.mrb[0].mxu0 %v4802
    %v5203 = vpop.f32.mrb[0].mxu0
    %v5204 = vadd.f32 %v5011, %v5203
    %v5205 = vpop.f32.mrb[0].mxu0
    %v5206 = vadd.f32 %v5013, %v5205
    %v5207 = vpop.f32.mrb[0].mxu0
    %v5208 = vadd.f32 %v5015, %v5207
    %v5209 = vpop.f32.mrb[0].mxu0
    %v5210 = vadd.f32 %v5017, %v5209
    %5211 = vmatprep.mubr.bf16.mxu0 %v4807
    %5212 = vmatmul.mubr.bf16.gmra.mrb[0].mxu0 %v4806
    %v5213 = vpop.f32.mrb[0].mxu0
    %v5214 = vadd.f32 %v5021, %v5213
    %v5215 = vpop.f32.mrb[0].mxu0
    %v5216 = vadd.f32 %v5023, %v5215
    %v5217 = vpop.f32.mrb[0].mxu0
    %v5218 = vadd.f32 %v5025, %v5217
    %v5219 = vpop.f32.mrb[0].mxu0
    %v5220 = vadd.f32 %v5027, %v5219
    %5221 = vmatprep.mubr.bf16.mxu0 %v4811
    %5222 = vmatmul.mubr.bf16.gmra.mrb[0].mxu0 %v4810
    %v5223 = vpop.f32.mrb[0].mxu0
    %v5224 = vadd.f32 %v5031, %v5223
    %v5225 = vpop.f32.mrb[0].mxu0
    %v5226 = vadd.f32 %v5033, %v5225
    %v5227 = vpop.f32.mrb[0].mxu0
    %v5228 = vadd.f32 %v5035, %v5227
    %v5229 = vpop.f32.mrb[0].mxu0
    %v5230 = vadd.f32 %v5037, %v5229
    %5231 = vmatprep.mubr.bf16.mxu0 %v4815
    %5232 = vmatmul.mubr.bf16.gmra.mrb[0].mxu0 %v4814
    %v5233 = vpop.f32.mrb[0].mxu0
    %v5234 = vadd.f32 %v5041, %v5233
    %v5235 = vpop.f32.mrb[0].mxu0
    %v5236 = vadd.f32 %v5043, %v5235
    %v5237 = vpop.f32.mrb[0].mxu0
    %v5238 = vadd.f32 %v5045, %v5237
    %v5239 = vpop.f32.mrb[0].mxu0
    %v5240 = vadd.f32 %v5047, %v5239
    %5241 = vmatprep.mubr.bf16.mxu0 %v4819
    %5242 = vmatmul.mubr.bf16.gmra.mrb[0].mxu0 %v4818
    %v5243 = vpop.f32.mrb[0].mxu0
    %v5244 = vadd.f32 %v5051, %v5243
    %v5245 = vpop.f32.mrb[0].mxu0
    %v5246 = vadd.f32 %v5053, %v5245
    %v5247 = vpop.f32.mrb[0].mxu0
    %v5248 = vadd.f32 %v5055, %v5247
    %v5249 = vpop.f32.mrb[0].mxu0
    %v5250 = vadd.f32 %v5057, %v5249
    %5251 = vmatprep.mubr.bf16.mxu0 %v4823
    %5252 = vmatmul.mubr.bf16.gmra.mrb[0].mxu0 %v4822
    %v5253 = vpop.f32.mrb[0].mxu0
    %v5254 = vadd.f32 %v5061, %v5253
    %v5255 = vpop.f32.mrb[0].mxu0
    %v5256 = vadd.f32 %v5063, %v5255
    %v5257 = vpop.f32.mrb[0].mxu0
    %v5258 = vadd.f32 %v5065, %v5257
    %v5259 = vpop.f32.mrb[0].mxu0
    %v5260 = vadd.f32 %v5067, %v5259
    %5261 = vmatprep.mubr.bf16.mxu0 %v4827
    %5262 = vmatmul.mubr.bf16.gmra.mrb[0].mxu0 %v4826
    %v5263 = vpop.f32.mrb[0].mxu0
    %v5264 = vadd.f32 %v5071, %v5263
    %v5265 = vpop.f32.mrb[0].mxu0
    %v5266 = vadd.f32 %v5073, %v5265
    %v5267 = vpop.f32.mrb[0].mxu0
    %v5268 = vadd.f32 %v5075, %v5267
    %v5269 = vpop.f32.mrb[0].mxu0
    %v5270 = vadd.f32 %v5077, %v5269
    %5271 = vmatprep.mubr.bf16.mxu0 %v4831
    %5272 = vmatmul.mubr.bf16.gmra.mrb[0].mxu0 %v4830
    %v5273 = vpop.f32.mrb[0].mxu0
    %v5274 = vadd.f32 %v5081, %v5273
    %v5275 = vpop.f32.mrb[0].mxu0
    %v5276 = vadd.f32 %v5083, %v5275
    %v5277 = vpop.f32.mrb[0].mxu0
    %v5278 = vadd.f32 %v5085, %v5277
    %v5279 = vpop.f32.mrb[0].mxu0
    %v5280 = vadd.f32 %v5087, %v5279
    %5281 = vdwg.mxu0
    %v5282 = vmax.f32 %v5124, 0.0
    %v5283 = vmax.f32 %v5126, 0.0
    %v5284 = vmax.f32 %v5128, 0.0
    %v5285 = vmax.f32 %v5130, 0.0
    %v5286 = vmax.f32 %v5134, 0.0
    %v5287 = vmax.f32 %v5136, 0.0
    %v5288 = vmax.f32 %v5138, 0.0
    %v5289 = vmax.f32 %v5140, 0.0
    %v5290 = vmax.f32 %v5144, 0.0
    %v5291 = vmax.f32 %v5146, 0.0
    %v5292 = vmax.f32 %v5148, 0.0
    %v5293 = vmax.f32 %v5150, 0.0
    %v5294 = vmax.f32 %v5154, 0.0
    %v5295 = vmax.f32 %v5156, 0.0
    %v5296 = vmax.f32 %v5158, 0.0
    %v5297 = vmax.f32 %v5160, 0.0
    %v5298 = vmax.f32 %v5164, 0.0
    %v5299 = vmax.f32 %v5166, 0.0
    %v5300 = vmax.f32 %v5168, 0.0
    %v5301 = vmax.f32 %v5170, 0.0
    %v5302 = vmax.f32 %v5174, 0.0
    %v5303 = vmax.f32 %v5176, 0.0
    %v5304 = vmax.f32 %v5178, 0.0
    %v5305 = vmax.f32 %v5180, 0.0
    %v5306 = vmax.f32 %v5184, 0.0
    %v5307 = vmax.f32 %v5186, 0.0
    %v5308 = vmax.f32 %v5188, 0.0
    %v5309 = vmax.f32 %v5190, 0.0
    %v5310 = vmax.f32 %v5194, 0.0
    %v5311 = vmax.f32 %v5196, 0.0
    %v5312 = vmax.f32 %v5198, 0.0
    %v5313 = vmax.f32 %v5200, 0.0
    %v5314 = vmax.f32 %v5204, 0.0
    %v5315 = vmax.f32 %v5206, 0.0
    %v5316 = vmax.f32 %v5208, 0.0
    %v5317 = vmax.f32 %v5210, 0.0
    %v5318 = vmax.f32 %v5214, 0.0
    %v5319 = vmax.f32 %v5216, 0.0
    %v5320 = vmax.f32 %v5218, 0.0
    %v5321 = vmax.f32 %v5220, 0.0
    %v5322 = vmax.f32 %v5224, 0.0
    %v5323 = vmax.f32 %v5226, 0.0
    %v5324 = vmax.f32 %v5228, 0.0
    %v5325 = vmax.f32 %v5230, 0.0
    %v5326 = vmax.f32 %v5234, 0.0
    %v5327 = vmax.f32 %v5236, 0.0
    %v5328 = vmax.f32 %v5238, 0.0
    %v5329 = vmax.f32 %v5240, 0.0
    %v5330 = vmax.f32 %v5244, 0.0
    %v5331 = vmax.f32 %v5246, 0.0
    %v5332 = vmax.f32 %v5248, 0.0
    %v5333 = vmax.f32 %v5250, 0.0
    %v5334 = vmax.f32 %v5254, 0.0
    %v5335 = vmax.f32 %v5256, 0.0
    %v5336 = vmax.f32 %v5258, 0.0
    %v5337 = vmax.f32 %v5260, 0.0
    %v5338 = vmax.f32 %v5264, 0.0
    %v5339 = vmax.f32 %v5266, 0.0
    %v5340 = vmax.f32 %v5268, 0.0
    %v5341 = vmax.f32 %v5270, 0.0
    %v5342 = vmax.f32 %v5274, 0.0
    %v5343 = vmax.f32 %v5276, 0.0
    %v5344 = vmax.f32 %v5278, 0.0
    %v5345 = vmax.f32 %v5280, 0.0
    %v5346 = vpack.c.bf16 %v5284, %v5282
    %v5347 = vpack.c.bf16 %v5285, %v5283
    %v5348 = vpack.c.bf16 %v5288, %v5286
    %v5349 = vpack.c.bf16 %v5289, %v5287
    %v5350 = vpack.c.bf16 %v5292, %v5290
    %v5351 = vpack.c.bf16 %v5293, %v5291
    %v5352 = vpack.c.bf16 %v5296, %v5294
    %v5353 = vpack.c.bf16 %v5297, %v5295
    %v5354 = vpack.c.bf16 %v5300, %v5298
    %v5355 = vpack.c.bf16 %v5301, %v5299
    %v5356 = vpack.c.bf16 %v5304, %v5302
    %v5357 = vpack.c.bf16 %v5305, %v5303
    %v5358 = vpack.c.bf16 %v5308, %v5306
    %v5359 = vpack.c.bf16 %v5309, %v5307
    %v5360 = vpack.c.bf16 %v5312, %v5310
    %v5361 = vpack.c.bf16 %v5313, %v5311
    %v5362 = vpack.c.bf16 %v5316, %v5314
    %v5363 = vpack.c.bf16 %v5317, %v5315
    %v5364 = vpack.c.bf16 %v5320, %v5318
    %v5365 = vpack.c.bf16 %v5321, %v5319
    %v5366 = vpack.c.bf16 %v5324, %v5322
    %v5367 = vpack.c.bf16 %v5325, %v5323
    %v5368 = vpack.c.bf16 %v5328, %v5326
    %v5369 = vpack.c.bf16 %v5329, %v5327
    %v5370 = vpack.c.bf16 %v5332, %v5330
    %v5371 = vpack.c.bf16 %v5333, %v5331
    %v5372 = vpack.c.bf16 %v5336, %v5334
    %v5373 = vpack.c.bf16 %v5337, %v5335
    %v5374 = vpack.c.bf16 %v5340, %v5338
    %v5375 = vpack.c.bf16 %v5341, %v5339
    %v5376 = vpack.c.bf16 %v5344, %v5342
    %v5377 = vpack.c.bf16 %v5345, %v5343
    %v5378 = vld [vmem:[%s9] sm:$0x3]
    %v5379 = vld [vmem:[#allocation2] sm:$0x1]
    %5381 = vset.pattern.permute.xlu0 0
    %5382 = vperm.xlu0 %5381, %v5379
    %v5383 = vpop.permute.xlu0 %5382
    %v5385 = vlaneseq
    %v5386 = vshrl.u32 %v5385, 7
    %v5387 = vsub.s32 0, %v5386
    %v5388 = vrot.slane %v5383, %v5387
    %v5391 = vunpack.c.l.s4 1966171168
    %v5392 = vunpack.c.0.s8 %v5391
    %v5393 = vlaneseq
    %v5394 = vshrl.u32 %v5393, 7
    %v5395 = vsub.s32 %v5392, %v5394
    %v5396 = vrot.slane %v5378, %v5395
    %v5397 = vcombine.high %v5396, %v5396
    %v5399 = vunpack.c.l.s4 1966171168
    %v5400 = vunpack.c.0.s8 %v5399
    %v5401 = vlaneseq
    %v5402 = vshrl.u32 %v5401, 7
    %v5403 = vsub.s32 %v5400, %v5402
    %v5404 = vrot.slane %v5396, %v5403
    %v5406 = vunpack.c.l.s4 1966171168
    %v5407 = vunpack.c.0.s8 %v5406
    %v5408 = vlaneseq
    %v5409 = vshrl.u32 %v5408, 7
    %v5410 = vsub.s32 %v5407, %v5409
    %v5411 = vrot.slane %v5397, %v5410
    %5414 = vmatprep.subr.bf16.mxu0 %v5347
    %5415 = vmatpush1.bf16.msra.mxu0 %v5346
    %5416 = vmatprep.subr.bf16.mxu0 %v5349
    %5417 = vmatpush1.bf16.msra.mxu0 %v5348
    %5418 = vmatprep.subr.bf16.mxu0 %v5351
    %5419 = vmatpush1.bf16.msra.mxu0 %v5350
    %5420 = vmatprep.subr.bf16.mxu0 %v5353
    %5421 = vmatpush1.bf16.msra.mxu0 %v5352
    %5422 = vmatprep.subr.bf16.mxu0 %v5355
    %5423 = vmatpush1.bf16.msra.mxu0 %v5354
    %5424 = vmatprep.subr.bf16.mxu0 %v5357
    %5425 = vmatpush1.bf16.msra.mxu0 %v5356
    %5426 = vmatprep.subr.bf16.mxu0 %v5359
    %5427 = vmatpush1.bf16.msra.mxu0 %v5358
    %5428 = vmatprep.subr.bf16.mxu0 %v5361
    %5429 = vmatpush1.bf16.msra.mxu0 %v5360
    %5430 = vmatprep.subr.bf16.mxu0 %v5363
    %5431 = vmatpush1.bf16.msra.mxu0 %v5362
    %5432 = vmatprep.subr.bf16.mxu0 %v5365
    %5433 = vmatpush1.bf16.msra.mxu0 %v5364
    %5434 = vmatprep.subr.bf16.mxu0 %v5367
    %5435 = vmatpush1.bf16.msra.mxu0 %v5366
    %5436 = vmatprep.subr.bf16.mxu0 %v5369
    %5437 = vmatpush1.bf16.msra.mxu0 %v5368
    %5438 = vmatprep.subr.bf16.mxu0 %v5371
    %5439 = vmatpush1.bf16.msra.mxu0 %v5370
    %5440 = vmatprep.subr.bf16.mxu0 %v5373
    %5441 = vmatpush1.bf16.msra.mxu0 %v5372
    %5442 = vmatprep.subr.bf16.mxu0 %v5375
    %5443 = vmatpush1.bf16.msra.mxu0 %v5374
    %5444 = vmatprep.subr.bf16.mxu0 %v5377
    %5445 = vmatpush1.bf16.msra.mxu0 %v5376
    %5446 = vmatprep.mubr.bf16.mxu0 %v5411
    %5447 = vmatmul.mubr.bf16.gmra.mrb[0].mxu0 %v5404
    %v5448 = vpop.f32.mrb[0].mxu0
    %v5449 = vadd.f32 %v5388, %v5448
    %v5450 = vpop.f32.mrb[0].mxu0
    %v5451 = vadd.f32 %v5388, %v5450
    %v5452 = vpop.f32.mrb[0].mxu0
    %v5453 = vpop.f32.mrb[0].mxu0
    %5454 = vdwg.mxu0
    %v5457 = vcombine.low %v5449, %v5451
    %v5459 = vunpack.c.l.s4 1966171168
    %v5460 = vunpack.c.0.s8 %v5459
    %v5461 = vlaneseq
    %v5462 = vshrl.u32 %v5461, 7
    %v5463 = vsub.s32 %v5460, %v5462
    %v5464 = vrot.slane %v5457, %v5463
    %v5466 = vunpack.c.l.s4 1966171168
    %v5467 = vunpack.c.0.s8 %v5466
    %v5468 = vlaneseq
    %v5469 = vshrl.u32 %v5468, 7
    %v5470 = vsub.s32 %v5467, %v5469
    %v5471 = vrot.slane %v5464, %v5470
    %v5473 = vlaneseq
    %vm5474 = vcmp.ge.s32.totalorder %v5473, 0
    %vm5475 = vcmp.lt.s32.totalorder %v5473, 256
    %vm5476 = vmand %vm5474, %vm5475
    %5477 = vst.msk [vmem:[#allocation6] sm:$0x3] %vm5476, %v5471
    // Predicated region
    $region50: #{ev_module_forward.1} parent=1 // pred_check
      _
    $region51: #{ev_module_forward.1} parent=1 // pred_check_branch
      %5479 = sbr.rel (0) target = $region53
    $region52: #{ev_module_forward.1} parent=1 // pred_region
      %s5481 = ssub.s32 32, 32
      %5482 = vsyncadd [#allocation5], %s5481
      %s5484 = sshll.u32 [#allocation6], 4
      %s5485 = int_to_ptr.vmem [resolvable:$true] %s5484
      %5487 = dma.vmem_to_hbm [thread:$0]  %s5485, 32, %s11, [#allocation5]
    $region53: #{ev_module_forward.1} parent=1 // pred_fallthru
      _
    // Predicated region
    $region54: #{ev_module_forward.1} parent=1 // pred_check
      _
    $region55: #{ev_module_forward.1} parent=1 // pred_check_branch
      %5489 = sbr.rel (0) target = $region57
    $region56: #{ev_module_forward.1} parent=1 // pred_region
      %5490 = dma.done [#allocation5], 32
    $region57: #{ev_module_forward.1} parent=1 // pred_fallthru
      _
    %5491 = vsyncpa [#allocation4], 1
    %5492 = vsyncpa [#allocation5], 1

</llo_original>
